<compile_context>
chip_gen: v7x
topology: tpu7x:2x2x1
jax: 0.10.0
libtpu: 0.0.40
codegen_flags: <defaults>
</compile_context>

<pallas_src>
import math
from functools import partial

import jax
import jax.numpy as jnp
from jax.experimental import pallas as pl
from jax.experimental.pallas import tpu as pltpu


# --------------------------------------------------------------------------
# helpers
# --------------------------------------------------------------------------

def _pick_tile(dim, preferred):
    """Largest 128-multiple tile <= preferred dividing dim, else the full dim."""
    for t in (preferred, 512, 256, 128):
        if t <= dim and dim % t == 0:
            return t
    return dim


def _layernorm(y, g, b, eps):
    mu = jnp.mean(y, axis=-1, keepdims=True)
    var = jnp.mean((y - mu) ** 2, axis=-1, keepdims=True)
    return (y - mu) * jax.lax.rsqrt(var + eps) * g + b


def _mha_proj(q, k, v, wo_ref, bo_ref, num_heads):
    """softmax(q k^T) v with the output projection folded into the head loop.

    q:(Sq,E), k/v:(Sk,E) bf16; the 1/sqrt(dh) scale is pre-folded into the Q
    projection weights.  Returns concat_h(attn_h) @ Wo + bo as (Sq, Eo) f32,
    but the lane-axis concatenate never materializes and only one head's
    (Sq, dh) output is live at a time.
    """
    Sq, E = q.shape
    dh = E // num_heads
    acc = jnp.zeros((Sq, wo_ref.shape[1]), jnp.float32)
    for h in range(num_heads):
        sl = slice(h * dh, (h + 1) * dh)
        s = jax.lax.dot_general(q[:, sl], k[:, sl], (((1,), (1,)), ((), ())),
                                preferred_element_type=jnp.float32)    # (Sq,Sk)
        m = jnp.max(s, axis=-1, keepdims=True)
        p = jnp.exp(s - m)
        p = p * pl.reciprocal(jnp.sum(p, axis=-1, keepdims=True), approx=True)
        oh = jnp.dot(p.astype(jnp.bfloat16), v[:, sl],
                     preferred_element_type=jnp.float32)               # (Sq,dh)
        # fold this head's slice of the output projection (no concat)
        acc = acc + jnp.dot(oh.astype(jnp.bfloat16), wo_ref[sl, :],
                            preferred_element_type=jnp.float32)
    return acc + bo_ref[...]


# --------------------------------------------------------------------------
# fused encoder / decoder layer kernels  (one pallas_call per layer)
# --------------------------------------------------------------------------

def _encoder_layer_kernel(x_ref, wqkv_ref, bqkv_ref, wo_ref, bo_ref,
                          g1_ref, b1_ref, w1_ref, bf1_ref, w2_ref, bf2_ref,
                          g2_ref, b2_ref, o_ref, *, num_heads, eps):
    x = x_ref[0]                                                 # (S, E) bf16
    E = x.shape[-1]
    # fused QKV projection (single MXU GEMM); split the in-VMEM result
    qkv = (jnp.dot(x, wqkv_ref[...], preferred_element_type=jnp.float32)
           + bqkv_ref[...]).astype(jnp.bfloat16)                 # (S, 3E)
    y = _mha_proj(qkv[:, :E], qkv[:, E:2 * E], qkv[:, 2 * E:],
                  wo_ref, bo_ref, num_heads)                     # attn + out-proj
    x1 = _layernorm(y + x.astype(jnp.float32), g1_ref[...], b1_ref[...], eps)
    # FFN (intermediate never leaves VMEM)
    h = jnp.maximum(jnp.dot(x1.astype(jnp.bfloat16), w1_ref[...],
                            preferred_element_type=jnp.float32) + bf1_ref[...], 0.0)
    y2 = jnp.dot(h.astype(jnp.bfloat16), w2_ref[...],
                 preferred_element_type=jnp.float32) + bf2_ref[...]
    o_ref[0] = _layernorm(y2 + x1, g2_ref[...], b2_ref[...], eps).astype(o_ref.dtype)


def _decoder_layer_kernel(x_ref, mem_ref, wqkv_ref, bqkv_ref, wo1_ref, bo1_ref,
                          g1_ref, b1_ref, wq_ref, bq_ref, wkv_ref, bkv_ref,
                          wo2_ref, bo2_ref, g2_ref, b2_ref, w1_ref, bf1_ref,
                          w2_ref, bf2_ref, g3_ref, b3_ref, o_ref,
                          *, num_heads, eps):
    x = x_ref[0]                                                 # (S,  E) bf16
    mem = mem_ref[0]                                             # (Sk, E) bf16
    E = x.shape[-1]

    # self-attention (unmasked — matches transformer(src, tgt) with no masks)
    qkv = (jnp.dot(x, wqkv_ref[...], preferred_element_type=jnp.float32)
           + bqkv_ref[...]).astype(jnp.bfloat16)
    y = _mha_proj(qkv[:, :E], qkv[:, E:2 * E], qkv[:, 2 * E:],
                  wo1_ref, bo1_ref, num_heads)
    x1 = _layernorm(y + x.astype(jnp.float32), g1_ref[...], b1_ref[...], eps)

    # cross-attention: Q from decoder state, fused K/V from encoder memory
    q = (jnp.dot(x1.astype(jnp.bfloat16), wq_ref[...],
                 preferred_element_type=jnp.float32) + bq_ref[...]).astype(jnp.bfloat16)
    kv = (jnp.dot(mem, wkv_ref[...], preferred_element_type=jnp.float32)
          + bkv_ref[...]).astype(jnp.bfloat16)                   # (Sk, 2E)
    y = _mha_proj(q, kv[:, :E], kv[:, E:], wo2_ref, bo2_ref, num_heads)
    x2 = _layernorm(y + x1, g2_ref[...], b2_ref[...], eps)

    # FFN
    h = jnp.maximum(jnp.dot(x2.astype(jnp.bfloat16), w1_ref[...],
                            preferred_element_type=jnp.float32) + bf1_ref[...], 0.0)
    y2 = jnp.dot(h.astype(jnp.bfloat16), w2_ref[...],
                 preferred_element_type=jnp.float32) + bf2_ref[...]
    o_ref[0] = _layernorm(y2 + x2, g3_ref[...], b3_ref[...], eps).astype(o_ref.dtype)


def encoder_layer(x, p, num_heads, eps=1e-5):
    B, S, E = x.shape
    F = p["ff1_w"].shape[1]
    row = lambda a: a.reshape(1, -1)
    # Constant-index weight/bias blocks (same block every grid step).
    # TODO: at large E/F, add pipeline_mode=pl.Buffered(1) to single-buffer.
    c = lambda shape: pl.BlockSpec(shape, lambda b: (0, 0))
    return pl.pallas_call(
        partial(_encoder_layer_kernel, num_heads=num_heads, eps=eps),
        out_shape=jax.ShapeDtypeStruct((B, S, E), jnp.bfloat16),
        grid=(B,),
        in_specs=[
            pl.BlockSpec((1, S, E), lambda b: (b, 0, 0)),
            c((E, 3 * E)), c((1, 3 * E)),
            c((E, E)), c((1, E)),
            c((1, E)), c((1, E)),
            c((E, F)), c((1, F)),
            c((F, E)), c((1, E)),
            c((1, E)), c((1, E)),
        ],
        out_specs=pl.BlockSpec((1, S, E), lambda b: (b, 0, 0)),
        compiler_params=pltpu.CompilerParams(
            dimension_semantics=("parallel",),
            vmem_limit_bytes=48 * 1024 * 1024),
    )(x, p["wqkv"], row(p["bqkv"]), p["wo"], row(p["bo"]),
      row(p["norm1_g"]), row(p["norm1_b"]),
      p["ff1_w"], row(p["ff1_b"]), p["ff2_w"], row(p["ff2_b"]),
      row(p["norm2_g"]), row(p["norm2_b"]))


def decoder_layer(x, memory, p, num_heads, eps=1e-5):
    B, S, E = x.shape
    Sk = memory.shape[1]
    F = p["ff1_w"].shape[1]
    row = lambda a: a.reshape(1, -1)
    c = lambda shape: pl.BlockSpec(shape, lambda b: (0, 0))
    return pl.pallas_call(
        partial(_decoder_layer_kernel, num_heads=num_heads, eps=eps),
        out_shape=jax.ShapeDtypeStruct((B, S, E), jnp.bfloat16),
        grid=(B,),
        in_specs=[
            pl.BlockSpec((1, S, E), lambda b: (b, 0, 0)),
            pl.BlockSpec((1, Sk, E), lambda b: (b, 0, 0)),
            c((E, 3 * E)), c((1, 3 * E)),
            c((E, E)), c((1, E)),
            c((1, E)), c((1, E)),
            c((E, E)), c((1, E)),
            c((E, 2 * E)), c((1, 2 * E)),
            c((E, E)), c((1, E)),
            c((1, E)), c((1, E)),
            c((E, F)), c((1, F)),
            c((F, E)), c((1, E)),
            c((1, E)), c((1, E)),
        ],
        out_specs=pl.BlockSpec((1, S, E), lambda b: (b, 0, 0)),
        compiler_params=pltpu.CompilerParams(
            dimension_semantics=("parallel",),
            vmem_limit_bytes=48 * 1024 * 1024),
    )(x, memory,
      p["wqkv"], row(p["bqkv"]), p["wo1"], row(p["bo1"]),
      row(p["norm1_g"]), row(p["norm1_b"]),
      p["wq"], row(p["bq"]), p["wkv"], row(p["bkv"]),
      p["wo2"], row(p["bo2"]),
      row(p["norm2_g"]), row(p["norm2_b"]),
      p["ff1_w"], row(p["ff1_b"]), p["ff2_w"], row(p["ff2_b"]),
      row(p["norm3_g"]), row(p["norm3_b"]))


# --------------------------------------------------------------------------
# final LayerNorm and tiled logits GEMM (vocab padded to 128 lanes)
# --------------------------------------------------------------------------

def _ln_kernel(x_ref, g_ref, b_ref, o_ref, *, eps):
    x = x_ref[...].astype(jnp.float32)
    o_ref[...] = _layernorm(x, g_ref[...], b_ref[...], eps).astype(o_ref.dtype)


def layernorm(x, gamma, beta, eps=1e-5, tm=512):
    M, E = x.shape
    tm = _pick_tile(M, tm)
    return pl.pallas_call(
        partial(_ln_kernel, eps=eps),
        out_shape=jax.ShapeDtypeStruct((M, E), jnp.bfloat16),
        grid=(M // tm,),
        in_specs=[
            pl.BlockSpec((tm, E), lambda i: (i, 0)),
            pl.BlockSpec((1, E), lambda i: (0, 0)),
            pl.BlockSpec((1, E), lambda i: (0, 0)),
        ],
        out_specs=pl.BlockSpec((tm, E), lambda i: (i, 0)),
        compiler_params=pltpu.CompilerParams(
            dimension_semantics=("parallel",),
            vmem_limit_bytes=32 * 1024 * 1024),
    )(x, gamma.reshape(1, E), beta.reshape(1, E))


def _matmul_kernel(x_ref, w_ref, b_ref, o_ref, acc_ref):
    @pl.when(pl.program_id(2) == 0)
    def _init():
        acc_ref[...] = jnp.zeros_like(acc_ref)

    acc_ref[...] += jnp.dot(x_ref[...], w_ref[...],
                            preferred_element_type=jnp.float32)

    @pl.when(pl.program_id(2) == pl.num_programs(2) - 1)
    def _finalize():
        o_ref[...] = (acc_ref[...] + b_ref[...]).astype(o_ref.dtype)


def matmul(x, w, b, tm=512, tn=512, tk=512):
    """x:(M,K) bf16 @ w:(K,N) bf16 + b:(N,) f32 -> (M,N) f32 (N a 128-multiple)."""
    M, K = x.shape
    N = w.shape[1]
    tm = _pick_tile(M, tm)
    tn = _pick_tile(N, tn)
    tk = _pick_tile(K, tk)
    return pl.pallas_call(
        _matmul_kernel,
        out_shape=jax.ShapeDtypeStruct((M, N), jnp.float32),
        grid=(M // tm, N // tn, K // tk),
        in_specs=[
            pl.BlockSpec((tm, tk), lambda i, j, k: (i, k)),
            pl.BlockSpec((tk, tn), lambda i, j, k: (k, j)),
            pl.BlockSpec((1, tn), lambda i, j, k: (0, j)),
        ],
        out_specs=pl.BlockSpec((tm, tn), lambda i, j, k: (i, j)),
        scratch_shapes=[pltpu.VMEM((tm, tn), jnp.float32)],
        compiler_params=pltpu.CompilerParams(
            dimension_semantics=("parallel", "parallel", "arbitrary"),
            vmem_limit_bytes=48 * 1024 * 1024),
    )(x, w, b.reshape(1, N))


# --------------------------------------------------------------------------
# forward pass
# --------------------------------------------------------------------------

def text_model_forward(params, src, tgt, num_heads):
    emb = params["embedding"]                                  # (V, E) f32
    V, E = emb.shape
    pe = params["pe"]                                          # (max_len, 1, E)

    def embed(tok):                                            # (S,B) -> (B,S,E) bf16
        x = jnp.take(emb, tok, axis=0)                         # embedding gather (XLA)
        x = x + pe[: tok.shape[0]]                             # positional encoding
        # dropout: identity (eval-mode forward)
        return jnp.transpose(x, (1, 0, 2)).astype(jnp.bfloat16)

    memory = embed(src)
    for lp in params["encoder_layers"]:
        memory = encoder_layer(memory, lp, num_heads)
    B, Ss, _ = memory.shape
    memory = layernorm(memory.reshape(B * Ss, E),
                       params["enc_norm_g"], params["enc_norm_b"]).reshape(B, Ss, E)

    out = embed(tgt)
    for lp in params["decoder_layers"]:
        out = decoder_layer(out, memory, lp, num_heads)
    B, St, _ = out.shape
    out2d = layernorm(out.reshape(B * St, E),
                      params["dec_norm_g"], params["dec_norm_b"])

    logits = matmul(out2d, params["out_w"], params["out_b"])   # (B*St, Vpad) f32
    logits = logits[:, :V].reshape(B, St, V)                   # drop lane padding
    return jnp.transpose(logits, (1, 0, 2))                    # (St, B, V)


# --------------------------------------------------------------------------
# Deterministic parameter init (synthetic; GEMM weights stored bf16)
# --------------------------------------------------------------------------

def init_params(key, vocab_size, E, num_heads, enc_layers, dec_layers, F,
                max_len=512):
    keys = iter(jax.random.split(key, 256))
    q_scale = 1.0 / math.sqrt(E // num_heads)

    def w(shape, scale=0.02):
        return (jax.random.normal(next(keys), shape, jnp.float32) * scale
                ).astype(jnp.bfloat16)

    def wqkv_fused():
        # 1/sqrt(dh) folded into the Q columns at build time (free; removes
        # the per-score VALU multiply in the attention kernel).
        m = jax.random.normal(next(keys), (E, 3 * E), jnp.float32) * 0.02
        m = m.at[:, :E].multiply(q_scale)
        return m.astype(jnp.bfloat16)

    def wq_scaled():
        m = jax.random.normal(next(keys), (E, E), jnp.float32) * 0.02 * q_scale
        return m.astype(jnp.bfloat16)

    def z(n):
        return jnp.zeros((n,), jnp.float32)

    def ones(n):
        return jnp.ones((n,), jnp.float32)

    def enc_layer_p():
        return dict(
            wqkv=wqkv_fused(), bqkv=z(3 * E),
            wo=w((E, E)), bo=z(E),
            norm1_g=ones(E), norm1_b=z(E),
            ff1_w=w((E, F)), ff1_b=z(F),
            ff2_w=w((F, E)), ff2_b=z(E),
            norm2_g=ones(E), norm2_b=z(E),
        )

    def dec_layer_p():
        return dict(
            wqkv=wqkv_fused(), bqkv=z(3 * E),
            wo1=w((E, E)), bo1=z(E),
            norm1_g=ones(E), norm1_b=z(E),
            wq=wq_scaled(), bq=z(E),
            wkv=w((E, 2 * E)), bkv=z(2 * E),
            wo2=w((E, E)), bo2=z(E),
            norm2_g=ones(E), norm2_b=z(E),
            ff1_w=w((E, F)), ff1_b=z(F),
            ff2_w=w((F, E)), ff2_b=z(E),
            norm3_g=ones(E), norm3_b=z(E),
        )

    # positional-encoding buffer (same formula as PositionalEncoding)
    position = jnp.arange(max_len, dtype=jnp.float32)[:, None]
    div_term = jnp.exp(jnp.arange(0, E, 2, dtype=jnp.float32)
                       * (-math.log(10000.0) / E))
    pe = jnp.zeros((max_len, E), jnp.float32)
    pe = pe.at[:, 0::2].set(jnp.sin(position * div_term))
    pe = pe.at[:, 1::2].set(jnp.cos(position * div_term))
    pe = pe[:, None, :]                                         # (max_len, 1, E)

    # vocab projection zero-padded to a multiple of 128 lanes (lane-dense
    # stores in the logits GEMM); padding is sliced off after the kernel.
    v_pad = ((vocab_size + 127) // 128) * 128
    out_w = jnp.zeros((E, v_pad), jnp.float32)
    out_w = out_w.at[:, :vocab_size].set(
        jax.random.normal(next(keys), (E, vocab_size), jnp.float32) * 0.02)

    return dict(
        embedding=jax.random.uniform(next(keys), (vocab_size, E),
                                     jnp.float32, minval=-0.1, maxval=0.1),
        pe=pe,
        encoder_layers=[enc_layer_p() for _ in range(enc_layers)],
        decoder_layers=[dec_layer_p() for _ in range(dec_layers)],
        enc_norm_g=ones(E), enc_norm_b=z(E),
        dec_norm_g=ones(E), dec_norm_b=z(E),
        out_w=out_w.astype(jnp.bfloat16),
        out_b=jnp.zeros((v_pad,), jnp.float32),
    )


# --------------------------------------------------------------------------

if __name__ == "__main__":
    vocab_size = 50
    embedding_size = 32
    num_heads = 4
    encoder_layers = 2
    decoder_layers = 2
    dim_feedforward = 64
    seq_len, batch = 8, 2

    key = jax.random.PRNGKey(0)
    pkey, skey, tkey = jax.random.split(key, 3)

    params = init_params(pkey, vocab_size, embedding_size, num_heads,
                         encoder_layers, decoder_layers, dim_feedforward)

    src = jax.random.randint(skey, (seq_len, batch), 0, vocab_size, dtype=jnp.int32)
    tgt = jax.random.randint(tkey, (seq_len, batch), 0, vocab_size, dtype=jnp.int32)

    fwd = jax.jit(lambda p, s, t: text_model_forward(p, s, t, num_heads))
    out = jax.block_until_ready(fwd(params, src, tgt))

    assert out.shape == (seq_len, batch, vocab_size), out.shape
    assert bool(jnp.all(jnp.isfinite(out)))
    print("KERNEL_OK")
</pallas_src>

<mosaic_0001>
module attributes {stable_mosaic.version = 11 : i64} {
  func.func @_matmul_kernel(%arg0: i32, %arg1: i32, %arg2: i32, %arg3: memref<16x32xbf16, #tpu.memory_space<vmem>>, %arg4: memref<32x128xbf16, #tpu.memory_space<vmem>>, %arg5: memref<1x128xf32, #tpu.memory_space<vmem>>, %arg6: memref<16x128xf32, #tpu.memory_space<vmem>>, %arg7: memref<16x128xf32, #tpu.memory_space<vmem>>) attributes {dimension_semantics = [#tpu.dimension_semantics<parallel>, #tpu.dimension_semantics<parallel>, #tpu.dimension_semantics<arbitrary>], iteration_bounds = array<i64: 1, 1, 1>, scalar_prefetch = 0 : i64, scratch_operands = 1 : i64, tpu.core_type = #tpu.core_type<tc>, window_params = [{transform_indices = @transform_0, window_bounds = array<i64: 16, 32>}, {transform_indices = @transform_1, window_bounds = array<i64: 32, 128>}, {transform_indices = @transform_2, window_bounds = array<i64: 1, 128>}, {transform_indices = @transform_3, window_bounds = array<i64: 16, 128>}]} {
    %c0_i32 = arith.constant 0 : i32
    %0 = arith.cmpi eq, %arg2, %c0_i32 : i32
    %1 = arith.extui %0 : i1 to i32
    %c0_i32_0 = arith.constant 0 : i32
    %2 = arith.cmpi ne, %1, %c0_i32_0 : i32
    scf.if %2 {
      %cst_10 = arith.constant 0.000000e+00 : f32
      %12 = vector.broadcast %cst_10 : f32 to vector<16x128xf32>
      %c0_11 = arith.constant 0 : index
      %c0_12 = arith.constant 0 : index
      %13 = vector.load %arg7[%c0_11, %c0_12] : memref<16x128xf32, #tpu.memory_space<vmem>>, vector<16x128xf32>
      tpu.vector_store %arg7[%c0_11, %c0_12], %12 {strides = array<i32>} : memref<16x128xf32, #tpu.memory_space<vmem>>, vector<16x128xf32>,
    } else {
    }
    %c0 = arith.constant 0 : index
    %c0_1 = arith.constant 0 : index
    %3 = vector.load %arg7[%c0, %c0_1] : memref<16x128xf32, #tpu.memory_space<vmem>>, vector<16x128xf32>
    %c0_2 = arith.constant 0 : index
    %c0_3 = arith.constant 0 : index
    %4 = vector.load %arg3[%c0_2, %c0_3] : memref<16x32xbf16, #tpu.memory_space<vmem>>, vector<16x32xbf16>
    %c0_4 = arith.constant 0 : index
    %c0_5 = arith.constant 0 : index
    %5 = vector.load %arg4[%c0_4, %c0_5] : memref<32x128xbf16, #tpu.memory_space<vmem>>, vector<32x128xbf16>
    %cst = arith.constant dense<0.000000e+00> : vector<16x128xf32>
    %6 = tpu.matmul %4, %5, %cst {dimension_numbers = #tpu.dot_dimension_numbers<[1], [0], [0], [1], [0, 0, 1, 1], [], []>} : vector<16x32xbf16>, vector<32x128xbf16>, vector<16x128xf32> -> vector<16x128xf32>
    %7 = arith.addf %3, %6 : vector<16x128xf32>
    %c0_6 = arith.constant 0 : index
    %c0_7 = arith.constant 0 : index
    %8 = vector.load %arg7[%c0_6, %c0_7] : memref<16x128xf32, #tpu.memory_space<vmem>>, vector<16x128xf32>
    tpu.vector_store %arg7[%c0_6, %c0_7], %7 {strides = array<i32>} : memref<16x128xf32, #tpu.memory_space<vmem>>, vector<16x128xf32>,
    %c0_i32_8 = arith.constant 0 : i32
    %9 = arith.cmpi eq, %arg2, %c0_i32_8 : i32
    %10 = arith.extui %9 : i1 to i32
    %c0_i32_9 = arith.constant 0 : i32
    %11 = arith.cmpi ne, %10, %c0_i32_9 : i32
    scf.if %11 {
      %c0_10 = arith.constant 0 : index
      %c0_11 = arith.constant 0 : index
      %12 = vector.load %arg7[%c0_10, %c0_11] : memref<16x128xf32, #tpu.memory_space<vmem>>, vector<16x128xf32>
      %c0_12 = arith.constant 0 : index
      %c0_13 = arith.constant 0 : index
      %13 = vector.load %arg5[%c0_12, %c0_13] : memref<1x128xf32, #tpu.memory_space<vmem>>, vector<1x128xf32>
      %14 = vector.broadcast %13 : vector<1x128xf32> to vector<16x128xf32>
      %15 = arith.addf %12, %14 : vector<16x128xf32>
      %c0_14 = arith.constant 0 : index
      %c0_15 = arith.constant 0 : index
      %16 = vector.load %arg6[%c0_14, %c0_15] : memref<16x128xf32, #tpu.memory_space<vmem>>, vector<16x128xf32>
      tpu.vector_store %arg6[%c0_14, %c0_15], %15 {strides = array<i32>} : memref<16x128xf32, #tpu.memory_space<vmem>>, vector<16x128xf32>,
    } else {
    }
    return
  }
  func.func @transform_0(%arg0: i32, %arg1: i32, %arg2: i32) -> (i32, i32) {
    %c0_i32 = arith.constant 0 : i32
    return %arg0, %arg2 : i32, i32
  }
  func.func @transform_1(%arg0: i32, %arg1: i32, %arg2: i32) -> (i32, i32) {
    %c0_i32 = arith.constant 0 : i32
    return %arg2, %arg1 : i32, i32
  }
  func.func @transform_2(%arg0: i32, %arg1: i32, %arg2: i32) -> (i32, i32) {
    %c0_i32 = arith.constant 0 : i32
    %c0_i32_0 = arith.constant 0 : i32
    return %c0_i32, %arg1 : i32, i32
  }
  func.func @transform_3(%arg0: i32, %arg1: i32, %arg2: i32) -> (i32, i32) {
    %c0_i32 = arith.constant 0 : i32
    return %arg0, %arg1 : i32, i32
  }
}

module attributes {stable_mosaic.version = 11 : i64} {
  func.func @_encoder_layer_kernel(%arg0: i32, %arg1: memref<1x8x32xbf16, #tpu.memory_space<vmem>>, %arg2: memref<32x96xbf16, #tpu.memory_space<vmem>>, %arg3: memref<1x96xf32, #tpu.memory_space<vmem>>, %arg4: memref<32x32xbf16, #tpu.memory_space<vmem>>, %arg5: memref<1x32xf32, #tpu.memory_space<vmem>>, %arg6: memref<1x32xf32, #tpu.memory_space<vmem>>, %arg7: memref<1x32xf32, #tpu.memory_space<vmem>>, %arg8: memref<32x64xbf16, #tpu.memory_space<vmem>>, %arg9: memref<1x64xf32, #tpu.memory_space<vmem>>, %arg10: memref<64x32xbf16, #tpu.memory_space<vmem>>, %arg11: memref<1x32xf32, #tpu.memory_space<vmem>>, %arg12: memref<1x32xf32, #tpu.memory_space<vmem>>, %arg13: memref<1x32xf32, #tpu.memory_space<vmem>>, %arg14: memref<1x8x32xbf16, #tpu.memory_space<vmem>>) attributes {dimension_semantics = [#tpu.dimension_semantics<parallel>], iteration_bounds = array<i64: 2>, scalar_prefetch = 0 : i64, scratch_operands = 0 : i64, tpu.core_type = #tpu.core_type<tc>, window_params = [{transform_indices = @transform_0, window_bounds = array<i64: 1, 8, 32>}, {pipeline_mode = #tpu.pipeline_mode<synchronous>, transform_indices = @transform_1, window_bounds = array<i64: 32, 96>}, {pipeline_mode = #tpu.pipeline_mode<synchronous>, transform_indices = @transform_2, window_bounds = array<i64: 1, 96>}, {pipeline_mode = #tpu.pipeline_mode<synchronous>, transform_indices = @transform_3, window_bounds = array<i64: 32, 32>}, {pipeline_mode = #tpu.pipeline_mode<synchronous>, transform_indices = @transform_4, window_bounds = array<i64: 1, 32>}, {pipeline_mode = #tpu.pipeline_mode<synchronous>, transform_indices = @transform_5, window_bounds = array<i64: 1, 32>}, {pipeline_mode = #tpu.pipeline_mode<synchronous>, transform_indices = @transform_6, window_bounds = array<i64: 1, 32>}, {pipeline_mode = #tpu.pipeline_mode<synchronous>, transform_indices = @transform_7, window_bounds = array<i64: 32, 64>}, {pipeline_mode = #tpu.pipeline_mode<synchronous>, transform_indices = @transform_8, window_bounds = array<i64: 1, 64>}, {pipeline_mode = #tpu.pipeline_mode<synchronous>, transform_indices = @transform_9, window_bounds = array<i64: 64, 32>}, {pipeline_mode = #tpu.pipeline_mode<synchronous>, transform_indices = @transform_10, window_bounds = array<i64: 1, 32>}, {pipeline_mode = #tpu.pipeline_mode<synchronous>, transform_indices = @transform_11, window_bounds = array<i64: 1, 32>}, {pipeline_mode = #tpu.pipeline_mode<synchronous>, transform_indices = @transform_12, window_bounds = array<i64: 1, 32>}, {transform_indices = @transform_13, window_bounds = array<i64: 1, 8, 32>}]} {
    %c0 = arith.constant 0 : index
    %c0_0 = arith.constant 0 : index
    %c0_1 = arith.constant 0 : index
    %0 = vector.load %arg1[%c0, %c0_0, %c0_1] : memref<1x8x32xbf16, #tpu.memory_space<vmem>>, vector<1x8x32xbf16>
    %1 = vector.shape_cast %0 : vector<1x8x32xbf16> to vector<8x32xbf16>
    %c0_2 = arith.constant 0 : index
    %c0_3 = arith.constant 0 : index
    %2 = vector.load %arg2[%c0_2, %c0_3] : memref<32x96xbf16, #tpu.memory_space<vmem>>, vector<32x96xbf16>
    %cst = arith.constant dense<0.000000e+00> : vector<8x96xf32>
    %3 = tpu.matmul %1, %2, %cst {dimension_numbers = #tpu.dot_dimension_numbers<[1], [0], [0], [1], [0, 0, 1, 1], [], []>} : vector<8x32xbf16>, vector<32x96xbf16>, vector<8x96xf32> -> vector<8x96xf32>
    %c0_4 = arith.constant 0 : index
    %c0_5 = arith.constant 0 : index
    %4 = vector.load %arg3[%c0_4, %c0_5] : memref<1x96xf32, #tpu.memory_space<vmem>>, vector<1x96xf32>
    %5 = vector.broadcast %4 : vector<1x96xf32> to vector<8x96xf32>
    %6 = arith.addf %3, %5 : vector<8x96xf32>
    %7 = arith.truncf %6 : vector<8x96xf32> to vector<8x96xbf16>
    %8 = vector.extract_strided_slice %7 {offsets = [0, 0], sizes = [8, 32], strides = [1, 1]} : vector<8x96xbf16> to vector<8x32xbf16>
    %9 = vector.extract_strided_slice %7 {offsets = [0, 32], sizes = [8, 32], strides = [1, 1]} : vector<8x96xbf16> to vector<8x32xbf16>
    %10 = vector.extract_strided_slice %7 {offsets = [0, 64], sizes = [8, 32], strides = [1, 1]} : vector<8x96xbf16> to vector<8x32xbf16>
    %cst_6 = arith.constant 0.000000e+00 : f32
    %11 = vector.broadcast %cst_6 : f32 to vector<8x32xf32>
    %12 = vector.extract_strided_slice %8 {offsets = [0, 0], sizes = [8, 8], strides = [1, 1]} : vector<8x32xbf16> to vector<8x8xbf16>
    %13 = vector.extract_strided_slice %9 {offsets = [0, 0], sizes = [8, 8], strides = [1, 1]} : vector<8x32xbf16> to vector<8x8xbf16>
    %cst_7 = arith.constant dense<0.000000e+00> : vector<8x8xf32>
    %14 = tpu.matmul %12, %13, %cst_7 {dimension_numbers = #tpu.dot_dimension_numbers<[1], [1], [0], [0], [0, 0, 1, 0], [], []>} : vector<8x8xbf16>, vector<8x8xbf16>, vector<8x8xf32> -> vector<8x8xf32>
    %cst_8 = arith.constant dense<0xFF800000> : vector<8xf32>
    %15 = vector.multi_reduction <maximumf>, %14, %cst_8 [1] : vector<8x8xf32> to vector<8xf32>
    %16 = vector.shape_cast %15 : vector<8xf32> to vector<8x1xf32>
    %17 = vector.broadcast %16 : vector<8x1xf32> to vector<8x8xf32>
    %18 = arith.subf %14, %17 : vector<8x8xf32>
    %19 = math.exp %18 : vector<8x8xf32>
    %cst_9 = arith.constant dense<0.000000e+00> : vector<8xf32>
    %20 = vector.multi_reduction <add>, %19, %cst_9 [1] : vector<8x8xf32> to vector<8xf32>
    %21 = vector.shape_cast %20 : vector<8xf32> to vector<8x1xf32>
    %22 = tpu.reciprocal %21 {approx = true} : vector<8x1xf32> -> vector<8x1xf32>
    %23 = vector.broadcast %22 : vector<8x1xf32> to vector<8x8xf32>
    %24 = arith.mulf %19, %23 : vector<8x8xf32>
    %25 = arith.truncf %24 : vector<8x8xf32> to vector<8x8xbf16>
    %26 = vector.extract_strided_slice %10 {offsets = [0, 0], sizes = [8, 8], strides = [1, 1]} : vector<8x32xbf16> to vector<8x8xbf16>
    %cst_10 = arith.constant dense<0.000000e+00> : vector<8x8xf32>
    %27 = tpu.matmul %25, %26, %cst_10 {dimension_numbers = #tpu.dot_dimension_numbers<[1], [0], [0], [1], [0, 0, 1, 1], [], []>} : vector<8x8xbf16>, vector<8x8xbf16>, vector<8x8xf32> -> vector<8x8xf32>
    %28 = arith.truncf %27 : vector<8x8xf32> to vector<8x8xbf16>
    %c0_11 = arith.constant 0 : index
    %c0_12 = arith.constant 0 : index
    %29 = vector.load %arg4[%c0_11, %c0_12] : memref<32x32xbf16, #tpu.memory_space<vmem>>, vector<8x32xbf16>
    %cst_13 = arith.constant dense<0.000000e+00> : vector<8x32xf32>
    %30 = tpu.matmul %28, %29, %cst_13 {dimension_numbers = #tpu.dot_dimension_numbers<[1], [0], [0], [1], [0, 0, 1, 1], [], []>} : vector<8x8xbf16>, vector<8x32xbf16>, vector<8x32xf32> -> vector<8x32xf32>
    %31 = arith.addf %11, %30 : vector<8x32xf32>
    %32 = vector.extract_strided_slice %8 {offsets = [0, 8], sizes = [8, 8], strides = [1, 1]} : vector<8x32xbf16> to vector<8x8xbf16>
    %33 = vector.extract_strided_slice %9 {offsets = [0, 8], sizes = [8, 8], strides = [1, 1]} : vector<8x32xbf16> to vector<8x8xbf16>
    %cst_14 = arith.constant dense<0.000000e+00> : vector<8x8xf32>
    %34 = tpu.matmul %32, %33, %cst_14 {dimension_numbers = #tpu.dot_dimension_numbers<[1], [1], [0], [0], [0, 0, 1, 0], [], []>} : vector<8x8xbf16>, vector<8x8xbf16>, vector<8x8xf32> -> vector<8x8xf32>
    %cst_15 = arith.constant dense<0xFF800000> : vector<8xf32>
    %35 = vector.multi_reduction <maximumf>, %34, %cst_15 [1] : vector<8x8xf32> to vector<8xf32>
    %36 = vector.shape_cast %35 : vector<8xf32> to vector<8x1xf32>
    %37 = vector.broadcast %36 : vector<8x1xf32> to vector<8x8xf32>
    %38 = arith.subf %34, %37 : vector<8x8xf32>
    %39 = math.exp %38 : vector<8x8xf32>
    %cst_16 = arith.constant dense<0.000000e+00> : vector<8xf32>
    %40 = vector.multi_reduction <add>, %39, %cst_16 [1] : vector<8x8xf32> to vector<8xf32>
    %41 = vector.shape_cast %40 : vector<8xf32> to vector<8x1xf32>
    %42 = tpu.reciprocal %41 {approx = true} : vector<8x1xf32> -> vector<8x1xf32>
    %43 = vector.broadcast %42 : vector<8x1xf32> to vector<8x8xf32>
    %44 = arith.mulf %39, %43 : vector<8x8xf32>
    %45 = arith.truncf %44 : vector<8x8xf32> to vector<8x8xbf16>
    %46 = vector.extract_strided_slice %10 {offsets = [0, 8], sizes = [8, 8], strides = [1, 1]} : vector<8x32xbf16> to vector<8x8xbf16>
    %cst_17 = arith.constant dense<0.000000e+00> : vector<8x8xf32>
    %47 = tpu.matmul %45, %46, %cst_17 {dimension_numbers = #tpu.dot_dimension_numbers<[1], [0], [0], [1], [0, 0, 1, 1], [], []>} : vector<8x8xbf16>, vector<8x8xbf16>, vector<8x8xf32> -> vector<8x8xf32>
    %48 = arith.truncf %47 : vector<8x8xf32> to vector<8x8xbf16>
    %c8 = arith.constant 8 : index
    %c0_18 = arith.constant 0 : index
    %49 = vector.load %arg4[%c8, %c0_18] : memref<32x32xbf16, #tpu.memory_space<vmem>>, vector<8x32xbf16>
    %cst_19 = arith.constant dense<0.000000e+00> : vector<8x32xf32>
    %50 = tpu.matmul %48, %49, %cst_19 {dimension_numbers = #tpu.dot_dimension_numbers<[1], [0], [0], [1], [0, 0, 1, 1], [], []>} : vector<8x8xbf16>, vector<8x32xbf16>, vector<8x32xf32> -> vector<8x32xf32>
    %51 = arith.addf %31, %50 : vector<8x32xf32>
    %52 = vector.extract_strided_slice %8 {offsets = [0, 16], sizes = [8, 8], strides = [1, 1]} : vector<8x32xbf16> to vector<8x8xbf16>
    %53 = vector.extract_strided_slice %9 {offsets = [0, 16], sizes = [8, 8], strides = [1, 1]} : vector<8x32xbf16> to vector<8x8xbf16>
    %cst_20 = arith.constant dense<0.000000e+00> : vector<8x8xf32>
    %54 = tpu.matmul %52, %53, %cst_20 {dimension_numbers = #tpu.dot_dimension_numbers<[1], [1], [0], [0], [0, 0, 1, 0], [], []>} : vector<8x8xbf16>, vector<8x8xbf16>, vector<8x8xf32> -> vector<8x8xf32>
    %cst_21 = arith.constant dense<0xFF800000> : vector<8xf32>
    %55 = vector.multi_reduction <maximumf>, %54, %cst_21 [1] : vector<8x8xf32> to vector<8xf32>
    %56 = vector.shape_cast %55 : vector<8xf32> to vector<8x1xf32>
    %57 = vector.broadcast %56 : vector<8x1xf32> to vector<8x8xf32>
    %58 = arith.subf %54, %57 : vector<8x8xf32>
    %59 = math.exp %58 : vector<8x8xf32>
    %cst_22 = arith.constant dense<0.000000e+00> : vector<8xf32>
    %60 = vector.multi_reduction <add>, %59, %cst_22 [1] : vector<8x8xf32> to vector<8xf32>
    %61 = vector.shape_cast %60 : vector<8xf32> to vector<8x1xf32>
    %62 = tpu.reciprocal %61 {approx = true} : vector<8x1xf32> -> vector<8x1xf32>
    %63 = vector.broadcast %62 : vector<8x1xf32> to vector<8x8xf32>
    %64 = arith.mulf %59, %63 : vector<8x8xf32>
    %65 = arith.truncf %64 : vector<8x8xf32> to vector<8x8xbf16>
    %66 = vector.extract_strided_slice %10 {offsets = [0, 16], sizes = [8, 8], strides = [1, 1]} : vector<8x32xbf16> to vector<8x8xbf16>
    %cst_23 = arith.constant dense<0.000000e+00> : vector<8x8xf32>
    %67 = tpu.matmul %65, %66, %cst_23 {dimension_numbers = #tpu.dot_dimension_numbers<[1], [0], [0], [1], [0, 0, 1, 1], [], []>} : vector<8x8xbf16>, vector<8x8xbf16>, vector<8x8xf32> -> vector<8x8xf32>
    %68 = arith.truncf %67 : vector<8x8xf32> to vector<8x8xbf16>
    %c16 = arith.constant 16 : index
    %c0_24 = arith.constant 0 : index
    %69 = vector.load %arg4[%c16, %c0_24] : memref<32x32xbf16, #tpu.memory_space<vmem>>, vector<8x32xbf16>
    %cst_25 = arith.constant dense<0.000000e+00> : vector<8x32xf32>
    %70 = tpu.matmul %68, %69, %cst_25 {dimension_numbers = #tpu.dot_dimension_numbers<[1], [0], [0], [1], [0, 0, 1, 1], [], []>} : vector<8x8xbf16>, vector<8x32xbf16>, vector<8x32xf32> -> vector<8x32xf32>
    %71 = arith.addf %51, %70 : vector<8x32xf32>
    %72 = vector.extract_strided_slice %8 {offsets = [0, 24], sizes = [8, 8], strides = [1, 1]} : vector<8x32xbf16> to vector<8x8xbf16>
    %73 = vector.extract_strided_slice %9 {offsets = [0, 24], sizes = [8, 8], strides = [1, 1]} : vector<8x32xbf16> to vector<8x8xbf16>
    %cst_26 = arith.constant dense<0.000000e+00> : vector<8x8xf32>
    %74 = tpu.matmul %72, %73, %cst_26 {dimension_numbers = #tpu.dot_dimension_numbers<[1], [1], [0], [0], [0, 0, 1, 0], [], []>} : vector<8x8xbf16>, vector<8x8xbf16>, vector<8x8xf32> -> vector<8x8xf32>
    %cst_27 = arith.constant dense<0xFF800000> : vector<8xf32>
    %75 = vector.multi_reduction <maximumf>, %74, %cst_27 [1] : vector<8x8xf32> to vector<8xf32>
    %76 = vector.shape_cast %75 : vector<8xf32> to vector<8x1xf32>
    %77 = vector.broadcast %76 : vector<8x1xf32> to vector<8x8xf32>
    %78 = arith.subf %74, %77 : vector<8x8xf32>
    %79 = math.exp %78 : vector<8x8xf32>
    %cst_28 = arith.constant dense<0.000000e+00> : vector<8xf32>
    %80 = vector.multi_reduction <add>, %79, %cst_28 [1] : vector<8x8xf32> to vector<8xf32>
    %81 = vector.shape_cast %80 : vector<8xf32> to vector<8x1xf32>
    %82 = tpu.reciprocal %81 {approx = true} : vector<8x1xf32> -> vector<8x1xf32>
    %83 = vector.broadcast %82 : vector<8x1xf32> to vector<8x8xf32>
    %84 = arith.mulf %79, %83 : vector<8x8xf32>
    %85 = arith.truncf %84 : vector<8x8xf32> to vector<8x8xbf16>
    %86 = vector.extract_strided_slice %10 {offsets = [0, 24], sizes = [8, 8], strides = [1, 1]} : vector<8x32xbf16> to vector<8x8xbf16>
    %cst_29 = arith.constant dense<0.000000e+00> : vector<8x8xf32>
    %87 = tpu.matmul %85, %86, %cst_29 {dimension_numbers = #tpu.dot_dimension_numbers<[1], [0], [0], [1], [0, 0, 1, 1], [], []>} : vector<8x8xbf16>, vector<8x8xbf16>, vector<8x8xf32> -> vector<8x8xf32>
    %88 = arith.truncf %87 : vector<8x8xf32> to vector<8x8xbf16>
    %c24 = arith.constant 24 : index
    %c0_30 = arith.constant 0 : index
    %89 = vector.load %arg4[%c24, %c0_30] : memref<32x32xbf16, #tpu.memory_space<vmem>>, vector<8x32xbf16>
    %cst_31 = arith.constant dense<0.000000e+00> : vector<8x32xf32>
    %90 = tpu.matmul %88, %89, %cst_31 {dimension_numbers = #tpu.dot_dimension_numbers<[1], [0], [0], [1], [0, 0, 1, 1], [], []>} : vector<8x8xbf16>, vector<8x32xbf16>, vector<8x32xf32> -> vector<8x32xf32>
    %91 = arith.addf %71, %90 : vector<8x32xf32>
    %c0_32 = arith.constant 0 : index
    %c0_33 = arith.constant 0 : index
    %92 = vector.load %arg5[%c0_32, %c0_33] : memref<1x32xf32, #tpu.memory_space<vmem>>, vector<1x32xf32>
    %93 = vector.broadcast %92 : vector<1x32xf32> to vector<8x32xf32>
    %94 = arith.addf %91, %93 : vector<8x32xf32>
    %95 = arith.extf %1 : vector<8x32xbf16> to vector<8x32xf32>
    %96 = arith.addf %94, %95 : vector<8x32xf32>
    %c0_34 = arith.constant 0 : index
    %c0_35 = arith.constant 0 : index
    %97 = vector.load %arg6[%c0_34, %c0_35] : memref<1x32xf32, #tpu.memory_space<vmem>>, vector<1x32xf32>
    %c0_36 = arith.constant 0 : index
    %c0_37 = arith.constant 0 : index
    %98 = vector.load %arg7[%c0_36, %c0_37] : memref<1x32xf32, #tpu.memory_space<vmem>>, vector<1x32xf32>
    %cst_38 = arith.constant dense<0.000000e+00> : vector<8xf32>
    %99 = vector.multi_reduction <add>, %96, %cst_38 [1] : vector<8x32xf32> to vector<8xf32>
    %100 = vector.shape_cast %99 : vector<8xf32> to vector<8x1xf32>
    %cst_39 = arith.constant 3.200000e+01 : f32
    %101 = vector.broadcast %cst_39 : f32 to vector<8x1xf32>
    %102 = arith.divf %100, %101 : vector<8x1xf32>
    %103 = vector.broadcast %102 : vector<8x1xf32> to vector<8x32xf32>
    %104 = arith.subf %96, %103 : vector<8x32xf32>
    %105 = arith.mulf %104, %104 : vector<8x32xf32>
    %cst_40 = arith.constant dense<0.000000e+00> : vector<8xf32>
    %106 = vector.multi_reduction <add>, %105, %cst_40 [1] : vector<8x32xf32> to vector<8xf32>
    %107 = vector.shape_cast %106 : vector<8xf32> to vector<8x1xf32>
    %cst_41 = arith.constant 3.200000e+01 : f32
    %108 = vector.broadcast %cst_41 : f32 to vector<8x1xf32>
    %109 = arith.divf %107, %108 : vector<8x1xf32>
    %110 = vector.broadcast %102 : vector<8x1xf32> to vector<8x32xf32>
    %111 = arith.subf %96, %110 : vector<8x32xf32>
    %cst_42 = arith.constant 9.99999974E-6 : f32
    %112 = vector.broadcast %cst_42 : f32 to vector<8x1xf32>
    %113 = arith.addf %109, %112 : vector<8x1xf32>
    %114 = math.rsqrt %113 : vector<8x1xf32>
    %115 = vector.broadcast %114 : vector<8x1xf32> to vector<8x32xf32>
    %116 = arith.mulf %111, %115 : vector<8x32xf32>
    %117 = vector.broadcast %97 : vector<1x32xf32> to vector<8x32xf32>
    %118 = arith.mulf %116, %117 : vector<8x32xf32>
    %119 = vector.broadcast %98 : vector<1x32xf32> to vector<8x32xf32>
    %120 = arith.addf %118, %119 : vector<8x32xf32>
    %121 = arith.truncf %120 : vector<8x32xf32> to vector<8x32xbf16>
    %c0_43 = arith.constant 0 : index
    %c0_44 = arith.constant 0 : index
    %122 = vector.load %arg8[%c0_43, %c0_44] : memref<32x64xbf16, #tpu.memory_space<vmem>>, vector<32x64xbf16>
    %cst_45 = arith.constant dense<0.000000e+00> : vector<8x64xf32>
    %123 = tpu.matmul %121, %122, %cst_45 {dimension_numbers = #tpu.dot_dimension_numbers<[1], [0], [0], [1], [0, 0, 1, 1], [], []>} : vector<8x32xbf16>, vector<32x64xbf16>, vector<8x64xf32> -> vector<8x64xf32>
    %c0_46 = arith.constant 0 : index
    %c0_47 = arith.constant 0 : index
    %124 = vector.load %arg9[%c0_46, %c0_47] : memref<1x64xf32, #tpu.memory_space<vmem>>, vector<1x64xf32>
    %125 = vector.broadcast %124 : vector<1x64xf32> to vector<8x64xf32>
    %126 = arith.addf %123, %125 : vector<8x64xf32>
    %cst_48 = arith.constant 0.000000e+00 : f32
    %127 = vector.broadcast %cst_48 : f32 to vector<8x64xf32>
    %128 = arith.maximumf %126, %127 : vector<8x64xf32>
    %129 = arith.truncf %128 : vector<8x64xf32> to vector<8x64xbf16>
    %c0_49 = arith.constant 0 : index
    %c0_50 = arith.constant 0 : index
    %130 = vector.load %arg10[%c0_49, %c0_50] : memref<64x32xbf16, #tpu.memory_space<vmem>>, vector<64x32xbf16>
    %cst_51 = arith.constant dense<0.000000e+00> : vector<8x32xf32>
    %131 = tpu.matmul %129, %130, %cst_51 {dimension_numbers = #tpu.dot_dimension_numbers<[1], [0], [0], [1], [0, 0, 1, 1], [], []>} : vector<8x64xbf16>, vector<64x32xbf16>, vector<8x32xf32> -> vector<8x32xf32>
    %c0_52 = arith.constant 0 : index
    %c0_53 = arith.constant 0 : index
    %132 = vector.load %arg11[%c0_52, %c0_53] : memref<1x32xf32, #tpu.memory_space<vmem>>, vector<1x32xf32>
    %133 = vector.broadcast %132 : vector<1x32xf32> to vector<8x32xf32>
    %134 = arith.addf %131, %133 : vector<8x32xf32>
    %135 = arith.addf %134, %120 : vector<8x32xf32>
    %c0_54 = arith.constant 0 : index
    %c0_55 = arith.constant 0 : index
    %136 = vector.load %arg12[%c0_54, %c0_55] : memref<1x32xf32, #tpu.memory_space<vmem>>, vector<1x32xf32>
    %c0_56 = arith.constant 0 : index
    %c0_57 = arith.constant 0 : index
    %137 = vector.load %arg13[%c0_56, %c0_57] : memref<1x32xf32, #tpu.memory_space<vmem>>, vector<1x32xf32>
    %cst_58 = arith.constant dense<0.000000e+00> : vector<8xf32>
    %138 = vector.multi_reduction <add>, %135, %cst_58 [1] : vector<8x32xf32> to vector<8xf32>
    %139 = vector.shape_cast %138 : vector<8xf32> to vector<8x1xf32>
    %cst_59 = arith.constant 3.200000e+01 : f32
    %140 = vector.broadcast %cst_59 : f32 to vector<8x1xf32>
    %141 = arith.divf %139, %140 : vector<8x1xf32>
    %142 = vector.broadcast %141 : vector<8x1xf32> to vector<8x32xf32>
    %143 = arith.subf %135, %142 : vector<8x32xf32>
    %144 = arith.mulf %143, %143 : vector<8x32xf32>
    %cst_60 = arith.constant dense<0.000000e+00> : vector<8xf32>
    %145 = vector.multi_reduction <add>, %144, %cst_60 [1] : vector<8x32xf32> to vector<8xf32>
    %146 = vector.shape_cast %145 : vector<8xf32> to vector<8x1xf32>
    %cst_61 = arith.constant 3.200000e+01 : f32
    %147 = vector.broadcast %cst_61 : f32 to vector<8x1xf32>
    %148 = arith.divf %146, %147 : vector<8x1xf32>
    %149 = vector.broadcast %141 : vector<8x1xf32> to vector<8x32xf32>
    %150 = arith.subf %135, %149 : vector<8x32xf32>
    %cst_62 = arith.constant 9.99999974E-6 : f32
    %151 = vector.broadcast %cst_62 : f32 to vector<8x1xf32>
    %152 = arith.addf %148, %151 : vector<8x1xf32>
    %153 = math.rsqrt %152 : vector<8x1xf32>
    %154 = vector.broadcast %153 : vector<8x1xf32> to vector<8x32xf32>
    %155 = arith.mulf %150, %154 : vector<8x32xf32>
    %156 = vector.broadcast %136 : vector<1x32xf32> to vector<8x32xf32>
    %157 = arith.mulf %155, %156 : vector<8x32xf32>
    %158 = vector.broadcast %137 : vector<1x32xf32> to vector<8x32xf32>
    %159 = arith.addf %157, %158 : vector<8x32xf32>
    %160 = arith.truncf %159 : vector<8x32xf32> to vector<8x32xbf16>
    %c0_63 = arith.constant 0 : index
    %c0_64 = arith.constant 0 : index
    %c0_65 = arith.constant 0 : index
    %161 = vector.load %arg14[%c0_63, %c0_64, %c0_65] : memref<1x8x32xbf16, #tpu.memory_space<vmem>>, vector<1x8x32xbf16>
    %162 = vector.shape_cast %161 : vector<1x8x32xbf16> to vector<8x32xbf16>
    %163 = vector.shape_cast %160 : vector<8x32xbf16> to vector<1x8x32xbf16>
    tpu.vector_store %arg14[%c0_63, %c0_64, %c0_65], %163 {strides = array<i32>} : memref<1x8x32xbf16, #tpu.memory_space<vmem>>, vector<1x8x32xbf16>,
    return
  }
  func.func @transform_0(%arg0: i32) -> (i32, i32, i32) {
    %c0_i32 = arith.constant 0 : i32
    %c0_i32_0 = arith.constant 0 : i32
    %c0_i32_1 = arith.constant 0 : i32
    return %arg0, %c0_i32, %c0_i32_0 : i32, i32, i32
  }
  func.func @transform_1(%arg0: i32) -> (i32, i32) {
    %c0_i32 = arith.constant 0 : i32
    %c0_i32_0 = arith.constant 0 : i32
    %c0_i32_1 = arith.constant 0 : i32
    return %c0_i32, %c0_i32_0 : i32, i32
  }
  func.func @transform_2(%arg0: i32) -> (i32, i32) {
    %c0_i32 = arith.constant 0 : i32
    %c0_i32_0 = arith.constant 0 : i32
    %c0_i32_1 = arith.constant 0 : i32
    return %c0_i32, %c0_i32_0 : i32, i32
  }
  func.func @transform_3(%arg0: i32) -> (i32, i32) {
    %c0_i32 = arith.constant 0 : i32
    %c0_i32_0 = arith.constant 0 : i32
    %c0_i32_1 = arith.constant 0 : i32
    return %c0_i32, %c0_i32_0 : i32, i32
  }
  func.func @transform_4(%arg0: i32) -> (i32, i32) {
    %c0_i32 = arith.constant 0 : i32
    %c0_i32_0 = arith.constant 0 : i32
    %c0_i32_1 = arith.constant 0 : i32
    return %c0_i32, %c0_i32_0 : i32, i32
  }
  func.func @transform_5(%arg0: i32) -> (i32, i32) {
    %c0_i32 = arith.constant 0 : i32
    %c0_i32_0 = arith.constant 0 : i32
    %c0_i32_1 = arith.constant 0 : i32
    return %c0_i32, %c0_i32_0 : i32, i32
  }
  func.func @transform_6(%arg0: i32) -> (i32, i32) {
    %c0_i32 = arith.constant 0 : i32
    %c0_i32_0 = arith.constant 0 : i32
    %c0_i32_1 = arith.constant 0 : i32
    return %c0_i32, %c0_i32_0 : i32, i32
  }
  func.func @transform_7(%arg0: i32) -> (i32, i32) {
    %c0_i32 = arith.constant 0 : i32
    %c0_i32_0 = arith.constant 0 : i32
    %c0_i32_1 = arith.constant 0 : i32
    return %c0_i32, %c0_i32_0 : i32, i32
  }
  func.func @transform_8(%arg0: i32) -> (i32, i32) {
    %c0_i32 = arith.constant 0 : i32
    %c0_i32_0 = arith.constant 0 : i32
    %c0_i32_1 = arith.constant 0 : i32
    return %c0_i32, %c0_i32_0 : i32, i32
  }
  func.func @transform_9(%arg0: i32) -> (i32, i32) {
    %c0_i32 = arith.constant 0 : i32
    %c0_i32_0 = arith.constant 0 : i32
    %c0_i32_1 = arith.constant 0 : i32
    return %c0_i32, %c0_i32_0 : i32, i32
  }
  func.func @transform_10(%arg0: i32) -> (i32, i32) {
    %c0_i32 = arith.constant 0 : i32
    %c0_i32_0 = arith.constant 0 : i32
    %c0_i32_1 = arith.constant 0 : i32
    return %c0_i32, %c0_i32_0 : i32, i32
  }
  func.func @transform_11(%arg0: i32) -> (i32, i32) {
    %c0_i32 = arith.constant 0 : i32
    %c0_i32_0 = arith.constant 0 : i32
    %c0_i32_1 = arith.constant 0 : i32
    return %c0_i32, %c0_i32_0 : i32, i32
  }
  func.func @transform_12(%arg0: i32) -> (i32, i32) {
    %c0_i32 = arith.constant 0 : i32
    %c0_i32_0 = arith.constant 0 : i32
    %c0_i32_1 = arith.constant 0 : i32
    return %c0_i32, %c0_i32_0 : i32, i32
  }
  func.func @transform_13(%arg0: i32) -> (i32, i32, i32) {
    %c0_i32 = arith.constant 0 : i32
    %c0_i32_0 = arith.constant 0 : i32
    %c0_i32_1 = arith.constant 0 : i32
    return %arg0, %c0_i32, %c0_i32_0 : i32, i32, i32
  }
}

module attributes {stable_mosaic.version = 11 : i64} {
  func.func @_ln_kernel(%arg0: i32, %arg1: memref<16x32xbf16, #tpu.memory_space<vmem>>, %arg2: memref<1x32xf32, #tpu.memory_space<vmem>>, %arg3: memref<1x32xf32, #tpu.memory_space<vmem>>, %arg4: memref<16x32xbf16, #tpu.memory_space<vmem>>) attributes {dimension_semantics = [#tpu.dimension_semantics<parallel>], iteration_bounds = array<i64: 1>, scalar_prefetch = 0 : i64, scratch_operands = 0 : i64, tpu.core_type = #tpu.core_type<tc>, window_params = [{transform_indices = @transform_0, window_bounds = array<i64: 16, 32>}, {pipeline_mode = #tpu.pipeline_mode<synchronous>, transform_indices = @transform_1, window_bounds = array<i64: 1, 32>}, {pipeline_mode = #tpu.pipeline_mode<synchronous>, transform_indices = @transform_2, window_bounds = array<i64: 1, 32>}, {transform_indices = @transform_3, window_bounds = array<i64: 16, 32>}]} {
    %c0 = arith.constant 0 : index
    %c0_0 = arith.constant 0 : index
    %0 = vector.load %arg1[%c0, %c0_0] : memref<16x32xbf16, #tpu.memory_space<vmem>>, vector<16x32xbf16>
    %1 = arith.extf %0 : vector<16x32xbf16> to vector<16x32xf32>
    %c0_1 = arith.constant 0 : index
    %c0_2 = arith.constant 0 : index
    %2 = vector.load %arg2[%c0_1, %c0_2] : memref<1x32xf32, #tpu.memory_space<vmem>>, vector<1x32xf32>
    %c0_3 = arith.constant 0 : index
    %c0_4 = arith.constant 0 : index
    %3 = vector.load %arg3[%c0_3, %c0_4] : memref<1x32xf32, #tpu.memory_space<vmem>>, vector<1x32xf32>
    %cst = arith.constant dense<0.000000e+00> : vector<16xf32>
    %4 = vector.multi_reduction <add>, %1, %cst [1] : vector<16x32xf32> to vector<16xf32>
    %5 = vector.shape_cast %4 : vector<16xf32> to vector<16x1xf32>
    %cst_5 = arith.constant 3.200000e+01 : f32
    %6 = vector.broadcast %cst_5 : f32 to vector<16x1xf32>
    %7 = arith.divf %5, %6 : vector<16x1xf32>
    %8 = vector.broadcast %7 : vector<16x1xf32> to vector<16x32xf32>
    %9 = arith.subf %1, %8 : vector<16x32xf32>
    %10 = arith.mulf %9, %9 : vector<16x32xf32>
    %cst_6 = arith.constant dense<0.000000e+00> : vector<16xf32>
    %11 = vector.multi_reduction <add>, %10, %cst_6 [1] : vector<16x32xf32> to vector<16xf32>
    %12 = vector.shape_cast %11 : vector<16xf32> to vector<16x1xf32>
    %cst_7 = arith.constant 3.200000e+01 : f32
    %13 = vector.broadcast %cst_7 : f32 to vector<16x1xf32>
    %14 = arith.divf %12, %13 : vector<16x1xf32>
    %15 = vector.broadcast %7 : vector<16x1xf32> to vector<16x32xf32>
    %16 = arith.subf %1, %15 : vector<16x32xf32>
    %cst_8 = arith.constant 9.99999974E-6 : f32
    %17 = vector.broadcast %cst_8 : f32 to vector<16x1xf32>
    %18 = arith.addf %14, %17 : vector<16x1xf32>
    %19 = math.rsqrt %18 : vector<16x1xf32>
    %20 = vector.broadcast %19 : vector<16x1xf32> to vector<16x32xf32>
    %21 = arith.mulf %16, %20 : vector<16x32xf32>
    %22 = vector.broadcast %2 : vector<1x32xf32> to vector<16x32xf32>
    %23 = arith.mulf %21, %22 : vector<16x32xf32>
    %24 = vector.broadcast %3 : vector<1x32xf32> to vector<16x32xf32>
    %25 = arith.addf %23, %24 : vector<16x32xf32>
    %26 = arith.truncf %25 : vector<16x32xf32> to vector<16x32xbf16>
    %c0_9 = arith.constant 0 : index
    %c0_10 = arith.constant 0 : index
    %27 = vector.load %arg4[%c0_9, %c0_10] : memref<16x32xbf16, #tpu.memory_space<vmem>>, vector<16x32xbf16>
    tpu.vector_store %arg4[%c0_9, %c0_10], %26 {strides = array<i32>} : memref<16x32xbf16, #tpu.memory_space<vmem>>, vector<16x32xbf16>,
    return
  }
  func.func @transform_0(%arg0: i32) -> (i32, i32) {
    %c0_i32 = arith.constant 0 : i32
    %c0_i32_0 = arith.constant 0 : i32
    return %arg0, %c0_i32 : i32, i32
  }
  func.func @transform_1(%arg0: i32) -> (i32, i32) {
    %c0_i32 = arith.constant 0 : i32
    %c0_i32_0 = arith.constant 0 : i32
    %c0_i32_1 = arith.constant 0 : i32
    return %c0_i32, %c0_i32_0 : i32, i32
  }
  func.func @transform_2(%arg0: i32) -> (i32, i32) {
    %c0_i32 = arith.constant 0 : i32
    %c0_i32_0 = arith.constant 0 : i32
    %c0_i32_1 = arith.constant 0 : i32
    return %c0_i32, %c0_i32_0 : i32, i32
  }
  func.func @transform_3(%arg0: i32) -> (i32, i32) {
    %c0_i32 = arith.constant 0 : i32
    %c0_i32_0 = arith.constant 0 : i32
    return %arg0, %c0_i32 : i32, i32
  }
}

module attributes {stable_mosaic.version = 11 : i64} {
  func.func @_decoder_layer_kernel(%arg0: i32, %arg1: memref<1x8x32xbf16, #tpu.memory_space<vmem>>, %arg2: memref<1x8x32xbf16, #tpu.memory_space<vmem>>, %arg3: memref<32x96xbf16, #tpu.memory_space<vmem>>, %arg4: memref<1x96xf32, #tpu.memory_space<vmem>>, %arg5: memref<32x32xbf16, #tpu.memory_space<vmem>>, %arg6: memref<1x32xf32, #tpu.memory_space<vmem>>, %arg7: memref<1x32xf32, #tpu.memory_space<vmem>>, %arg8: memref<1x32xf32, #tpu.memory_space<vmem>>, %arg9: memref<32x32xbf16, #tpu.memory_space<vmem>>, %arg10: memref<1x32xf32, #tpu.memory_space<vmem>>, %arg11: memref<32x64xbf16, #tpu.memory_space<vmem>>, %arg12: memref<1x64xf32, #tpu.memory_space<vmem>>, %arg13: memref<32x32xbf16, #tpu.memory_space<vmem>>, %arg14: memref<1x32xf32, #tpu.memory_space<vmem>>, %arg15: memref<1x32xf32, #tpu.memory_space<vmem>>, %arg16: memref<1x32xf32, #tpu.memory_space<vmem>>, %arg17: memref<32x64xbf16, #tpu.memory_space<vmem>>, %arg18: memref<1x64xf32, #tpu.memory_space<vmem>>, %arg19: memref<64x32xbf16, #tpu.memory_space<vmem>>, %arg20: memref<1x32xf32, #tpu.memory_space<vmem>>, %arg21: memref<1x32xf32, #tpu.memory_space<vmem>>, %arg22: memref<1x32xf32, #tpu.memory_space<vmem>>, %arg23: memref<1x8x32xbf16, #tpu.memory_space<vmem>>) attributes {dimension_semantics = [#tpu.dimension_semantics<parallel>], iteration_bounds = array<i64: 2>, scalar_prefetch = 0 : i64, scratch_operands = 0 : i64, tpu.core_type = #tpu.core_type<tc>, window_params = [{transform_indices = @transform_0, window_bounds = array<i64: 1, 8, 32>}, {transform_indices = @transform_1, window_bounds = array<i64: 1, 8, 32>}, {pipeline_mode = #tpu.pipeline_mode<synchronous>, transform_indices = @transform_2, window_bounds = array<i64: 32, 96>}, {pipeline_mode = #tpu.pipeline_mode<synchronous>, transform_indices = @transform_3, window_bounds = array<i64: 1, 96>}, {pipeline_mode = #tpu.pipeline_mode<synchronous>, transform_indices = @transform_4, window_bounds = array<i64: 32, 32>}, {pipeline_mode = #tpu.pipeline_mode<synchronous>, transform_indices = @transform_5, window_bounds = array<i64: 1, 32>}, {pipeline_mode = #tpu.pipeline_mode<synchronous>, transform_indices = @transform_6, window_bounds = array<i64: 1, 32>}, {pipeline_mode = #tpu.pipeline_mode<synchronous>, transform_indices = @transform_7, window_bounds = array<i64: 1, 32>}, {pipeline_mode = #tpu.pipeline_mode<synchronous>, transform_indices = @transform_8, window_bounds = array<i64: 32, 32>}, {pipeline_mode = #tpu.pipeline_mode<synchronous>, transform_indices = @transform_9, window_bounds = array<i64: 1, 32>}, {pipeline_mode = #tpu.pipeline_mode<synchronous>, transform_indices = @transform_10, window_bounds = array<i64: 32, 64>}, {pipeline_mode = #tpu.pipeline_mode<synchronous>, transform_indices = @transform_11, window_bounds = array<i64: 1, 64>}, {pipeline_mode = #tpu.pipeline_mode<synchronous>, transform_indices = @transform_12, window_bounds = array<i64: 32, 32>}, {pipeline_mode = #tpu.pipeline_mode<synchronous>, transform_indices = @transform_13, window_bounds = array<i64: 1, 32>}, {pipeline_mode = #tpu.pipeline_mode<synchronous>, transform_indices = @transform_14, window_bounds = array<i64: 1, 32>}, {pipeline_mode = #tpu.pipeline_mode<synchronous>, transform_indices = @transform_15, window_bounds = array<i64: 1, 32>}, {pipeline_mode = #tpu.pipeline_mode<synchronous>, transform_indices = @transform_16, window_bounds = array<i64: 32, 64>}, {pipeline_mode = #tpu.pipeline_mode<synchronous>, transform_indices = @transform_17, window_bounds = array<i64: 1, 64>}, {pipeline_mode = #tpu.pipeline_mode<synchronous>, transform_indices = @transform_18, window_bounds = array<i64: 64, 32>}, {pipeline_mode = #tpu.pipeline_mode<synchronous>, transform_indices = @transform_19, window_bounds = array<i64: 1, 32>}, {pipeline_mode = #tpu.pipeline_mode<synchronous>, transform_indices = @transform_20, window_bounds = array<i64: 1, 32>}, {pipeline_mode = #tpu.pipeline_mode<synchronous>, transform_indices = @transform_21, window_bounds = array<i64: 1, 32>}, {transform_indices = @transform_22, window_bounds = array<i64: 1, 8, 32>}]} {
    %c0 = arith.constant 0 : index
    %c0_0 = arith.constant 0 : index
    %c0_1 = arith.constant 0 : index
    %0 = vector.load %arg1[%c0, %c0_0, %c0_1] : memref<1x8x32xbf16, #tpu.memory_space<vmem>>, vector<1x8x32xbf16>
    %1 = vector.shape_cast %0 : vector<1x8x32xbf16> to vector<8x32xbf16>
    %c0_2 = arith.constant 0 : index
    %c0_3 = arith.constant 0 : index
    %c0_4 = arith.constant 0 : index
    %2 = vector.load %arg2[%c0_2, %c0_3, %c0_4] : memref<1x8x32xbf16, #tpu.memory_space<vmem>>, vector<1x8x32xbf16>
    %3 = vector.shape_cast %2 : vector<1x8x32xbf16> to vector<8x32xbf16>
    %c0_5 = arith.constant 0 : index
    %c0_6 = arith.constant 0 : index
    %4 = vector.load %arg3[%c0_5, %c0_6] : memref<32x96xbf16, #tpu.memory_space<vmem>>, vector<32x96xbf16>
    %cst = arith.constant dense<0.000000e+00> : vector<8x96xf32>
    %5 = tpu.matmul %1, %4, %cst {dimension_numbers = #tpu.dot_dimension_numbers<[1], [0], [0], [1], [0, 0, 1, 1], [], []>} : vector<8x32xbf16>, vector<32x96xbf16>, vector<8x96xf32> -> vector<8x96xf32>
    %c0_7 = arith.constant 0 : index
    %c0_8 = arith.constant 0 : index
    %6 = vector.load %arg4[%c0_7, %c0_8] : memref<1x96xf32, #tpu.memory_space<vmem>>, vector<1x96xf32>
    %7 = vector.broadcast %6 : vector<1x96xf32> to vector<8x96xf32>
    %8 = arith.addf %5, %7 : vector<8x96xf32>
    %9 = arith.truncf %8 : vector<8x96xf32> to vector<8x96xbf16>
    %10 = vector.extract_strided_slice %9 {offsets = [0, 0], sizes = [8, 32], strides = [1, 1]} : vector<8x96xbf16> to vector<8x32xbf16>
    %11 = vector.extract_strided_slice %9 {offsets = [0, 32], sizes = [8, 32], strides = [1, 1]} : vector<8x96xbf16> to vector<8x32xbf16>
    %12 = vector.extract_strided_slice %9 {offsets = [0, 64], sizes = [8, 32], strides = [1, 1]} : vector<8x96xbf16> to vector<8x32xbf16>
    %cst_9 = arith.constant 0.000000e+00 : f32
    %13 = vector.broadcast %cst_9 : f32 to vector<8x32xf32>
    %14 = vector.extract_strided_slice %10 {offsets = [0, 0], sizes = [8, 8], strides = [1, 1]} : vector<8x32xbf16> to vector<8x8xbf16>
    %15 = vector.extract_strided_slice %11 {offsets = [0, 0], sizes = [8, 8], strides = [1, 1]} : vector<8x32xbf16> to vector<8x8xbf16>
    %cst_10 = arith.constant dense<0.000000e+00> : vector<8x8xf32>
    %16 = tpu.matmul %14, %15, %cst_10 {dimension_numbers = #tpu.dot_dimension_numbers<[1], [1], [0], [0], [0, 0, 1, 0], [], []>} : vector<8x8xbf16>, vector<8x8xbf16>, vector<8x8xf32> -> vector<8x8xf32>
    %cst_11 = arith.constant dense<0xFF800000> : vector<8xf32>
    %17 = vector.multi_reduction <maximumf>, %16, %cst_11 [1] : vector<8x8xf32> to vector<8xf32>
    %18 = vector.shape_cast %17 : vector<8xf32> to vector<8x1xf32>
    %19 = vector.broadcast %18 : vector<8x1xf32> to vector<8x8xf32>
    %20 = arith.subf %16, %19 : vector<8x8xf32>
    %21 = math.exp %20 : vector<8x8xf32>
    %cst_12 = arith.constant dense<0.000000e+00> : vector<8xf32>
    %22 = vector.multi_reduction <add>, %21, %cst_12 [1] : vector<8x8xf32> to vector<8xf32>
    %23 = vector.shape_cast %22 : vector<8xf32> to vector<8x1xf32>
    %24 = tpu.reciprocal %23 {approx = true} : vector<8x1xf32> -> vector<8x1xf32>
    %25 = vector.broadcast %24 : vector<8x1xf32> to vector<8x8xf32>
    %26 = arith.mulf %21, %25 : vector<8x8xf32>
    %27 = arith.truncf %26 : vector<8x8xf32> to vector<8x8xbf16>
    %28 = vector.extract_strided_slice %12 {offsets = [0, 0], sizes = [8, 8], strides = [1, 1]} : vector<8x32xbf16> to vector<8x8xbf16>
    %cst_13 = arith.constant dense<0.000000e+00> : vector<8x8xf32>
    %29 = tpu.matmul %27, %28, %cst_13 {dimension_numbers = #tpu.dot_dimension_numbers<[1], [0], [0], [1], [0, 0, 1, 1], [], []>} : vector<8x8xbf16>, vector<8x8xbf16>, vector<8x8xf32> -> vector<8x8xf32>
    %30 = arith.truncf %29 : vector<8x8xf32> to vector<8x8xbf16>
    %c0_14 = arith.constant 0 : index
    %c0_15 = arith.constant 0 : index
    %31 = vector.load %arg5[%c0_14, %c0_15] : memref<32x32xbf16, #tpu.memory_space<vmem>>, vector<8x32xbf16>
    %cst_16 = arith.constant dense<0.000000e+00> : vector<8x32xf32>
    %32 = tpu.matmul %30, %31, %cst_16 {dimension_numbers = #tpu.dot_dimension_numbers<[1], [0], [0], [1], [0, 0, 1, 1], [], []>} : vector<8x8xbf16>, vector<8x32xbf16>, vector<8x32xf32> -> vector<8x32xf32>
    %33 = arith.addf %13, %32 : vector<8x32xf32>
    %34 = vector.extract_strided_slice %10 {offsets = [0, 8], sizes = [8, 8], strides = [1, 1]} : vector<8x32xbf16> to vector<8x8xbf16>
    %35 = vector.extract_strided_slice %11 {offsets = [0, 8], sizes = [8, 8], strides = [1, 1]} : vector<8x32xbf16> to vector<8x8xbf16>
    %cst_17 = arith.constant dense<0.000000e+00> : vector<8x8xf32>
    %36 = tpu.matmul %34, %35, %cst_17 {dimension_numbers = #tpu.dot_dimension_numbers<[1], [1], [0], [0], [0, 0, 1, 0], [], []>} : vector<8x8xbf16>, vector<8x8xbf16>, vector<8x8xf32> -> vector<8x8xf32>
    %cst_18 = arith.constant dense<0xFF800000> : vector<8xf32>
    %37 = vector.multi_reduction <maximumf>, %36, %cst_18 [1] : vector<8x8xf32> to vector<8xf32>
    %38 = vector.shape_cast %37 : vector<8xf32> to vector<8x1xf32>
    %39 = vector.broadcast %38 : vector<8x1xf32> to vector<8x8xf32>
    %40 = arith.subf %36, %39 : vector<8x8xf32>
    %41 = math.exp %40 : vector<8x8xf32>
    %cst_19 = arith.constant dense<0.000000e+00> : vector<8xf32>
    %42 = vector.multi_reduction <add>, %41, %cst_19 [1] : vector<8x8xf32> to vector<8xf32>
    %43 = vector.shape_cast %42 : vector<8xf32> to vector<8x1xf32>
    %44 = tpu.reciprocal %43 {approx = true} : vector<8x1xf32> -> vector<8x1xf32>
    %45 = vector.broadcast %44 : vector<8x1xf32> to vector<8x8xf32>
    %46 = arith.mulf %41, %45 : vector<8x8xf32>
    %47 = arith.truncf %46 : vector<8x8xf32> to vector<8x8xbf16>
    %48 = vector.extract_strided_slice %12 {offsets = [0, 8], sizes = [8, 8], strides = [1, 1]} : vector<8x32xbf16> to vector<8x8xbf16>
    %cst_20 = arith.constant dense<0.000000e+00> : vector<8x8xf32>
    %49 = tpu.matmul %47, %48, %cst_20 {dimension_numbers = #tpu.dot_dimension_numbers<[1], [0], [0], [1], [0, 0, 1, 1], [], []>} : vector<8x8xbf16>, vector<8x8xbf16>, vector<8x8xf32> -> vector<8x8xf32>
    %50 = arith.truncf %49 : vector<8x8xf32> to vector<8x8xbf16>
    %c8 = arith.constant 8 : index
    %c0_21 = arith.constant 0 : index
    %51 = vector.load %arg5[%c8, %c0_21] : memref<32x32xbf16, #tpu.memory_space<vmem>>, vector<8x32xbf16>
    %cst_22 = arith.constant dense<0.000000e+00> : vector<8x32xf32>
    %52 = tpu.matmul %50, %51, %cst_22 {dimension_numbers = #tpu.dot_dimension_numbers<[1], [0], [0], [1], [0, 0, 1, 1], [], []>} : vector<8x8xbf16>, vector<8x32xbf16>, vector<8x32xf32> -> vector<8x32xf32>
    %53 = arith.addf %33, %52 : vector<8x32xf32>
    %54 = vector.extract_strided_slice %10 {offsets = [0, 16], sizes = [8, 8], strides = [1, 1]} : vector<8x32xbf16> to vector<8x8xbf16>
    %55 = vector.extract_strided_slice %11 {offsets = [0, 16], sizes = [8, 8], strides = [1, 1]} : vector<8x32xbf16> to vector<8x8xbf16>
    %cst_23 = arith.constant dense<0.000000e+00> : vector<8x8xf32>
    %56 = tpu.matmul %54, %55, %cst_23 {dimension_numbers = #tpu.dot_dimension_numbers<[1], [1], [0], [0], [0, 0, 1, 0], [], []>} : vector<8x8xbf16>, vector<8x8xbf16>, vector<8x8xf32> -> vector<8x8xf32>
    %cst_24 = arith.constant dense<0xFF800000> : vector<8xf32>
    %57 = vector.multi_reduction <maximumf>, %56, %cst_24 [1] : vector<8x8xf32> to vector<8xf32>
    %58 = vector.shape_cast %57 : vector<8xf32> to vector<8x1xf32>
    %59 = vector.broadcast %58 : vector<8x1xf32> to vector<8x8xf32>
    %60 = arith.subf %56, %59 : vector<8x8xf32>
    %61 = math.exp %60 : vector<8x8xf32>
    %cst_25 = arith.constant dense<0.000000e+00> : vector<8xf32>
    %62 = vector.multi_reduction <add>, %61, %cst_25 [1] : vector<8x8xf32> to vector<8xf32>
    %63 = vector.shape_cast %62 : vector<8xf32> to vector<8x1xf32>
    %64 = tpu.reciprocal %63 {approx = true} : vector<8x1xf32> -> vector<8x1xf32>
    %65 = vector.broadcast %64 : vector<8x1xf32> to vector<8x8xf32>
    %66 = arith.mulf %61, %65 : vector<8x8xf32>
    %67 = arith.truncf %66 : vector<8x8xf32> to vector<8x8xbf16>
    %68 = vector.extract_strided_slice %12 {offsets = [0, 16], sizes = [8, 8], strides = [1, 1]} : vector<8x32xbf16> to vector<8x8xbf16>
    %cst_26 = arith.constant dense<0.000000e+00> : vector<8x8xf32>
    %69 = tpu.matmul %67, %68, %cst_26 {dimension_numbers = #tpu.dot_dimension_numbers<[1], [0], [0], [1], [0, 0, 1, 1], [], []>} : vector<8x8xbf16>, vector<8x8xbf16>, vector<8x8xf32> -> vector<8x8xf32>
    %70 = arith.truncf %69 : vector<8x8xf32> to vector<8x8xbf16>
    %c16 = arith.constant 16 : index
    %c0_27 = arith.constant 0 : index
    %71 = vector.load %arg5[%c16, %c0_27] : memref<32x32xbf16, #tpu.memory_space<vmem>>, vector<8x32xbf16>
    %cst_28 = arith.constant dense<0.000000e+00> : vector<8x32xf32>
    %72 = tpu.matmul %70, %71, %cst_28 {dimension_numbers = #tpu.dot_dimension_numbers<[1], [0], [0], [1], [0, 0, 1, 1], [], []>} : vector<8x8xbf16>, vector<8x32xbf16>, vector<8x32xf32> -> vector<8x32xf32>
    %73 = arith.addf %53, %72 : vector<8x32xf32>
    %74 = vector.extract_strided_slice %10 {offsets = [0, 24], sizes = [8, 8], strides = [1, 1]} : vector<8x32xbf16> to vector<8x8xbf16>
    %75 = vector.extract_strided_slice %11 {offsets = [0, 24], sizes = [8, 8], strides = [1, 1]} : vector<8x32xbf16> to vector<8x8xbf16>
    %cst_29 = arith.constant dense<0.000000e+00> : vector<8x8xf32>
    %76 = tpu.matmul %74, %75, %cst_29 {dimension_numbers = #tpu.dot_dimension_numbers<[1], [1], [0], [0], [0, 0, 1, 0], [], []>} : vector<8x8xbf16>, vector<8x8xbf16>, vector<8x8xf32> -> vector<8x8xf32>
    %cst_30 = arith.constant dense<0xFF800000> : vector<8xf32>
    %77 = vector.multi_reduction <maximumf>, %76, %cst_30 [1] : vector<8x8xf32> to vector<8xf32>
    %78 = vector.shape_cast %77 : vector<8xf32> to vector<8x1xf32>
    %79 = vector.broadcast %78 : vector<8x1xf32> to vector<8x8xf32>
    %80 = arith.subf %76, %79 : vector<8x8xf32>
    %81 = math.exp %80 : vector<8x8xf32>
    %cst_31 = arith.constant dense<0.000000e+00> : vector<8xf32>
    %82 = vector.multi_reduction <add>, %81, %cst_31 [1] : vector<8x8xf32> to vector<8xf32>
    %83 = vector.shape_cast %82 : vector<8xf32> to vector<8x1xf32>
    %84 = tpu.reciprocal %83 {approx = true} : vector<8x1xf32> -> vector<8x1xf32>
    %85 = vector.broadcast %84 : vector<8x1xf32> to vector<8x8xf32>
    %86 = arith.mulf %81, %85 : vector<8x8xf32>
    %87 = arith.truncf %86 : vector<8x8xf32> to vector<8x8xbf16>
    %88 = vector.extract_strided_slice %12 {offsets = [0, 24], sizes = [8, 8], strides = [1, 1]} : vector<8x32xbf16> to vector<8x8xbf16>
    %cst_32 = arith.constant dense<0.000000e+00> : vector<8x8xf32>
    %89 = tpu.matmul %87, %88, %cst_32 {dimension_numbers = #tpu.dot_dimension_numbers<[1], [0], [0], [1], [0, 0, 1, 1], [], []>} : vector<8x8xbf16>, vector<8x8xbf16>, vector<8x8xf32> -> vector<8x8xf32>
    %90 = arith.truncf %89 : vector<8x8xf32> to vector<8x8xbf16>
    %c24 = arith.constant 24 : index
    %c0_33 = arith.constant 0 : index
    %91 = vector.load %arg5[%c24, %c0_33] : memref<32x32xbf16, #tpu.memory_space<vmem>>, vector<8x32xbf16>
    %cst_34 = arith.constant dense<0.000000e+00> : vector<8x32xf32>
    %92 = tpu.matmul %90, %91, %cst_34 {dimension_numbers = #tpu.dot_dimension_numbers<[1], [0], [0], [1], [0, 0, 1, 1], [], []>} : vector<8x8xbf16>, vector<8x32xbf16>, vector<8x32xf32> -> vector<8x32xf32>
    %93 = arith.addf %73, %92 : vector<8x32xf32>
    %c0_35 = arith.constant 0 : index
    %c0_36 = arith.constant 0 : index
    %94 = vector.load %arg6[%c0_35, %c0_36] : memref<1x32xf32, #tpu.memory_space<vmem>>, vector<1x32xf32>
    %95 = vector.broadcast %94 : vector<1x32xf32> to vector<8x32xf32>
    %96 = arith.addf %93, %95 : vector<8x32xf32>
    %97 = arith.extf %1 : vector<8x32xbf16> to vector<8x32xf32>
    %98 = arith.addf %96, %97 : vector<8x32xf32>
    %c0_37 = arith.constant 0 : index
    %c0_38 = arith.constant 0 : index
    %99 = vector.load %arg7[%c0_37, %c0_38] : memref<1x32xf32, #tpu.memory_space<vmem>>, vector<1x32xf32>
    %c0_39 = arith.constant 0 : index
    %c0_40 = arith.constant 0 : index
    %100 = vector.load %arg8[%c0_39, %c0_40] : memref<1x32xf32, #tpu.memory_space<vmem>>, vector<1x32xf32>
    %cst_41 = arith.constant dense<0.000000e+00> : vector<8xf32>
    %101 = vector.multi_reduction <add>, %98, %cst_41 [1] : vector<8x32xf32> to vector<8xf32>
    %102 = vector.shape_cast %101 : vector<8xf32> to vector<8x1xf32>
    %cst_42 = arith.constant 3.200000e+01 : f32
    %103 = vector.broadcast %cst_42 : f32 to vector<8x1xf32>
    %104 = arith.divf %102, %103 : vector<8x1xf32>
    %105 = vector.broadcast %104 : vector<8x1xf32> to vector<8x32xf32>
    %106 = arith.subf %98, %105 : vector<8x32xf32>
    %107 = arith.mulf %106, %106 : vector<8x32xf32>
    %cst_43 = arith.constant dense<0.000000e+00> : vector<8xf32>
    %108 = vector.multi_reduction <add>, %107, %cst_43 [1] : vector<8x32xf32> to vector<8xf32>
    %109 = vector.shape_cast %108 : vector<8xf32> to vector<8x1xf32>
    %cst_44 = arith.constant 3.200000e+01 : f32
    %110 = vector.broadcast %cst_44 : f32 to vector<8x1xf32>
    %111 = arith.divf %109, %110 : vector<8x1xf32>
    %112 = vector.broadcast %104 : vector<8x1xf32> to vector<8x32xf32>
    %113 = arith.subf %98, %112 : vector<8x32xf32>
    %cst_45 = arith.constant 9.99999974E-6 : f32
    %114 = vector.broadcast %cst_45 : f32 to vector<8x1xf32>
    %115 = arith.addf %111, %114 : vector<8x1xf32>
    %116 = math.rsqrt %115 : vector<8x1xf32>
    %117 = vector.broadcast %116 : vector<8x1xf32> to vector<8x32xf32>
    %118 = arith.mulf %113, %117 : vector<8x32xf32>
    %119 = vector.broadcast %99 : vector<1x32xf32> to vector<8x32xf32>
    %120 = arith.mulf %118, %119 : vector<8x32xf32>
    %121 = vector.broadcast %100 : vector<1x32xf32> to vector<8x32xf32>
    %122 = arith.addf %120, %121 : vector<8x32xf32>
    %123 = arith.truncf %122 : vector<8x32xf32> to vector<8x32xbf16>
    %c0_46 = arith.constant 0 : index
    %c0_47 = arith.constant 0 : index
    %124 = vector.load %arg9[%c0_46, %c0_47] : memref<32x32xbf16, #tpu.memory_space<vmem>>, vector<32x32xbf16>
    %cst_48 = arith.constant dense<0.000000e+00> : vector<8x32xf32>
    %125 = tpu.matmul %123, %124, %cst_48 {dimension_numbers = #tpu.dot_dimension_numbers<[1], [0], [0], [1], [0, 0, 1, 1], [], []>} : vector<8x32xbf16>, vector<32x32xbf16>, vector<8x32xf32> -> vector<8x32xf32>
    %c0_49 = arith.constant 0 : index
    %c0_50 = arith.constant 0 : index
    %126 = vector.load %arg10[%c0_49, %c0_50] : memref<1x32xf32, #tpu.memory_space<vmem>>, vector<1x32xf32>
    %127 = vector.broadcast %126 : vector<1x32xf32> to vector<8x32xf32>
    %128 = arith.addf %125, %127 : vector<8x32xf32>
    %129 = arith.truncf %128 : vector<8x32xf32> to vector<8x32xbf16>
    %c0_51 = arith.constant 0 : index
    %c0_52 = arith.constant 0 : index
    %130 = vector.load %arg11[%c0_51, %c0_52] : memref<32x64xbf16, #tpu.memory_space<vmem>>, vector<32x64xbf16>
    %cst_53 = arith.constant dense<0.000000e+00> : vector<8x64xf32>
    %131 = tpu.matmul %3, %130, %cst_53 {dimension_numbers = #tpu.dot_dimension_numbers<[1], [0], [0], [1], [0, 0, 1, 1], [], []>} : vector<8x32xbf16>, vector<32x64xbf16>, vector<8x64xf32> -> vector<8x64xf32>
    %c0_54 = arith.constant 0 : index
    %c0_55 = arith.constant 0 : index
    %132 = vector.load %arg12[%c0_54, %c0_55] : memref<1x64xf32, #tpu.memory_space<vmem>>, vector<1x64xf32>
    %133 = vector.broadcast %132 : vector<1x64xf32> to vector<8x64xf32>
    %134 = arith.addf %131, %133 : vector<8x64xf32>
    %135 = arith.truncf %134 : vector<8x64xf32> to vector<8x64xbf16>
    %136 = vector.extract_strided_slice %135 {offsets = [0, 0], sizes = [8, 32], strides = [1, 1]} : vector<8x64xbf16> to vector<8x32xbf16>
    %137 = vector.extract_strided_slice %135 {offsets = [0, 32], sizes = [8, 32], strides = [1, 1]} : vector<8x64xbf16> to vector<8x32xbf16>
    %cst_56 = arith.constant 0.000000e+00 : f32
    %138 = vector.broadcast %cst_56 : f32 to vector<8x32xf32>
    %139 = vector.extract_strided_slice %129 {offsets = [0, 0], sizes = [8, 8], strides = [1, 1]} : vector<8x32xbf16> to vector<8x8xbf16>
    %140 = vector.extract_strided_slice %136 {offsets = [0, 0], sizes = [8, 8], strides = [1, 1]} : vector<8x32xbf16> to vector<8x8xbf16>
    %cst_57 = arith.constant dense<0.000000e+00> : vector<8x8xf32>
    %141 = tpu.matmul %139, %140, %cst_57 {dimension_numbers = #tpu.dot_dimension_numbers<[1], [1], [0], [0], [0, 0, 1, 0], [], []>} : vector<8x8xbf16>, vector<8x8xbf16>, vector<8x8xf32> -> vector<8x8xf32>
    %cst_58 = arith.constant dense<0xFF800000> : vector<8xf32>
    %142 = vector.multi_reduction <maximumf>, %141, %cst_58 [1] : vector<8x8xf32> to vector<8xf32>
    %143 = vector.shape_cast %142 : vector<8xf32> to vector<8x1xf32>
    %144 = vector.broadcast %143 : vector<8x1xf32> to vector<8x8xf32>
    %145 = arith.subf %141, %144 : vector<8x8xf32>
    %146 = math.exp %145 : vector<8x8xf32>
    %cst_59 = arith.constant dense<0.000000e+00> : vector<8xf32>
    %147 = vector.multi_reduction <add>, %146, %cst_59 [1] : vector<8x8xf32> to vector<8xf32>
    %148 = vector.shape_cast %147 : vector<8xf32> to vector<8x1xf32>
    %149 = tpu.reciprocal %148 {approx = true} : vector<8x1xf32> -> vector<8x1xf32>
    %150 = vector.broadcast %149 : vector<8x1xf32> to vector<8x8xf32>
    %151 = arith.mulf %146, %150 : vector<8x8xf32>
    %152 = arith.truncf %151 : vector<8x8xf32> to vector<8x8xbf16>
    %153 = vector.extract_strided_slice %137 {offsets = [0, 0], sizes = [8, 8], strides = [1, 1]} : vector<8x32xbf16> to vector<8x8xbf16>
    %cst_60 = arith.constant dense<0.000000e+00> : vector<8x8xf32>
    %154 = tpu.matmul %152, %153, %cst_60 {dimension_numbers = #tpu.dot_dimension_numbers<[1], [0], [0], [1], [0, 0, 1, 1], [], []>} : vector<8x8xbf16>, vector<8x8xbf16>, vector<8x8xf32> -> vector<8x8xf32>
    %155 = arith.truncf %154 : vector<8x8xf32> to vector<8x8xbf16>
    %c0_61 = arith.constant 0 : index
    %c0_62 = arith.constant 0 : index
    %156 = vector.load %arg13[%c0_61, %c0_62] : memref<32x32xbf16, #tpu.memory_space<vmem>>, vector<8x32xbf16>
    %cst_63 = arith.constant dense<0.000000e+00> : vector<8x32xf32>
    %157 = tpu.matmul %155, %156, %cst_63 {dimension_numbers = #tpu.dot_dimension_numbers<[1], [0], [0], [1], [0, 0, 1, 1], [], []>} : vector<8x8xbf16>, vector<8x32xbf16>, vector<8x32xf32> -> vector<8x32xf32>
    %158 = arith.addf %138, %157 : vector<8x32xf32>
    %159 = vector.extract_strided_slice %129 {offsets = [0, 8], sizes = [8, 8], strides = [1, 1]} : vector<8x32xbf16> to vector<8x8xbf16>
    %160 = vector.extract_strided_slice %136 {offsets = [0, 8], sizes = [8, 8], strides = [1, 1]} : vector<8x32xbf16> to vector<8x8xbf16>
    %cst_64 = arith.constant dense<0.000000e+00> : vector<8x8xf32>
    %161 = tpu.matmul %159, %160, %cst_64 {dimension_numbers = #tpu.dot_dimension_numbers<[1], [1], [0], [0], [0, 0, 1, 0], [], []>} : vector<8x8xbf16>, vector<8x8xbf16>, vector<8x8xf32> -> vector<8x8xf32>
    %cst_65 = arith.constant dense<0xFF800000> : vector<8xf32>
    %162 = vector.multi_reduction <maximumf>, %161, %cst_65 [1] : vector<8x8xf32> to vector<8xf32>
    %163 = vector.shape_cast %162 : vector<8xf32> to vector<8x1xf32>
    %164 = vector.broadcast %163 : vector<8x1xf32> to vector<8x8xf32>
    %165 = arith.subf %161, %164 : vector<8x8xf32>
    %166 = math.exp %165 : vector<8x8xf32>
    %cst_66 = arith.constant dense<0.000000e+00> : vector<8xf32>
    %167 = vector.multi_reduction <add>, %166, %cst_66 [1] : vector<8x8xf32> to vector<8xf32>
    %168 = vector.shape_cast %167 : vector<8xf32> to vector<8x1xf32>
    %169 = tpu.reciprocal %168 {approx = true} : vector<8x1xf32> -> vector<8x1xf32>
    %170 = vector.broadcast %169 : vector<8x1xf32> to vector<8x8xf32>
    %171 = arith.mulf %166, %170 : vector<8x8xf32>
    %172 = arith.truncf %171 : vector<8x8xf32> to vector<8x8xbf16>
    %173 = vector.extract_strided_slice %137 {offsets = [0, 8], sizes = [8, 8], strides = [1, 1]} : vector<8x32xbf16> to vector<8x8xbf16>
    %cst_67 = arith.constant dense<0.000000e+00> : vector<8x8xf32>
    %174 = tpu.matmul %172, %173, %cst_67 {dimension_numbers = #tpu.dot_dimension_numbers<[1], [0], [0], [1], [0, 0, 1, 1], [], []>} : vector<8x8xbf16>, vector<8x8xbf16>, vector<8x8xf32> -> vector<8x8xf32>
    %175 = arith.truncf %174 : vector<8x8xf32> to vector<8x8xbf16>
    %c8_68 = arith.constant 8 : index
    %c0_69 = arith.constant 0 : index
    %176 = vector.load %arg13[%c8_68, %c0_69] : memref<32x32xbf16, #tpu.memory_space<vmem>>, vector<8x32xbf16>
    %cst_70 = arith.constant dense<0.000000e+00> : vector<8x32xf32>
    %177 = tpu.matmul %175, %176, %cst_70 {dimension_numbers = #tpu.dot_dimension_numbers<[1], [0], [0], [1], [0, 0, 1, 1], [], []>} : vector<8x8xbf16>, vector<8x32xbf16>, vector<8x32xf32> -> vector<8x32xf32>
    %178 = arith.addf %158, %177 : vector<8x32xf32>
    %179 = vector.extract_strided_slice %129 {offsets = [0, 16], sizes = [8, 8], strides = [1, 1]} : vector<8x32xbf16> to vector<8x8xbf16>
    %180 = vector.extract_strided_slice %136 {offsets = [0, 16], sizes = [8, 8], strides = [1, 1]} : vector<8x32xbf16> to vector<8x8xbf16>
    %cst_71 = arith.constant dense<0.000000e+00> : vector<8x8xf32>
    %181 = tpu.matmul %179, %180, %cst_71 {dimension_numbers = #tpu.dot_dimension_numbers<[1], [1], [0], [0], [0, 0, 1, 0], [], []>} : vector<8x8xbf16>, vector<8x8xbf16>, vector<8x8xf32> -> vector<8x8xf32>
    %cst_72 = arith.constant dense<0xFF800000> : vector<8xf32>
    %182 = vector.multi_reduction <maximumf>, %181, %cst_72 [1] : vector<8x8xf32> to vector<8xf32>
    %183 = vector.shape_cast %182 : vector<8xf32> to vector<8x1xf32>
    %184 = vector.broadcast %183 : vector<8x1xf32> to vector<8x8xf32>
    %185 = arith.subf %181, %184 : vector<8x8xf32>
    %186 = math.exp %185 : vector<8x8xf32>
    %cst_73 = arith.constant dense<0.000000e+00> : vector<8xf32>
    %187 = vector.multi_reduction <add>, %186, %cst_73 [1] : vector<8x8xf32> to vector<8xf32>
    %188 = vector.shape_cast %187 : vector<8xf32> to vector<8x1xf32>
    %189 = tpu.reciprocal %188 {approx = true} : vector<8x1xf32> -> vector<8x1xf32>
    %190 = vector.broadcast %189 : vector<8x1xf32> to vector<8x8xf32>
    %191 = arith.mulf %186, %190 : vector<8x8xf32>
    %192 = arith.truncf %191 : vector<8x8xf32> to vector<8x8xbf16>
    %193 = vector.extract_strided_slice %137 {offsets = [0, 16], sizes = [8, 8], strides = [1, 1]} : vector<8x32xbf16> to vector<8x8xbf16>
    %cst_74 = arith.constant dense<0.000000e+00> : vector<8x8xf32>
    %194 = tpu.matmul %192, %193, %cst_74 {dimension_numbers = #tpu.dot_dimension_numbers<[1], [0], [0], [1], [0, 0, 1, 1], [], []>} : vector<8x8xbf16>, vector<8x8xbf16>, vector<8x8xf32> -> vector<8x8xf32>
    %195 = arith.truncf %194 : vector<8x8xf32> to vector<8x8xbf16>
    %c16_75 = arith.constant 16 : index
    %c0_76 = arith.constant 0 : index
    %196 = vector.load %arg13[%c16_75, %c0_76] : memref<32x32xbf16, #tpu.memory_space<vmem>>, vector<8x32xbf16>
    %cst_77 = arith.constant dense<0.000000e+00> : vector<8x32xf32>
    %197 = tpu.matmul %195, %196, %cst_77 {dimension_numbers = #tpu.dot_dimension_numbers<[1], [0], [0], [1], [0, 0, 1, 1], [], []>} : vector<8x8xbf16>, vector<8x32xbf16>, vector<8x32xf32> -> vector<8x32xf32>
    %198 = arith.addf %178, %197 : vector<8x32xf32>
    %199 = vector.extract_strided_slice %129 {offsets = [0, 24], sizes = [8, 8], strides = [1, 1]} : vector<8x32xbf16> to vector<8x8xbf16>
    %200 = vector.extract_strided_slice %136 {offsets = [0, 24], sizes = [8, 8], strides = [1, 1]} : vector<8x32xbf16> to vector<8x8xbf16>
    %cst_78 = arith.constant dense<0.000000e+00> : vector<8x8xf32>
    %201 = tpu.matmul %199, %200, %cst_78 {dimension_numbers = #tpu.dot_dimension_numbers<[1], [1], [0], [0], [0, 0, 1, 0], [], []>} : vector<8x8xbf16>, vector<8x8xbf16>, vector<8x8xf32> -> vector<8x8xf32>
    %cst_79 = arith.constant dense<0xFF800000> : vector<8xf32>
    %202 = vector.multi_reduction <maximumf>, %201, %cst_79 [1] : vector<8x8xf32> to vector<8xf32>
    %203 = vector.shape_cast %202 : vector<8xf32> to vector<8x1xf32>
    %204 = vector.broadcast %203 : vector<8x1xf32> to vector<8x8xf32>
    %205 = arith.subf %201, %204 : vector<8x8xf32>
    %206 = math.exp %205 : vector<8x8xf32>
    %cst_80 = arith.constant dense<0.000000e+00> : vector<8xf32>
    %207 = vector.multi_reduction <add>, %206, %cst_80 [1] : vector<8x8xf32> to vector<8xf32>
    %208 = vector.shape_cast %207 : vector<8xf32> to vector<8x1xf32>
    %209 = tpu.reciprocal %208 {approx = true} : vector<8x1xf32> -> vector<8x1xf32>
    %210 = vector.broadcast %209 : vector<8x1xf32> to vector<8x8xf32>
    %211 = arith.mulf %206, %210 : vector<8x8xf32>
    %212 = arith.truncf %211 : vector<8x8xf32> to vector<8x8xbf16>
    %213 = vector.extract_strided_slice %137 {offsets = [0, 24], sizes = [8, 8], strides = [1, 1]} : vector<8x32xbf16> to vector<8x8xbf16>
    %cst_81 = arith.constant dense<0.000000e+00> : vector<8x8xf32>
    %214 = tpu.matmul %212, %213, %cst_81 {dimension_numbers = #tpu.dot_dimension_numbers<[1], [0], [0], [1], [0, 0, 1, 1], [], []>} : vector<8x8xbf16>, vector<8x8xbf16>, vector<8x8xf32> -> vector<8x8xf32>
    %215 = arith.truncf %214 : vector<8x8xf32> to vector<8x8xbf16>
    %c24_82 = arith.constant 24 : index
    %c0_83 = arith.constant 0 : index
    %216 = vector.load %arg13[%c24_82, %c0_83] : memref<32x32xbf16, #tpu.memory_space<vmem>>, vector<8x32xbf16>
    %cst_84 = arith.constant dense<0.000000e+00> : vector<8x32xf32>
    %217 = tpu.matmul %215, %216, %cst_84 {dimension_numbers = #tpu.dot_dimension_numbers<[1], [0], [0], [1], [0, 0, 1, 1], [], []>} : vector<8x8xbf16>, vector<8x32xbf16>, vector<8x32xf32> -> vector<8x32xf32>
    %218 = arith.addf %198, %217 : vector<8x32xf32>
    %c0_85 = arith.constant 0 : index
    %c0_86 = arith.constant 0 : index
    %219 = vector.load %arg14[%c0_85, %c0_86] : memref<1x32xf32, #tpu.memory_space<vmem>>, vector<1x32xf32>
    %220 = vector.broadcast %219 : vector<1x32xf32> to vector<8x32xf32>
    %221 = arith.addf %218, %220 : vector<8x32xf32>
    %222 = arith.addf %221, %122 : vector<8x32xf32>
    %c0_87 = arith.constant 0 : index
    %c0_88 = arith.constant 0 : index
    %223 = vector.load %arg15[%c0_87, %c0_88] : memref<1x32xf32, #tpu.memory_space<vmem>>, vector<1x32xf32>
    %c0_89 = arith.constant 0 : index
    %c0_90 = arith.constant 0 : index
    %224 = vector.load %arg16[%c0_89, %c0_90] : memref<1x32xf32, #tpu.memory_space<vmem>>, vector<1x32xf32>
    %cst_91 = arith.constant dense<0.000000e+00> : vector<8xf32>
    %225 = vector.multi_reduction <add>, %222, %cst_91 [1] : vector<8x32xf32> to vector<8xf32>
    %226 = vector.shape_cast %225 : vector<8xf32> to vector<8x1xf32>
    %cst_92 = arith.constant 3.200000e+01 : f32
    %227 = vector.broadcast %cst_92 : f32 to vector<8x1xf32>
    %228 = arith.divf %226, %227 : vector<8x1xf32>
    %229 = vector.broadcast %228 : vector<8x1xf32> to vector<8x32xf32>
    %230 = arith.subf %222, %229 : vector<8x32xf32>
    %231 = arith.mulf %230, %230 : vector<8x32xf32>
    %cst_93 = arith.constant dense<0.000000e+00> : vector<8xf32>
    %232 = vector.multi_reduction <add>, %231, %cst_93 [1] : vector<8x32xf32> to vector<8xf32>
    %233 = vector.shape_cast %232 : vector<8xf32> to vector<8x1xf32>
    %cst_94 = arith.constant 3.200000e+01 : f32
    %234 = vector.broadcast %cst_94 : f32 to vector<8x1xf32>
    %235 = arith.divf %233, %234 : vector<8x1xf32>
    %236 = vector.broadcast %228 : vector<8x1xf32> to vector<8x32xf32>
    %237 = arith.subf %222, %236 : vector<8x32xf32>
    %cst_95 = arith.constant 9.99999974E-6 : f32
    %238 = vector.broadcast %cst_95 : f32 to vector<8x1xf32>
    %239 = arith.addf %235, %238 : vector<8x1xf32>
    %240 = math.rsqrt %239 : vector<8x1xf32>
    %241 = vector.broadcast %240 : vector<8x1xf32> to vector<8x32xf32>
    %242 = arith.mulf %237, %241 : vector<8x32xf32>
    %243 = vector.broadcast %223 : vector<1x32xf32> to vector<8x32xf32>
    %244 = arith.mulf %242, %243 : vector<8x32xf32>
    %245 = vector.broadcast %224 : vector<1x32xf32> to vector<8x32xf32>
    %246 = arith.addf %244, %245 : vector<8x32xf32>
    %247 = arith.truncf %246 : vector<8x32xf32> to vector<8x32xbf16>
    %c0_96 = arith.constant 0 : index
    %c0_97 = arith.constant 0 : index
    %248 = vector.load %arg17[%c0_96, %c0_97] : memref<32x64xbf16, #tpu.memory_space<vmem>>, vector<32x64xbf16>
    %cst_98 = arith.constant dense<0.000000e+00> : vector<8x64xf32>
    %249 = tpu.matmul %247, %248, %cst_98 {dimension_numbers = #tpu.dot_dimension_numbers<[1], [0], [0], [1], [0, 0, 1, 1], [], []>} : vector<8x32xbf16>, vector<32x64xbf16>, vector<8x64xf32> -> vector<8x64xf32>
    %c0_99 = arith.constant 0 : index
    %c0_100 = arith.constant 0 : index
    %250 = vector.load %arg18[%c0_99, %c0_100] : memref<1x64xf32, #tpu.memory_space<vmem>>, vector<1x64xf32>
    %251 = vector.broadcast %250 : vector<1x64xf32> to vector<8x64xf32>
    %252 = arith.addf %249, %251 : vector<8x64xf32>
    %cst_101 = arith.constant 0.000000e+00 : f32
    %253 = vector.broadcast %cst_101 : f32 to vector<8x64xf32>
    %254 = arith.maximumf %252, %253 : vector<8x64xf32>
    %255 = arith.truncf %254 : vector<8x64xf32> to vector<8x64xbf16>
    %c0_102 = arith.constant 0 : index
    %c0_103 = arith.constant 0 : index
    %256 = vector.load %arg19[%c0_102, %c0_103] : memref<64x32xbf16, #tpu.memory_space<vmem>>, vector<64x32xbf16>
    %cst_104 = arith.constant dense<0.000000e+00> : vector<8x32xf32>
    %257 = tpu.matmul %255, %256, %cst_104 {dimension_numbers = #tpu.dot_dimension_numbers<[1], [0], [0], [1], [0, 0, 1, 1], [], []>} : vector<8x64xbf16>, vector<64x32xbf16>, vector<8x32xf32> -> vector<8x32xf32>
    %c0_105 = arith.constant 0 : index
    %c0_106 = arith.constant 0 : index
    %258 = vector.load %arg20[%c0_105, %c0_106] : memref<1x32xf32, #tpu.memory_space<vmem>>, vector<1x32xf32>
    %259 = vector.broadcast %258 : vector<1x32xf32> to vector<8x32xf32>
    %260 = arith.addf %257, %259 : vector<8x32xf32>
    %261 = arith.addf %260, %246 : vector<8x32xf32>
    %c0_107 = arith.constant 0 : index
    %c0_108 = arith.constant 0 : index
    %262 = vector.load %arg21[%c0_107, %c0_108] : memref<1x32xf32, #tpu.memory_space<vmem>>, vector<1x32xf32>
    %c0_109 = arith.constant 0 : index
    %c0_110 = arith.constant 0 : index
    %263 = vector.load %arg22[%c0_109, %c0_110] : memref<1x32xf32, #tpu.memory_space<vmem>>, vector<1x32xf32>
    %cst_111 = arith.constant dense<0.000000e+00> : vector<8xf32>
    %264 = vector.multi_reduction <add>, %261, %cst_111 [1] : vector<8x32xf32> to vector<8xf32>
    %265 = vector.shape_cast %264 : vector<8xf32> to vector<8x1xf32>
    %cst_112 = arith.constant 3.200000e+01 : f32
    %266 = vector.broadcast %cst_112 : f32 to vector<8x1xf32>
    %267 = arith.divf %265, %266 : vector<8x1xf32>
    %268 = vector.broadcast %267 : vector<8x1xf32> to vector<8x32xf32>
    %269 = arith.subf %261, %268 : vector<8x32xf32>
    %270 = arith.mulf %269, %269 : vector<8x32xf32>
    %cst_113 = arith.constant dense<0.000000e+00> : vector<8xf32>
    %271 = vector.multi_reduction <add>, %270, %cst_113 [1] : vector<8x32xf32> to vector<8xf32>
    %272 = vector.shape_cast %271 : vector<8xf32> to vector<8x1xf32>
    %cst_114 = arith.constant 3.200000e+01 : f32
    %273 = vector.broadcast %cst_114 : f32 to vector<8x1xf32>
    %274 = arith.divf %272, %273 : vector<8x1xf32>
    %275 = vector.broadcast %267 : vector<8x1xf32> to vector<8x32xf32>
    %276 = arith.subf %261, %275 : vector<8x32xf32>
    %cst_115 = arith.constant 9.99999974E-6 : f32
    %277 = vector.broadcast %cst_115 : f32 to vector<8x1xf32>
    %278 = arith.addf %274, %277 : vector<8x1xf32>
    %279 = math.rsqrt %278 : vector<8x1xf32>
    %280 = vector.broadcast %279 : vector<8x1xf32> to vector<8x32xf32>
    %281 = arith.mulf %276, %280 : vector<8x32xf32>
    %282 = vector.broadcast %262 : vector<1x32xf32> to vector<8x32xf32>
    %283 = arith.mulf %281, %282 : vector<8x32xf32>
    %284 = vector.broadcast %263 : vector<1x32xf32> to vector<8x32xf32>
    %285 = arith.addf %283, %284 : vector<8x32xf32>
    %286 = arith.truncf %285 : vector<8x32xf32> to vector<8x32xbf16>
    %c0_116 = arith.constant 0 : index
    %c0_117 = arith.constant 0 : index
    %c0_118 = arith.constant 0 : index
    %287 = vector.load %arg23[%c0_116, %c0_117, %c0_118] : memref<1x8x32xbf16, #tpu.memory_space<vmem>>, vector<1x8x32xbf16>
    %288 = vector.shape_cast %287 : vector<1x8x32xbf16> to vector<8x32xbf16>
    %289 = vector.shape_cast %286 : vector<8x32xbf16> to vector<1x8x32xbf16>
    tpu.vector_store %arg23[%c0_116, %c0_117, %c0_118], %289 {strides = array<i32>} : memref<1x8x32xbf16, #tpu.memory_space<vmem>>, vector<1x8x32xbf16>,
    return
  }
  func.func @transform_0(%arg0: i32) -> (i32, i32, i32) {
    %c0_i32 = arith.constant 0 : i32
    %c0_i32_0 = arith.constant 0 : i32
    %c0_i32_1 = arith.constant 0 : i32
    return %arg0, %c0_i32, %c0_i32_0 : i32, i32, i32
  }
  func.func @transform_1(%arg0: i32) -> (i32, i32, i32) {
    %c0_i32 = arith.constant 0 : i32
    %c0_i32_0 = arith.constant 0 : i32
    %c0_i32_1 = arith.constant 0 : i32
    return %arg0, %c0_i32, %c0_i32_0 : i32, i32, i32
  }
  func.func @transform_2(%arg0: i32) -> (i32, i32) {
    %c0_i32 = arith.constant 0 : i32
    %c0_i32_0 = arith.constant 0 : i32
    %c0_i32_1 = arith.constant 0 : i32
    return %c0_i32, %c0_i32_0 : i32, i32
  }
  func.func @transform_3(%arg0: i32) -> (i32, i32) {
    %c0_i32 = arith.constant 0 : i32
    %c0_i32_0 = arith.constant 0 : i32
    %c0_i32_1 = arith.constant 0 : i32
    return %c0_i32, %c0_i32_0 : i32, i32
  }
  func.func @transform_4(%arg0: i32) -> (i32, i32) {
    %c0_i32 = arith.constant 0 : i32
    %c0_i32_0 = arith.constant 0 : i32
    %c0_i32_1 = arith.constant 0 : i32
    return %c0_i32, %c0_i32_0 : i32, i32
  }
  func.func @transform_5(%arg0: i32) -> (i32, i32) {
    %c0_i32 = arith.constant 0 : i32
    %c0_i32_0 = arith.constant 0 : i32
    %c0_i32_1 = arith.constant 0 : i32
    return %c0_i32, %c0_i32_0 : i32, i32
  }
  func.func @transform_6(%arg0: i32) -> (i32, i32) {
    %c0_i32 = arith.constant 0 : i32
    %c0_i32_0 = arith.constant 0 : i32
    %c0_i32_1 = arith.constant 0 : i32
    return %c0_i32, %c0_i32_0 : i32, i32
  }
  func.func @transform_7(%arg0: i32) -> (i32, i32) {
    %c0_i32 = arith.constant 0 : i32
    %c0_i32_0 = arith.constant 0 : i32
    %c0_i32_1 = arith.constant 0 : i32
    return %c0_i32, %c0_i32_0 : i32, i32
  }
  func.func @transform_8(%arg0: i32) -> (i32, i32) {
    %c0_i32 = arith.constant 0 : i32
    %c0_i32_0 = arith.constant 0 : i32
    %c0_i32_1 = arith.constant 0 : i32
    return %c0_i32, %c0_i32_0 : i32, i32
  }
  func.func @transform_9(%arg0: i32) -> (i32, i32) {
    %c0_i32 = arith.constant 0 : i32
    %c0_i32_0 = arith.constant 0 : i32
    %c0_i32_1 = arith.constant 0 : i32
    return %c0_i32, %c0_i32_0 : i32, i32
  }
  func.func @transform_10(%arg0: i32) -> (i32, i32) {
    %c0_i32 = arith.constant 0 : i32
    %c0_i32_0 = arith.constant 0 : i32
    %c0_i32_1 = arith.constant 0 : i32
    return %c0_i32, %c0_i32_0 : i32, i32
  }
  func.func @transform_11(%arg0: i32) -> (i32, i32) {
    %c0_i32 = arith.constant 0 : i32
    %c0_i32_0 = arith.constant 0 : i32
    %c0_i32_1 = arith.constant 0 : i32
    return %c0_i32, %c0_i32_0 : i32, i32
  }
  func.func @transform_12(%arg0: i32) -> (i32, i32) {
    %c0_i32 = arith.constant 0 : i32
    %c0_i32_0 = arith.constant 0 : i32
    %c0_i32_1 = arith.constant 0 : i32
    return %c0_i32, %c0_i32_0 : i32, i32
  }
  func.func @transform_13(%arg0: i32) -> (i32, i32) {
    %c0_i32 = arith.constant 0 : i32
    %c0_i32_0 = arith.constant 0 : i32
    %c0_i32_1 = arith.constant 0 : i32
    return %c0_i32, %c0_i32_0 : i32, i32
  }
  func.func @transform_14(%arg0: i32) -> (i32, i32) {
    %c0_i32 = arith.constant 0 : i32
    %c0_i32_0 = arith.constant 0 : i32
    %c0_i32_1 = arith.constant 0 : i32
    return %c0_i32, %c0_i32_0 : i32, i32
  }
  func.func @transform_15(%arg0: i32) -> (i32, i32) {
    %c0_i32 = arith.constant 0 : i32
    %c0_i32_0 = arith.constant 0 : i32
    %c0_i32_1 = arith.constant 0 : i32
    return %c0_i32, %c0_i32_0 : i32, i32
  }
  func.func @transform_16(%arg0: i32) -> (i32, i32) {
    %c0_i32 = arith.constant 0 : i32
    %c0_i32_0 = arith.constant 0 : i32
    %c0_i32_1 = arith.constant 0 : i32
    return %c0_i32, %c0_i32_0 : i32, i32
  }
  func.func @transform_17(%arg0: i32) -> (i32, i32) {
    %c0_i32 = arith.constant 0 : i32
    %c0_i32_0 = arith.constant 0 : i32
    %c0_i32_1 = arith.constant 0 : i32
    return %c0_i32, %c0_i32_0 : i32, i32
  }
  func.func @transform_18(%arg0: i32) -> (i32, i32) {
    %c0_i32 = arith.constant 0 : i32
    %c0_i32_0 = arith.constant 0 : i32
    %c0_i32_1 = arith.constant 0 : i32
    return %c0_i32, %c0_i32_0 : i32, i32
  }
  func.func @transform_19(%arg0: i32) -> (i32, i32) {
    %c0_i32 = arith.constant 0 : i32
    %c0_i32_0 = arith.constant 0 : i32
    %c0_i32_1 = arith.constant 0 : i32
    return %c0_i32, %c0_i32_0 : i32, i32
  }
  func.func @transform_20(%arg0: i32) -> (i32, i32) {
    %c0_i32 = arith.constant 0 : i32
    %c0_i32_0 = arith.constant 0 : i32
    %c0_i32_1 = arith.constant 0 : i32
    return %c0_i32, %c0_i32_0 : i32, i32
  }
  func.func @transform_21(%arg0: i32) -> (i32, i32) {
    %c0_i32 = arith.constant 0 : i32
    %c0_i32_0 = arith.constant 0 : i32
    %c0_i32_1 = arith.constant 0 : i32
    return %c0_i32, %c0_i32_0 : i32, i32
  }
  func.func @transform_22(%arg0: i32) -> (i32, i32, i32) {
    %c0_i32 = arith.constant 0 : i32
    %c0_i32_0 = arith.constant 0 : i32
    %c0_i32_1 = arith.constant 0 : i32
    return %arg0, %c0_i32, %c0_i32_0 : i32, i32, i32
  }
}

</mosaic_0001>

<llo_original>
// kernel: _lambda_.13
$region0: #{_lambda_.13}
  #allocation0 [shape = 'u32[]', space=smem, size = 0x4, offset = 0x4, fixed_abs, tag = 'smem constant byte address 0x4 - core index']
  #allocation1 [shape = 'u32[144,128]{1,0:T(1,128)}', space=vmem, size = 0x12000, scoped, tag = 'internal scratch']
  #allocation2 [shape = 'f32[16,128]{1,0:T(8,128)}', space=vmem, size = 0x2000, scoped, tag = 'scratch operand']
  %s0 = inlined_call_operand.vmem [shape: bf16[16,32], index: 0, kind: input, shape index: {}]
  %s1 = inlined_call_operand.vmem [shape: bf16[32,128], index: 1, kind: input, shape index: {}]
  %s2 = inlined_call_operand.vmem [shape: f32[1,128], index: 2, kind: input, shape index: {}]
  %s3 = inlined_call_operand.vmem [shape: f32[16,128], index: 3, kind: output, shape index: {}]
  %s4 = sld [smem:[#allocation0]]
  $region30: #{_lambda_.13} parent=0
    _
  %s6 = ssub.s32 1, %s4
  %s7 = scalar_select 0, %s6, %s4
  // Predicated region
  $region2: #{_lambda_.13} parent=0 // pred_check
    _
  $region3: #{_lambda_.13} parent=0 // pred_check_branch
    %9 = sbr.rel (0) target = $region5
  $region4: #{_lambda_.13} parent=0 // pred_region
    _
  $region5: #{_lambda_.13} parent=0 // pred_fallthru
    _
  // Predicated region
  $region6: #{_lambda_.13} parent=0 // pred_check
    _
  $region7: #{_lambda_.13} parent=0 // pred_check_branch
    %11 = sbr.rel (0) target = $region9
  $region8: #{_lambda_.13} parent=0 // pred_region
    _
  $region9: #{_lambda_.13} parent=0 // pred_fallthru
    _
  // Predicated region
  $region10: #{_lambda_.13} parent=0 // pred_check
    _
  $region11: #{_lambda_.13} parent=0 // pred_check_branch
    %13 = sbr.rel (0) target = $region13
  $region12: #{_lambda_.13} parent=0 // pred_region
    _
  $region13: #{_lambda_.13} parent=0 // pred_fallthru
    _
  %p15 = scmp.eq.s32.totalorder 0, 0
  // Predicated region
  $region14: #{_lambda_.13} parent=0 // pred_check
    %p16 = pneg %p15
  $region15: #{_lambda_.13} parent=0 // pred_check_branch
    %18 = sbr.rel (%p16) target = $region17
  $region16: #{_lambda_.13} parent=0 // pred_region
    %19 = vst [vmem:[#allocation2] sm:$0xff] 0.0
    %20 = vst [vmem:[#allocation2 + $0x8] sm:$0xff] 0.0
  $region17: #{_lambda_.13} parent=0 // pred_fallthru
    _
  %v21 = vld [vmem:[#allocation2] sm:$0xff]
  %v22 = vld [vmem:[#allocation2 + $0x8] sm:$0xff]
  %v23 = vld [vmem:[%s0] sm:$0xf]
  %v24 = vld [vmem:[%s0 + $0x4] sm:$0xf]
  %v25 = vld [vmem:[%s1] sm:$0xf]
  %v26 = vld [vmem:[%s1 + $0x4] sm:$0xf]
  %v27 = vld [vmem:[%s1 + $0x8] sm:$0xf]
  %v28 = vld [vmem:[%s1 + $0xc] sm:$0xf]
  %v31 = vunpack.c.l.b16 %v23
  %v32 = vunpack.c.l.b16 %v24
  %v33 = vpack.c.b16 %v32, %v31
  %v38 = vunpack.c.l.b16 %v25
  %v39 = vunpack.c.l.b16 %v26
  %v40 = vunpack.c.l.b16 %v27
  %v41 = vunpack.c.l.b16 %v28
  %v42 = vpack.c.b16 %v39, %v38
  %v43 = vpack.c.b16 %v41, %v40
  %vm46 = vcmask 261120
  %v48 = vsel %vm46, %v33, 0
  %50 = vmatprep.subr.bf16.mxu0 0
  %51 = vmatpush1.bf16.msra.mxu0 %v42
  %52 = vmatprep.subr.bf16.mxu0 0
  %53 = vmatpush1.bf16.msra.mxu0 %v43
  %54 = vmatprep.subr.bf16.mxu0 0
  %55 = vmatpush1.bf16.msra.mxu0 0
  %56 = vmatprep.subr.bf16.mxu0 0
  %57 = vmatpush1.bf16.msra.mxu0 0
  %58 = vmatprep.subr.bf16.mxu0 0
  %59 = vmatpush1.bf16.msra.mxu0 0
  %60 = vmatprep.subr.bf16.mxu0 0
  %61 = vmatpush1.bf16.msra.mxu0 0
  %62 = vmatprep.subr.bf16.mxu0 0
  %63 = vmatpush1.bf16.msra.mxu0 0
  %64 = vmatprep.subr.bf16.mxu0 0
  %65 = vmatpush1.bf16.msra.mxu0 0
  %66 = vmatprep.subr.bf16.mxu0 0
  %67 = vmatpush1.bf16.msra.mxu0 0
  %68 = vmatprep.subr.bf16.mxu0 0
  %69 = vmatpush1.bf16.msra.mxu0 0
  %70 = vmatprep.subr.bf16.mxu0 0
  %71 = vmatpush1.bf16.msra.mxu0 0
  %72 = vmatprep.subr.bf16.mxu0 0
  %73 = vmatpush1.bf16.msra.mxu0 0
  %74 = vmatprep.subr.bf16.mxu0 0
  %75 = vmatpush1.bf16.msra.mxu0 0
  %76 = vmatprep.subr.bf16.mxu0 0
  %77 = vmatpush1.bf16.msra.mxu0 0
  %78 = vmatprep.subr.bf16.mxu0 0
  %79 = vmatpush1.bf16.msra.mxu0 0
  %80 = vmatprep.subr.bf16.mxu0 0
  %81 = vmatpush1.bf16.msra.mxu0 0
  %82 = vmatprep.mubr.bf16.mxu0 0
  %83 = vmatmul.mubr.bf16.gmra.mrb[0].mxu0 %v48
  %v84 = vpop.f32.mrb[0].mxu0
  %v85 = vadd.f32 0.0, %v84
  %v86 = vpop.f32.mrb[0].mxu0
  %v87 = vpop.f32.mrb[0].mxu0
  %v88 = vadd.f32 0.0, %v87
  %v89 = vpop.f32.mrb[0].mxu0
  %90 = vdwg.mxu0
  %v91 = vadd.f32 %v21, %v85
  %v92 = vadd.f32 %v22, %v88
  %93 = vst [vmem:[#allocation2] sm:$0xff] %v91
  %94 = vst [vmem:[#allocation2 + $0x8] sm:$0xff] %v92
  // Predicated region
  $region18: #{_lambda_.13} parent=0 // pred_check
    %p95 = pneg %p15
  $region19: #{_lambda_.13} parent=0 // pred_check_branch
    %97 = sbr.rel (%p95) target = $region21
  $region20: #{_lambda_.13} parent=0 // pred_region
    %v98 = vld [vmem:[#allocation2] sm:$0xff]
    %v99 = vld [vmem:[#allocation2 + $0x8] sm:$0xff]
    %v100 = vld [vmem:[%s2] sm:$0x1]
    %v102 = vlaneseq
    %v103 = vshrl.u32 %v102, 7
    %v104 = vsub.s32 0, %v103
    %v105 = vrot.slane %v100, %v104
    %v107 = vadd.f32 %v98, %v105
    %v108 = vadd.f32 %v99, %v105
    %109 = vst [vmem:[%s3] sm:$0xff] %v107
    %110 = vst [vmem:[%s3 + $0x8] sm:$0xff] %v108
  $region21: #{_lambda_.13} parent=0 // pred_fallthru
    _
  // Predicated region
  $region22: #{_lambda_.13} parent=0 // pred_check
    _
  $region23: #{_lambda_.13} parent=0 // pred_check_branch
    %112 = sbr.rel (0) target = $region25
  $region24: #{_lambda_.13} parent=0 // pred_region
    _
  $region25: #{_lambda_.13} parent=0 // pred_fallthru
    _
  // Predicated region
  $region26: #{_lambda_.13} parent=0 // pred_check
    _
  $region27: #{_lambda_.13} parent=0 // pred_check_branch
    %114 = sbr.rel (0) target = $region29
  $region28: #{_lambda_.13} parent=0 // pred_region
    _
  $region29: #{_lambda_.13} parent=0 // pred_fallthru
    _

// kernel: _lambda_.9
$region0: #{_lambda_.9}
  #allocation0 [shape = 'u32[]', space=smem, size = 0x4, offset = 0x4, fixed_abs, tag = 'smem constant byte address 0x4 - core index']
  #allocation1 [shape = 'u32[144,128]{1,0:T(1,128)}', space=vmem, size = 0x12000, scoped, tag = 'internal scratch']
  %s0 = inlined_call_operand.vmem [shape: bf16[16,32], index: 0, kind: input, shape index: {}]
  %s1 = inlined_call_operand.vmem [shape: f32[1,32], index: 1, kind: input, shape index: {}]
  %s2 = inlined_call_operand.vmem [shape: f32[1,32], index: 2, kind: input, shape index: {}]
  %s3 = inlined_call_operand.vmem [shape: bf16[16,32], index: 3, kind: output, shape index: {}]
  %s4 = sld [smem:[#allocation0]]
  $region22: #{_lambda_.9} parent=0
    _
  %s6 = ssub.s32 1, %s4
  %s7 = scalar_select 0, %s6, %s4
  // Predicated region
  $region2: #{_lambda_.9} parent=0 // pred_check
    _
  $region3: #{_lambda_.9} parent=0 // pred_check_branch
    %9 = sbr.rel (0) target = $region5
  $region4: #{_lambda_.9} parent=0 // pred_region
    _
  $region5: #{_lambda_.9} parent=0 // pred_fallthru
    _
  // Predicated region
  $region6: #{_lambda_.9} parent=0 // pred_check
    _
  $region7: #{_lambda_.9} parent=0 // pred_check_branch
    %11 = sbr.rel (0) target = $region9
  $region8: #{_lambda_.9} parent=0 // pred_region
    _
  $region9: #{_lambda_.9} parent=0 // pred_fallthru
    _
  // Predicated region
  $region10: #{_lambda_.9} parent=0 // pred_check
    _
  $region11: #{_lambda_.9} parent=0 // pred_check_branch
    %13 = sbr.rel (0) target = $region13
  $region12: #{_lambda_.9} parent=0 // pred_region
    _
  $region13: #{_lambda_.9} parent=0 // pred_fallthru
    _
  %v14 = vld [vmem:[%s0] sm:$0xf]
  %v15 = vld [vmem:[%s0 + $0x4] sm:$0xf]
  %v16 = vunpack.c.l.bf16 %v14
  %v17 = vunpack.c.l.bf16 %v15
  %v18 = vld [vmem:[%s1] sm:$0x1]
  %v19 = vld [vmem:[%s2] sm:$0x1]
  %vm20 = vcmask 261120
  %v21 = vsel %vm20, %v16, 0.0
  %22 = vadd.xlane.f32.xlu0 %v21
  %v23 = vpop.xlane.xlu0 %22
  %v24 = vsel %vm20, %v17, 0.0
  %25 = vadd.xlane.f32.xlu0 %v24
  %v26 = vpop.xlane.xlu0 %25
  %v27 = vrcp.pop 32.0
  %v28 = vmul.f32 %v23, %v27
  %v29 = vmul.f32 %v26, %v27
  %v30 = vsub.f32 %v16, %v28
  %v31 = vsub.f32 %v17, %v29
  %v32 = vmul.f32 %v30, %v30
  %v33 = vmul.f32 %v31, %v31
  %v34 = vsel %vm20, %v32, 0.0
  %35 = vadd.xlane.f32.xlu0 %v34
  %v36 = vpop.xlane.xlu0 %35
  %v37 = vsel %vm20, %v33, 0.0
  %38 = vadd.xlane.f32.xlu0 %v37
  %v39 = vpop.xlane.xlu0 %38
  %v40 = vmul.f32 %v36, %v27
  %v41 = vmul.f32 %v39, %v27
  %v42 = vadd.f32 %v40, 1e-05
  %v43 = vadd.f32 %v41, 1e-05
  %v44 = vrsqrt.pop %v42
  %v45 = vrsqrt.pop %v43
  %v46 = vmul.f32 %v30, %v44
  %v47 = vmul.f32 %v31, %v45
  %v49 = vlaneseq
  %v50 = vshrl.u32 %v49, 7
  %v51 = vsub.s32 0, %v50
  %v52 = vrot.slane %v18, %v51
  %v54 = vmul.f32 %v46, %v52
  %v55 = vmul.f32 %v47, %v52
  %v57 = vlaneseq
  %v58 = vshrl.u32 %v57, 7
  %v59 = vsub.s32 0, %v58
  %v60 = vrot.slane %v19, %v59
  %v62 = vadd.f32 %v54, %v60
  %v63 = vadd.f32 %v55, %v60
  %v64 = vpack.c.bf16 %v63, %v62
  %v66 = vunpack.c.l.b16 %v64
  %v67 = vunpack.c.h.b16 %v64
  %v68 = vpack.c.b16 %v66, %v66
  %v69 = vpack.c.b16 %v67, %v67
  %vm72 = vcmask 257024
  %73 = vst.msk [vmem:[%s3] sm:$0xf] %vm72, %v68
  %74 = vst.msk [vmem:[%s3 + $0x4] sm:$0xf] %vm72, %v69
  // Predicated region
  $region14: #{_lambda_.9} parent=0 // pred_check
    _
  $region15: #{_lambda_.9} parent=0 // pred_check_branch
    %76 = sbr.rel (0) target = $region17
  $region16: #{_lambda_.9} parent=0 // pred_region
    _
  $region17: #{_lambda_.9} parent=0 // pred_fallthru
    _
  // Predicated region
  $region18: #{_lambda_.9} parent=0 // pred_check
    _
  $region19: #{_lambda_.9} parent=0 // pred_check_branch
    %78 = sbr.rel (0) target = $region21
  $region20: #{_lambda_.9} parent=0 // pred_region
    _
  $region21: #{_lambda_.9} parent=0 // pred_fallthru
    _

// kernel: _lambda_.7
$region0: #{_lambda_.7}
  #allocation0 [shape = 'u32[]', space=smem, size = 0x4, offset = 0x4, fixed_abs, tag = 'smem constant byte address 0x4 - core index']
  #allocation1 [shape = 'u32[144,128]{1,0:T(1,128)}', space=vmem, size = 0x12000, scoped, tag = 'internal scratch']
  %s0 = inlined_call_operand.vmem [shape: bf16[2,8,32], index: 0, kind: input, shape index: {}]
  %s1 = inlined_call_operand.vmem [shape: bf16[32,96], index: 1, kind: input, shape index: {}]
  %s2 = inlined_call_operand.vmem [shape: f32[1,96], index: 2, kind: input, shape index: {}]
  %s3 = inlined_call_operand.vmem [shape: bf16[32,32], index: 3, kind: input, shape index: {}]
  %s4 = inlined_call_operand.vmem [shape: f32[1,32], index: 4, kind: input, shape index: {}]
  %s5 = inlined_call_operand.vmem [shape: f32[1,32], index: 5, kind: input, shape index: {}]
  %s6 = inlined_call_operand.vmem [shape: f32[1,32], index: 6, kind: input, shape index: {}]
  %s7 = inlined_call_operand.vmem [shape: bf16[32,64], index: 7, kind: input, shape index: {}]
  %s8 = inlined_call_operand.vmem [shape: f32[1,64], index: 8, kind: input, shape index: {}]
  %s9 = inlined_call_operand.vmem [shape: bf16[64,32], index: 9, kind: input, shape index: {}]
  %s10 = inlined_call_operand.vmem [shape: f32[1,32], index: 10, kind: input, shape index: {}]
  %s11 = inlined_call_operand.vmem [shape: f32[1,32], index: 11, kind: input, shape index: {}]
  %s12 = inlined_call_operand.vmem [shape: f32[1,32], index: 12, kind: input, shape index: {}]
  %s13 = inlined_call_operand.vmem [shape: bf16[2,8,32], index: 13, kind: output, shape index: {}]
  %s14 = sld [smem:[#allocation0]]
  $region85: #{_lambda_.7} parent=0
    _
  %s16 = ssub.s32 1, %s14
  %s17 = scalar_select 0, %s16, %s14
  loop: start=0, step=1, limit=4
  $region2: #{_lambda_.7} parent=0 // loop_pre_header
    _
  $region3: #{_lambda_.7} parent=0 // loop_header
    %s19 = sphi 0, %s23
    %p20 = scmp.ge.s32.totalorder %s19, 4
    %s29 = sphi 0, %s31
    %s32 = sphi 0, %s29
    %s33 = sphi 0, %s32
    %s49 = sphi 0, %s33
    %s53 = sphi 0, %s53
    %s55 = sphi 0, %s53
    %s56 = sphi 0, %s55
    %s70 = sphi 0, %s56
    %s74 = sphi 0, %s74
    %s76 = sphi 0, %s74
    %s77 = sphi 0, %s76
    %s91 = sphi 0, %s77
    %s95 = sphi 0, %s95
    %s97 = sphi 0, %s95
    %s98 = sphi 0, %s97
    %s112 = sphi 0, %s98
    %s116 = sphi 0, %s116
    %s118 = sphi 0, %s116
    %s119 = sphi 0, %s118
    %s133 = sphi 0, %s119
    %s137 = sphi 0, %s137
    %s139 = sphi 0, %s137
    %s140 = sphi 0, %s139
    %s154 = sphi 0, %s140
    %s158 = sphi 0, %s158
    %s160 = sphi 0, %s158
    %s161 = sphi 0, %s160
    %s175 = sphi 0, %s161
    %s179 = sphi 0, %s179
    %s181 = sphi 0, %s179
    %s182 = sphi 0, %s181
    %s196 = sphi 0, %s182
    %s200 = sphi 0, %s200
    %s202 = sphi 0, %s200
    %s203 = sphi 0, %s202
    %s217 = sphi 0, %s203
    %s221 = sphi 0, %s221
    %s223 = sphi 0, %s221
    %s224 = sphi 0, %s223
    %s238 = sphi 0, %s224
    %s242 = sphi 0, %s242
    %s244 = sphi 0, %s242
    %s245 = sphi 0, %s244
    %s259 = sphi 0, %s245
    %s263 = sphi 0, %s263
    %s265 = sphi 0, %s263
    %s266 = sphi 0, %s265
    %s280 = sphi 0, %s266
    %s284 = sphi 0, %s284
    %s286 = sphi 0, %s284
    %s287 = sphi 0, %s286
    %s301 = sphi 0, %s287
    %s307 = sphi 0, %s309
    %s310 = sphi 0, %s307
    %s311 = sphi 0, %s310
    %s327 = sphi 0, %s311
  $region4: #{_lambda_.7} parent=0 // loop_header_branch
    %22 = sbr.rel (%p20) target = $region8
  $region5: #{_lambda_.7} parent=0 // loop_body
    %s24 = ssub.s32 %s19, 1
    %s25 = ssub.s32 %s19, 2
    %s26 = sadd.s32 %s19, 1
    %s27 = ssub.s32 %s19, %s26
    %p28 = scmp.eq.s32.totalorder %s27, 0
    %s30 = sadd.s32 %s29, 1
    %s31 = scalar_select %p28, %s29, %s30
    %p34 = pneg %p28
    %p35 = scmp.eq.s32.totalorder %s19, 1
    %p36 = por %p34, %p35
    %p37 = scmp.ne.s32.totalorder %s29, %s32
    %p38 = scmp.eq.s32.totalorder %s19, 0
    %p39 = por %p37, %p38
    %p40 = scmp.ne.s32.totalorder %s29, %s32
    %p41 = scmp.eq.s32.totalorder %s24, 1
    %p42 = por %p40, %p41
    %p43 = scmp.ne.s32.totalorder %s32, %s33
    %p44 = scmp.eq.s32.totalorder %s24, 0
    %p45 = por %p43, %p44
    %p46 = scmp.ne.s32.totalorder %s32, %s33
    %p47 = scmp.eq.s32.totalorder %s25, 1
    %p48 = por %p46, %p47
    %p50 = scmp.ne.s32.totalorder %s33, %s49
    %p51 = scmp.eq.s32.totalorder %s25, 0
    %p52 = por %p50, %p51
    %s54 = sadd.s32 %s53, 1
    %p57 = scmp.eq.s32.totalorder %s19, 1
    %p58 = scmp.ne.s32.totalorder %s53, %s55
    %p59 = scmp.eq.s32.totalorder %s19, 0
    %p60 = por %p58, %p59
    %p61 = scmp.ne.s32.totalorder %s53, %s55
    %p62 = scmp.eq.s32.totalorder %s24, 1
    %p63 = por %p61, %p62
    %p64 = scmp.ne.s32.totalorder %s55, %s56
    %p65 = scmp.eq.s32.totalorder %s24, 0
    %p66 = por %p64, %p65
    %p67 = scmp.ne.s32.totalorder %s55, %s56
    %p68 = scmp.eq.s32.totalorder %s25, 1
    %p69 = por %p67, %p68
    %p71 = scmp.ne.s32.totalorder %s56, %s70
    %p72 = scmp.eq.s32.totalorder %s25, 0
    %p73 = por %p71, %p72
    %s75 = sadd.s32 %s74, 1
    %p78 = scmp.eq.s32.totalorder %s19, 1
    %p79 = scmp.ne.s32.totalorder %s74, %s76
    %p80 = scmp.eq.s32.totalorder %s19, 0
    %p81 = por %p79, %p80
    %p82 = scmp.ne.s32.totalorder %s74, %s76
    %p83 = scmp.eq.s32.totalorder %s24, 1
    %p84 = por %p82, %p83
    %p85 = scmp.ne.s32.totalorder %s76, %s77
    %p86 = scmp.eq.s32.totalorder %s24, 0
    %p87 = por %p85, %p86
    %p88 = scmp.ne.s32.totalorder %s76, %s77
    %p89 = scmp.eq.s32.totalorder %s25, 1
    %p90 = por %p88, %p89
    %p92 = scmp.ne.s32.totalorder %s77, %s91
    %p93 = scmp.eq.s32.totalorder %s25, 0
    %p94 = por %p92, %p93
    %s96 = sadd.s32 %s95, 1
    %p99 = scmp.eq.s32.totalorder %s19, 1
    %p100 = scmp.ne.s32.totalorder %s95, %s97
    %p101 = scmp.eq.s32.totalorder %s19, 0
    %p102 = por %p100, %p101
    %p103 = scmp.ne.s32.totalorder %s95, %s97
    %p104 = scmp.eq.s32.totalorder %s24, 1
    %p105 = por %p103, %p104
    %p106 = scmp.ne.s32.totalorder %s97, %s98
    %p107 = scmp.eq.s32.totalorder %s24, 0
    %p108 = por %p106, %p107
    %p109 = scmp.ne.s32.totalorder %s97, %s98
    %p110 = scmp.eq.s32.totalorder %s25, 1
    %p111 = por %p109, %p110
    %p113 = scmp.ne.s32.totalorder %s98, %s112
    %p114 = scmp.eq.s32.totalorder %s25, 0
    %p115 = por %p113, %p114
    %s117 = sadd.s32 %s116, 1
    %p120 = scmp.eq.s32.totalorder %s19, 1
    %p121 = scmp.ne.s32.totalorder %s116, %s118
    %p122 = scmp.eq.s32.totalorder %s19, 0
    %p123 = por %p121, %p122
    %p124 = scmp.ne.s32.totalorder %s116, %s118
    %p125 = scmp.eq.s32.totalorder %s24, 1
    %p126 = por %p124, %p125
    %p127 = scmp.ne.s32.totalorder %s118, %s119
    %p128 = scmp.eq.s32.totalorder %s24, 0
    %p129 = por %p127, %p128
    %p130 = scmp.ne.s32.totalorder %s118, %s119
    %p131 = scmp.eq.s32.totalorder %s25, 1
    %p132 = por %p130, %p131
    %p134 = scmp.ne.s32.totalorder %s119, %s133
    %p135 = scmp.eq.s32.totalorder %s25, 0
    %p136 = por %p134, %p135
    %s138 = sadd.s32 %s137, 1
    %p141 = scmp.eq.s32.totalorder %s19, 1
    %p142 = scmp.ne.s32.totalorder %s137, %s139
    %p143 = scmp.eq.s32.totalorder %s19, 0
    %p144 = por %p142, %p143
    %p145 = scmp.ne.s32.totalorder %s137, %s139
    %p146 = scmp.eq.s32.totalorder %s24, 1
    %p147 = por %p145, %p146
    %p148 = scmp.ne.s32.totalorder %s139, %s140
    %p149 = scmp.eq.s32.totalorder %s24, 0
    %p150 = por %p148, %p149
    %p151 = scmp.ne.s32.totalorder %s139, %s140
    %p152 = scmp.eq.s32.totalorder %s25, 1
    %p153 = por %p151, %p152
    %p155 = scmp.ne.s32.totalorder %s140, %s154
    %p156 = scmp.eq.s32.totalorder %s25, 0
    %p157 = por %p155, %p156
    %s159 = sadd.s32 %s158, 1
    %p162 = scmp.eq.s32.totalorder %s19, 1
    %p163 = scmp.ne.s32.totalorder %s158, %s160
    %p164 = scmp.eq.s32.totalorder %s19, 0
    %p165 = por %p163, %p164
    %p166 = scmp.ne.s32.totalorder %s158, %s160
    %p167 = scmp.eq.s32.totalorder %s24, 1
    %p168 = por %p166, %p167
    %p169 = scmp.ne.s32.totalorder %s160, %s161
    %p170 = scmp.eq.s32.totalorder %s24, 0
    %p171 = por %p169, %p170
    %p172 = scmp.ne.s32.totalorder %s160, %s161
    %p173 = scmp.eq.s32.totalorder %s25, 1
    %p174 = por %p172, %p173
    %p176 = scmp.ne.s32.totalorder %s161, %s175
    %p177 = scmp.eq.s32.totalorder %s25, 0
    %p178 = por %p176, %p177
    %s180 = sadd.s32 %s179, 1
    %p183 = scmp.eq.s32.totalorder %s19, 1
    %p184 = scmp.ne.s32.totalorder %s179, %s181
    %p185 = scmp.eq.s32.totalorder %s19, 0
    %p186 = por %p184, %p185
    %p187 = scmp.ne.s32.totalorder %s179, %s181
    %p188 = scmp.eq.s32.totalorder %s24, 1
    %p189 = por %p187, %p188
    %p190 = scmp.ne.s32.totalorder %s181, %s182
    %p191 = scmp.eq.s32.totalorder %s24, 0
    %p192 = por %p190, %p191
    %p193 = scmp.ne.s32.totalorder %s181, %s182
    %p194 = scmp.eq.s32.totalorder %s25, 1
    %p195 = por %p193, %p194
    %p197 = scmp.ne.s32.totalorder %s182, %s196
    %p198 = scmp.eq.s32.totalorder %s25, 0
    %p199 = por %p197, %p198
    %s201 = sadd.s32 %s200, 1
    %p204 = scmp.eq.s32.totalorder %s19, 1
    %p205 = scmp.ne.s32.totalorder %s200, %s202
    %p206 = scmp.eq.s32.totalorder %s19, 0
    %p207 = por %p205, %p206
    %p208 = scmp.ne.s32.totalorder %s200, %s202
    %p209 = scmp.eq.s32.totalorder %s24, 1
    %p210 = por %p208, %p209
    %p211 = scmp.ne.s32.totalorder %s202, %s203
    %p212 = scmp.eq.s32.totalorder %s24, 0
    %p213 = por %p211, %p212
    %p214 = scmp.ne.s32.totalorder %s202, %s203
    %p215 = scmp.eq.s32.totalorder %s25, 1
    %p216 = por %p214, %p215
    %p218 = scmp.ne.s32.totalorder %s203, %s217
    %p219 = scmp.eq.s32.totalorder %s25, 0
    %p220 = por %p218, %p219
    %s222 = sadd.s32 %s221, 1
    %p225 = scmp.eq.s32.totalorder %s19, 1
    %p226 = scmp.ne.s32.totalorder %s221, %s223
    %p227 = scmp.eq.s32.totalorder %s19, 0
    %p228 = por %p226, %p227
    %p229 = scmp.ne.s32.totalorder %s221, %s223
    %p230 = scmp.eq.s32.totalorder %s24, 1
    %p231 = por %p229, %p230
    %p232 = scmp.ne.s32.totalorder %s223, %s224
    %p233 = scmp.eq.s32.totalorder %s24, 0
    %p234 = por %p232, %p233
    %p235 = scmp.ne.s32.totalorder %s223, %s224
    %p236 = scmp.eq.s32.totalorder %s25, 1
    %p237 = por %p235, %p236
    %p239 = scmp.ne.s32.totalorder %s224, %s238
    %p240 = scmp.eq.s32.totalorder %s25, 0
    %p241 = por %p239, %p240
    %s243 = sadd.s32 %s242, 1
    %p246 = scmp.eq.s32.totalorder %s19, 1
    %p247 = scmp.ne.s32.totalorder %s242, %s244
    %p248 = scmp.eq.s32.totalorder %s19, 0
    %p249 = por %p247, %p248
    %p250 = scmp.ne.s32.totalorder %s242, %s244
    %p251 = scmp.eq.s32.totalorder %s24, 1
    %p252 = por %p250, %p251
    %p253 = scmp.ne.s32.totalorder %s244, %s245
    %p254 = scmp.eq.s32.totalorder %s24, 0
    %p255 = por %p253, %p254
    %p256 = scmp.ne.s32.totalorder %s244, %s245
    %p257 = scmp.eq.s32.totalorder %s25, 1
    %p258 = por %p256, %p257
    %p260 = scmp.ne.s32.totalorder %s245, %s259
    %p261 = scmp.eq.s32.totalorder %s25, 0
    %p262 = por %p260, %p261
    %s264 = sadd.s32 %s263, 1
    %p267 = scmp.eq.s32.totalorder %s19, 1
    %p268 = scmp.ne.s32.totalorder %s263, %s265
    %p269 = scmp.eq.s32.totalorder %s19, 0
    %p270 = por %p268, %p269
    %p271 = scmp.ne.s32.totalorder %s263, %s265
    %p272 = scmp.eq.s32.totalorder %s24, 1
    %p273 = por %p271, %p272
    %p274 = scmp.ne.s32.totalorder %s265, %s266
    %p275 = scmp.eq.s32.totalorder %s24, 0
    %p276 = por %p274, %p275
    %p277 = scmp.ne.s32.totalorder %s265, %s266
    %p278 = scmp.eq.s32.totalorder %s25, 1
    %p279 = por %p277, %p278
    %p281 = scmp.ne.s32.totalorder %s266, %s280
    %p282 = scmp.eq.s32.totalorder %s25, 0
    %p283 = por %p281, %p282
    %s285 = sadd.s32 %s284, 1
    %p288 = scmp.eq.s32.totalorder %s19, 1
    %p289 = scmp.ne.s32.totalorder %s284, %s286
    %p290 = scmp.eq.s32.totalorder %s19, 0
    %p291 = por %p289, %p290
    %p292 = scmp.ne.s32.totalorder %s284, %s286
    %p293 = scmp.eq.s32.totalorder %s24, 1
    %p294 = por %p292, %p293
    %p295 = scmp.ne.s32.totalorder %s286, %s287
    %p296 = scmp.eq.s32.totalorder %s24, 0
    %p297 = por %p295, %p296
    %p298 = scmp.ne.s32.totalorder %s286, %s287
    %p299 = scmp.eq.s32.totalorder %s25, 1
    %p300 = por %p298, %p299
    %p302 = scmp.ne.s32.totalorder %s287, %s301
    %p303 = scmp.eq.s32.totalorder %s25, 0
    %p304 = por %p302, %p303
    %s305 = ssub.s32 %s19, %s26
    %p306 = scmp.eq.s32.totalorder %s305, 0
    %s308 = sadd.s32 %s307, 1
    %s309 = scalar_select %p306, %s307, %s308
    %p312 = pneg %p306
    %p313 = scmp.eq.s32.totalorder %s19, 1
    %p314 = por %p312, %p313
    %p315 = scmp.ne.s32.totalorder %s307, %s310
    %p316 = scmp.eq.s32.totalorder %s19, 0
    %p317 = por %p315, %p316
    %p318 = scmp.ne.s32.totalorder %s307, %s310
    %p319 = scmp.eq.s32.totalorder %s24, 1
    %p320 = por %p318, %p319
    %p321 = scmp.ne.s32.totalorder %s310, %s311
    %p322 = scmp.eq.s32.totalorder %s24, 0
    %p323 = por %p321, %p322
    %p324 = scmp.ne.s32.totalorder %s310, %s311
    %p325 = scmp.eq.s32.totalorder %s25, 1
    %p326 = por %p324, %p325
    %p328 = scmp.ne.s32.totalorder %s311, %s327
    %p329 = scmp.eq.s32.totalorder %s25, 0
    %p330 = por %p328, %p329
    %p331 = scmp.le.s32.totalorder 1, %s19
    %p332 = scmp.lt.s32.totalorder %s19, 3
    %p333 = pnand %p331, %p332
    %p334 = pneg %p333
    // Predicated region
    $region9: #{_lambda_.7} parent=5 // pred_check
      _
    $region10: #{_lambda_.7} parent=5 // pred_check_branch
      %336 = sbr.rel (%p333) target = $region12
    $region11: #{_lambda_.7} parent=5 // pred_region
      %s337 = ssub.s32 %s19, 1
      // Predicated region
      $region13: #{_lambda_.7} parent=11 // pred_check
        %p338 = pneg %p66
      $region14: #{_lambda_.7} parent=11 // pred_check_branch
        %340 = sbr.rel (%p338) target = $region16
      $region15: #{_lambda_.7} parent=11 // pred_region
        _
      $region16: #{_lambda_.7} parent=11 // pred_fallthru
        _
      // Predicated region
      $region17: #{_lambda_.7} parent=11 // pred_check
        %p341 = pneg %p87
      $region18: #{_lambda_.7} parent=11 // pred_check_branch
        %343 = sbr.rel (%p341) target = $region20
      $region19: #{_lambda_.7} parent=11 // pred_region
        _
      $region20: #{_lambda_.7} parent=11 // pred_fallthru
        _
      // Predicated region
      $region21: #{_lambda_.7} parent=11 // pred_check
        %p344 = pneg %p108
      $region22: #{_lambda_.7} parent=11 // pred_check_branch
        %346 = sbr.rel (%p344) target = $region24
      $region23: #{_lambda_.7} parent=11 // pred_region
        _
      $region24: #{_lambda_.7} parent=11 // pred_fallthru
        _
      // Predicated region
      $region25: #{_lambda_.7} parent=11 // pred_check
        %p347 = pneg %p129
      $region26: #{_lambda_.7} parent=11 // pred_check_branch
        %349 = sbr.rel (%p347) target = $region28
      $region27: #{_lambda_.7} parent=11 // pred_region
        _
      $region28: #{_lambda_.7} parent=11 // pred_fallthru
        _
      // Predicated region
      $region29: #{_lambda_.7} parent=11 // pred_check
        %p350 = pneg %p150
      $region30: #{_lambda_.7} parent=11 // pred_check_branch
        %352 = sbr.rel (%p350) target = $region32
      $region31: #{_lambda_.7} parent=11 // pred_region
        _
      $region32: #{_lambda_.7} parent=11 // pred_fallthru
        _
      // Predicated region
      $region33: #{_lambda_.7} parent=11 // pred_check
        %p353 = pneg %p171
      $region34: #{_lambda_.7} parent=11 // pred_check_branch
        %355 = sbr.rel (%p353) target = $region36
      $region35: #{_lambda_.7} parent=11 // pred_region
        _
      $region36: #{_lambda_.7} parent=11 // pred_fallthru
        _
      // Predicated region
      $region37: #{_lambda_.7} parent=11 // pred_check
        %p356 = pneg %p192
      $region38: #{_lambda_.7} parent=11 // pred_check_branch
        %358 = sbr.rel (%p356) target = $region40
      $region39: #{_lambda_.7} parent=11 // pred_region
        _
      $region40: #{_lambda_.7} parent=11 // pred_fallthru
        _
      // Predicated region
      $region41: #{_lambda_.7} parent=11 // pred_check
        %p359 = pneg %p213
      $region42: #{_lambda_.7} parent=11 // pred_check_branch
        %361 = sbr.rel (%p359) target = $region44
      $region43: #{_lambda_.7} parent=11 // pred_region
        _
      $region44: #{_lambda_.7} parent=11 // pred_fallthru
        _
      // Predicated region
      $region45: #{_lambda_.7} parent=11 // pred_check
        %p362 = pneg %p234
      $region46: #{_lambda_.7} parent=11 // pred_check_branch
        %364 = sbr.rel (%p362) target = $region48
      $region47: #{_lambda_.7} parent=11 // pred_region
        _
      $region48: #{_lambda_.7} parent=11 // pred_fallthru
        _
      // Predicated region
      $region49: #{_lambda_.7} parent=11 // pred_check
        %p365 = pneg %p255
      $region50: #{_lambda_.7} parent=11 // pred_check_branch
        %367 = sbr.rel (%p365) target = $region52
      $region51: #{_lambda_.7} parent=11 // pred_region
        _
      $region52: #{_lambda_.7} parent=11 // pred_fallthru
        _
      // Predicated region
      $region53: #{_lambda_.7} parent=11 // pred_check
        %p368 = pneg %p276
      $region54: #{_lambda_.7} parent=11 // pred_check_branch
        %370 = sbr.rel (%p368) target = $region56
      $region55: #{_lambda_.7} parent=11 // pred_region
        _
      $region56: #{_lambda_.7} parent=11 // pred_fallthru
        _
      // Predicated region
      $region57: #{_lambda_.7} parent=11 // pred_check
        %p371 = pneg %p297
      $region58: #{_lambda_.7} parent=11 // pred_check_branch
        %373 = sbr.rel (%p371) target = $region60
      $region59: #{_lambda_.7} parent=11 // pred_region
        _
      $region60: #{_lambda_.7} parent=11 // pred_fallthru
        _
    $region12: #{_lambda_.7} parent=5 // pred_fallthru
      _
    %p374 = scmp.lt.s32.totalorder %s19, 2
    // Predicated region
    $region61: #{_lambda_.7} parent=5 // pred_check
      %p375 = pneg %p374
    $region62: #{_lambda_.7} parent=5 // pred_check_branch
      %377 = sbr.rel (%p375) target = $region64
    $region63: #{_lambda_.7} parent=5 // pred_region
      // Predicated region
      $region65: #{_lambda_.7} parent=63 // pred_check
        %p378 = pneg %p39
      $region66: #{_lambda_.7} parent=63 // pred_check_branch
        %380 = sbr.rel (%p378) target = $region68
      $region67: #{_lambda_.7} parent=63 // pred_region
        %p381 = scmp.lt.s32.totalorder %s19, 1
        %s382 = scalar_select %p381, %s19, 1
        %s383 = smul.addr %s382, 4
        %s384 = scalar_lea.vmem %s0, %s383
      $region68: #{_lambda_.7} parent=63 // pred_fallthru
        _
    $region64: #{_lambda_.7} parent=5 // pred_fallthru
      _
    %p385 = scmp.le.s32.totalorder 1, %s19
    %p386 = scmp.lt.s32.totalorder %s19, 3
    %p387 = pnand %p385, %p386
    %p388 = pneg %p387
    // Predicated region
    $region69: #{_lambda_.7} parent=5 // pred_check
      _
    $region70: #{_lambda_.7} parent=5 // pred_check_branch
      %390 = sbr.rel (%p387) target = $region72
    $region71: #{_lambda_.7} parent=5 // pred_region
      %s391 = ssub.s32 %s19, 1
      %p392 = scmp.lt.s32.totalorder %s24, 1
      %s393 = scalar_select %p392, %s24, 1
      %s394 = smul.addr %s393, 4
      %s395 = scalar_lea.vmem %s0, %s394
      %p396 = pneg %p45
      %p397 = pneg %p42
      %p398 = pneg %p66
      %p399 = pneg %p63
      %p400 = pneg %p87
      %p401 = pneg %p84
      %p402 = pneg %p108
      %p403 = pneg %p105
      %p404 = pneg %p129
      %p405 = pneg %p126
      %p406 = pneg %p150
      %p407 = pneg %p147
      %p408 = pneg %p171
      %p409 = pneg %p168
      %p410 = pneg %p192
      %p411 = pneg %p189
      %p412 = pneg %p213
      %p413 = pneg %p210
      %p414 = pneg %p234
      %p415 = pneg %p231
      %p416 = pneg %p255
      %p417 = pneg %p252
      %p418 = pneg %p276
      %p419 = pneg %p273
      %p420 = pneg %p297
      %p421 = pneg %p294
      %p422 = pneg %p323
      %p423 = pneg %p320
      %p424 = scmp.lt.s32.totalorder %s24, 1
      %s425 = scalar_select %p424, %s24, 1
      %s426 = smul.addr %s425, 4
      %s427 = scalar_lea.vmem %s13, %s426
      %p428 = scmp.lt.s32.totalorder %s24, 1
      %s429 = scalar_select %p428, %s24, 1
      %s430 = smul.addr %s429, 4
      %s431 = scalar_lea.vmem %s0, %s430
      %p432 = scmp.lt.s32.totalorder %s24, 1
      %s433 = scalar_select %p432, %s24, 1
      %s434 = smul.addr %s433, 4
      %s435 = scalar_lea.vmem %s13, %s434
      %v437 = vld [vmem:[%s431] sm:$0xf]
      %v438 = vld [vmem:[%s1] sm:$0xf]
      %v439 = vld [vmem:[%s1 + $0x4] sm:$0xf]
      %v440 = vld [vmem:[%s1 + $0x8] sm:$0xf]
      %v441 = vld [vmem:[%s1 + $0xc] sm:$0xf]
      %v442 = vld [vmem:[%s2] sm:$0x1]
      %v444 = vlaneseq
      %v445 = vshrl.u32 %v444, 7
      %v446 = vsub.s32 0, %v445
      %v447 = vrot.slane %v442, %v446
      %v453 = vunpack.c.l.b16 %v438
      %v454 = vunpack.c.l.b16 %v439
      %v455 = vunpack.c.l.b16 %v440
      %v456 = vunpack.c.l.b16 %v441
      %v457 = vpack.c.b16 %v454, %v453
      %v458 = vpack.c.b16 %v456, %v455
      %vm461 = vcmask 261120
      %v463 = vsel %vm461, %v437, 0
      %465 = vmatprep.subr.bf16.mxu0 0
      %466 = vmatpush1.bf16.msra.mxu0 %v457
      %467 = vmatprep.subr.bf16.mxu0 0
      %468 = vmatpush1.bf16.msra.mxu0 %v458
      %469 = vmatprep.subr.bf16.mxu0 0
      %470 = vmatpush1.bf16.msra.mxu0 0
      %471 = vmatprep.subr.bf16.mxu0 0
      %472 = vmatpush1.bf16.msra.mxu0 0
      %473 = vmatprep.subr.bf16.mxu0 0
      %474 = vmatpush1.bf16.msra.mxu0 0
      %475 = vmatprep.subr.bf16.mxu0 0
      %476 = vmatpush1.bf16.msra.mxu0 0
      %477 = vmatprep.subr.bf16.mxu0 0
      %478 = vmatpush1.bf16.msra.mxu0 0
      %479 = vmatprep.subr.bf16.mxu0 0
      %480 = vmatpush1.bf16.msra.mxu0 0
      %481 = vmatprep.subr.bf16.mxu0 0
      %482 = vmatpush1.bf16.msra.mxu0 0
      %483 = vmatprep.subr.bf16.mxu0 0
      %484 = vmatpush1.bf16.msra.mxu0 0
      %485 = vmatprep.subr.bf16.mxu0 0
      %486 = vmatpush1.bf16.msra.mxu0 0
      %487 = vmatprep.subr.bf16.mxu0 0
      %488 = vmatpush1.bf16.msra.mxu0 0
      %489 = vmatprep.subr.bf16.mxu0 0
      %490 = vmatpush1.bf16.msra.mxu0 0
      %491 = vmatprep.subr.bf16.mxu0 0
      %492 = vmatpush1.bf16.msra.mxu0 0
      %493 = vmatprep.subr.bf16.mxu0 0
      %494 = vmatpush1.bf16.msra.mxu0 0
      %495 = vmatprep.subr.bf16.mxu0 0
      %496 = vmatpush1.bf16.msra.mxu0 0
      %497 = vmatprep.mubr.bf16.mxu0 0
      %498 = vmatmul.mubr.bf16.gmra.mrb[0].mxu0 %v463
      %v499 = vpop.f32.mrb[0].mxu0
      %v500 = vadd.f32 %v447, %v499
      %v501 = vpop.f32.mrb[0].mxu0
      %v502 = vpop.f32.mrb[0].mxu0
      %v503 = vpop.f32.mrb[0].mxu0
      %504 = vdwg.mxu0
      %v505 = vpack.c.bf16 %v500, %v500
      %507 = vrot.lane.b32.xlu0 %v505, 96
      %v508 = vpop.permute.xlu0 %507
      %vm509 = vcmask 64512
      %v511 = vsel %vm509, %v505, 0
      %v514 = vsel %vm509, %v508, 0
      %516 = vmatprep.subr.bf16.mxu0 0
      %517 = vmatpush1.bf16.xpose.msra.mxu0 %v514
      %518 = vmatprep.subr.bf16.mxu0 0
      %519 = vmatpush1.bf16.xpose.msra.mxu0 0
      %520 = vmatprep.subr.bf16.mxu0 0
      %521 = vmatpush1.bf16.xpose.msra.mxu0 0
      %522 = vmatprep.subr.bf16.mxu0 0
      %523 = vmatpush1.bf16.xpose.msra.mxu0 0
      %524 = vmatprep.subr.bf16.mxu0 0
      %525 = vmatpush1.bf16.xpose.msra.mxu0 0
      %526 = vmatprep.subr.bf16.mxu0 0
      %527 = vmatpush1.bf16.xpose.msra.mxu0 0
      %528 = vmatprep.subr.bf16.mxu0 0
      %529 = vmatpush1.bf16.xpose.msra.mxu0 0
      %530 = vmatprep.subr.bf16.mxu0 0
      %531 = vmatpush1.bf16.xpose.msra.mxu0 0
      %532 = vmatprep.subr.bf16.mxu0 0
      %533 = vmatpush1.bf16.xpose.msra.mxu0 0
      %534 = vmatprep.subr.bf16.mxu0 0
      %535 = vmatpush1.bf16.xpose.msra.mxu0 0
      %536 = vmatprep.subr.bf16.mxu0 0
      %537 = vmatpush1.bf16.xpose.msra.mxu0 0
      %538 = vmatprep.subr.bf16.mxu0 0
      %539 = vmatpush1.bf16.xpose.msra.mxu0 0
      %540 = vmatprep.subr.bf16.mxu0 0
      %541 = vmatpush1.bf16.xpose.msra.mxu0 0
      %542 = vmatprep.subr.bf16.mxu0 0
      %543 = vmatpush1.bf16.xpose.msra.mxu0 0
      %544 = vmatprep.subr.bf16.mxu0 0
      %545 = vmatpush1.bf16.xpose.msra.mxu0 0
      %546 = vmatprep.subr.bf16.mxu0 0
      %547 = vmatpush1.bf16.xpose.msra.mxu0 0
      %548 = vmatprep.mubr.bf16.mxu0 0
      %549 = vmatmul.mubr.bf16.gmra.mrb[0].mxu0 %v511
      %v550 = vpop.f32.mrb[0].mxu0
      %v551 = vadd.f32 0.0, %v550
      %v552 = vpop.f32.mrb[0].mxu0
      %v553 = vpop.f32.mrb[0].mxu0
      %v554 = vpop.f32.mrb[0].mxu0
      %555 = vdwg.mxu0
      %v556 = vsel %vm509, %v551, -inf
      %557 = vmax.xlane.f32.xlu0 %v556
      %v558 = vpop.xlane.xlu0 %557
      %v559 = vsub.f32 %v551, %v558
      %v560 = vmul.f32 %v559, 1.442695
      %v561 = vpow.pop %v560
      %v562 = vsel %vm509, %v561, 0.0
      %563 = vadd.xlane.f32.xlu0 %v562
      %v564 = vpop.xlane.xlu0 %563
      %v565 = vrcp.pop %v564
      %v566 = vmul.f32 %v561, %v565
      %v567 = vpack.c.bf16 %v566, %v566
      %568 = vrot.lane.b32.xlu0 %v505, 64
      %v569 = vpop.permute.xlu0 %568
      %v571 = vsel %vm509, %v567, 0
      %vm573 = vcmask 1043456
      %v575 = vsel %vm573, %v569, 0
      %577 = vmatprep.subr.bf16.mxu0 0
      %578 = vmatpush1.bf16.msra.mxu0 %v575
      %579 = vmatprep.subr.bf16.mxu0 0
      %580 = vmatpush1.bf16.msra.mxu0 0
      %581 = vmatprep.subr.bf16.mxu0 0
      %582 = vmatpush1.bf16.msra.mxu0 0
      %583 = vmatprep.subr.bf16.mxu0 0
      %584 = vmatpush1.bf16.msra.mxu0 0
      %585 = vmatprep.subr.bf16.mxu0 0
      %586 = vmatpush1.bf16.msra.mxu0 0
      %587 = vmatprep.subr.bf16.mxu0 0
      %588 = vmatpush1.bf16.msra.mxu0 0
      %589 = vmatprep.subr.bf16.mxu0 0
      %590 = vmatpush1.bf16.msra.mxu0 0
      %591 = vmatprep.subr.bf16.mxu0 0
      %592 = vmatpush1.bf16.msra.mxu0 0
      %593 = vmatprep.subr.bf16.mxu0 0
      %594 = vmatpush1.bf16.msra.mxu0 0
      %595 = vmatprep.subr.bf16.mxu0 0
      %596 = vmatpush1.bf16.msra.mxu0 0
      %597 = vmatprep.subr.bf16.mxu0 0
      %598 = vmatpush1.bf16.msra.mxu0 0
      %599 = vmatprep.subr.bf16.mxu0 0
      %600 = vmatpush1.bf16.msra.mxu0 0
      %601 = vmatprep.subr.bf16.mxu0 0
      %602 = vmatpush1.bf16.msra.mxu0 0
      %603 = vmatprep.subr.bf16.mxu0 0
      %604 = vmatpush1.bf16.msra.mxu0 0
      %605 = vmatprep.subr.bf16.mxu0 0
      %606 = vmatpush1.bf16.msra.mxu0 0
      %607 = vmatprep.subr.bf16.mxu0 0
      %608 = vmatpush1.bf16.msra.mxu0 0
      %609 = vmatprep.mubr.bf16.mxu0 0
      %610 = vmatmul.mubr.bf16.gmra.mrb[0].mxu0 %v571
      %v611 = vpop.f32.mrb[0].mxu0
      %v612 = vadd.f32 0.0, %v611
      %v613 = vpop.f32.mrb[0].mxu0
      %v614 = vpop.f32.mrb[0].mxu0
      %v615 = vpop.f32.mrb[0].mxu0
      %616 = vdwg.mxu0
      %v617 = vpack.c.bf16 %v612, %v612
      %v618 = vld [vmem:[%s3] sm:$0xf]
      %619 = vrot.lane.b32.xlu0 %v505, 120
      %v620 = vpop.permute.xlu0 %619
      %621 = vrot.lane.b32.xlu0 %v505, 88
      %v622 = vpop.permute.xlu0 %621
      %v624 = vsel %vm509, %v620, 0
      %v627 = vsel %vm509, %v622, 0
      %629 = vmatprep.subr.bf16.mxu0 0
      %630 = vmatpush1.bf16.xpose.msra.mxu0 %v627
      %631 = vmatprep.subr.bf16.mxu0 0
      %632 = vmatpush1.bf16.xpose.msra.mxu0 0
      %633 = vmatprep.subr.bf16.mxu0 0
      %634 = vmatpush1.bf16.xpose.msra.mxu0 0
      %635 = vmatprep.subr.bf16.mxu0 0
      %636 = vmatpush1.bf16.xpose.msra.mxu0 0
      %637 = vmatprep.subr.bf16.mxu0 0
      %638 = vmatpush1.bf16.xpose.msra.mxu0 0
      %639 = vmatprep.subr.bf16.mxu0 0
      %640 = vmatpush1.bf16.xpose.msra.mxu0 0
      %641 = vmatprep.subr.bf16.mxu0 0
      %642 = vmatpush1.bf16.xpose.msra.mxu0 0
      %643 = vmatprep.subr.bf16.mxu0 0
      %644 = vmatpush1.bf16.xpose.msra.mxu0 0
      %645 = vmatprep.subr.bf16.mxu0 0
      %646 = vmatpush1.bf16.xpose.msra.mxu0 0
      %647 = vmatprep.subr.bf16.mxu0 0
      %648 = vmatpush1.bf16.xpose.msra.mxu0 0
      %649 = vmatprep.subr.bf16.mxu0 0
      %650 = vmatpush1.bf16.xpose.msra.mxu0 0
      %651 = vmatprep.subr.bf16.mxu0 0
      %652 = vmatpush1.bf16.xpose.msra.mxu0 0
      %653 = vmatprep.subr.bf16.mxu0 0
      %654 = vmatpush1.bf16.xpose.msra.mxu0 0
      %655 = vmatprep.subr.bf16.mxu0 0
      %656 = vmatpush1.bf16.xpose.msra.mxu0 0
      %657 = vmatprep.subr.bf16.mxu0 0
      %658 = vmatpush1.bf16.xpose.msra.mxu0 0
      %659 = vmatprep.subr.bf16.mxu0 0
      %660 = vmatpush1.bf16.xpose.msra.mxu0 0
      %661 = vmatprep.mubr.bf16.mxu0 0
      %662 = vmatmul.mubr.bf16.gmra.mrb[0].mxu0 %v624
      %v663 = vpop.f32.mrb[0].mxu0
      %v664 = vadd.f32 0.0, %v663
      %v665 = vpop.f32.mrb[0].mxu0
      %v666 = vpop.f32.mrb[0].mxu0
      %v667 = vpop.f32.mrb[0].mxu0
      %668 = vdwg.mxu0
      %v669 = vsel %vm509, %v664, -inf
      %670 = vmax.xlane.f32.xlu0 %v669
      %v671 = vpop.xlane.xlu0 %670
      %v672 = vsub.f32 %v664, %v671
      %v673 = vmul.f32 %v672, 1.442695
      %v674 = vpow.pop %v673
      %v675 = vsel %vm509, %v674, 0.0
      %676 = vadd.xlane.f32.xlu0 %v675
      %v677 = vpop.xlane.xlu0 %676
      %v678 = vrcp.pop %v677
      %v679 = vmul.f32 %v674, %v678
      %v680 = vpack.c.bf16 %v679, %v679
      %681 = vrot.lane.b32.xlu0 %v505, 56
      %v682 = vpop.permute.xlu0 %681
      %v684 = vsel %vm509, %v680, 0
      %v687 = vsel %vm573, %v682, 0
      %689 = vmatprep.subr.bf16.mxu0 0
      %690 = vmatpush1.bf16.msra.mxu0 %v687
      %691 = vmatprep.subr.bf16.mxu0 0
      %692 = vmatpush1.bf16.msra.mxu0 0
      %693 = vmatprep.subr.bf16.mxu0 0
      %694 = vmatpush1.bf16.msra.mxu0 0
      %695 = vmatprep.subr.bf16.mxu0 0
      %696 = vmatpush1.bf16.msra.mxu0 0
      %697 = vmatprep.subr.bf16.mxu0 0
      %698 = vmatpush1.bf16.msra.mxu0 0
      %699 = vmatprep.subr.bf16.mxu0 0
      %700 = vmatpush1.bf16.msra.mxu0 0
      %701 = vmatprep.subr.bf16.mxu0 0
      %702 = vmatpush1.bf16.msra.mxu0 0
      %703 = vmatprep.subr.bf16.mxu0 0
      %704 = vmatpush1.bf16.msra.mxu0 0
      %705 = vmatprep.subr.bf16.mxu0 0
      %706 = vmatpush1.bf16.msra.mxu0 0
      %707 = vmatprep.subr.bf16.mxu0 0
      %708 = vmatpush1.bf16.msra.mxu0 0
      %709 = vmatprep.subr.bf16.mxu0 0
      %710 = vmatpush1.bf16.msra.mxu0 0
      %711 = vmatprep.subr.bf16.mxu0 0
      %712 = vmatpush1.bf16.msra.mxu0 0
      %713 = vmatprep.subr.bf16.mxu0 0
      %714 = vmatpush1.bf16.msra.mxu0 0
      %715 = vmatprep.subr.bf16.mxu0 0
      %716 = vmatpush1.bf16.msra.mxu0 0
      %717 = vmatprep.subr.bf16.mxu0 0
      %718 = vmatpush1.bf16.msra.mxu0 0
      %719 = vmatprep.subr.bf16.mxu0 0
      %720 = vmatpush1.bf16.msra.mxu0 0
      %721 = vmatprep.mubr.bf16.mxu0 0
      %722 = vmatmul.mubr.bf16.gmra.mrb[0].mxu0 %v684
      %v723 = vpop.f32.mrb[0].mxu0
      %v724 = vadd.f32 0.0, %v723
      %v725 = vpop.f32.mrb[0].mxu0
      %v726 = vpop.f32.mrb[0].mxu0
      %v727 = vpop.f32.mrb[0].mxu0
      %728 = vdwg.mxu0
      %v729 = vpack.c.bf16 %v724, %v724
      %v730 = vld [vmem:[%s3 + $0x4] sm:$0xf]
      %v732 = vsel %vm509, %v729, 0
      %v735 = vsel %vm573, %v730, 0
      %737 = vmatprep.subr.bf16.mxu0 0
      %738 = vmatpush1.bf16.msra.mxu0 %v735
      %739 = vmatprep.subr.bf16.mxu0 0
      %740 = vmatpush1.bf16.msra.mxu0 0
      %741 = vmatprep.subr.bf16.mxu0 0
      %742 = vmatpush1.bf16.msra.mxu0 0
      %743 = vmatprep.subr.bf16.mxu0 0
      %744 = vmatpush1.bf16.msra.mxu0 0
      %745 = vmatprep.subr.bf16.mxu0 0
      %746 = vmatpush1.bf16.msra.mxu0 0
      %747 = vmatprep.subr.bf16.mxu0 0
      %748 = vmatpush1.bf16.msra.mxu0 0
      %749 = vmatprep.subr.bf16.mxu0 0
      %750 = vmatpush1.bf16.msra.mxu0 0
      %751 = vmatprep.subr.bf16.mxu0 0
      %752 = vmatpush1.bf16.msra.mxu0 0
      %753 = vmatprep.subr.bf16.mxu0 0
      %754 = vmatpush1.bf16.msra.mxu0 0
      %755 = vmatprep.subr.bf16.mxu0 0
      %756 = vmatpush1.bf16.msra.mxu0 0
      %757 = vmatprep.subr.bf16.mxu0 0
      %758 = vmatpush1.bf16.msra.mxu0 0
      %759 = vmatprep.subr.bf16.mxu0 0
      %760 = vmatpush1.bf16.msra.mxu0 0
      %761 = vmatprep.subr.bf16.mxu0 0
      %762 = vmatpush1.bf16.msra.mxu0 0
      %763 = vmatprep.subr.bf16.mxu0 0
      %764 = vmatpush1.bf16.msra.mxu0 0
      %765 = vmatprep.subr.bf16.mxu0 0
      %766 = vmatpush1.bf16.msra.mxu0 0
      %767 = vmatprep.subr.bf16.mxu0 0
      %768 = vmatpush1.bf16.msra.mxu0 0
      %769 = vmatprep.mubr.bf16.mxu0 0
      %770 = vmatmul.mubr.bf16.gmra.mrb[0].mxu0 %v732
      %v771 = vpop.f32.mrb[0].mxu0
      %v772 = vadd.f32 0.0, %v771
      %v773 = vpop.f32.mrb[0].mxu0
      %v774 = vpop.f32.mrb[0].mxu0
      %v775 = vpop.f32.mrb[0].mxu0
      %776 = vdwg.mxu0
      %v778 = vsel %vm509, %v617, 0
      %v781 = vsel %vm573, %v618, 0
      %783 = vmatprep.subr.bf16.mxu0 0
      %784 = vmatpush1.bf16.msra.mxu0 %v781
      %785 = vmatprep.subr.bf16.mxu0 0
      %786 = vmatpush1.bf16.msra.mxu0 0
      %787 = vmatprep.subr.bf16.mxu0 0
      %788 = vmatpush1.bf16.msra.mxu0 0
      %789 = vmatprep.subr.bf16.mxu0 0
      %790 = vmatpush1.bf16.msra.mxu0 0
      %791 = vmatprep.subr.bf16.mxu0 0
      %792 = vmatpush1.bf16.msra.mxu0 0
      %793 = vmatprep.subr.bf16.mxu0 0
      %794 = vmatpush1.bf16.msra.mxu0 0
      %795 = vmatprep.subr.bf16.mxu0 0
      %796 = vmatpush1.bf16.msra.mxu0 0
      %797 = vmatprep.subr.bf16.mxu0 0
      %798 = vmatpush1.bf16.msra.mxu0 0
      %799 = vmatprep.subr.bf16.mxu0 0
      %800 = vmatpush1.bf16.msra.mxu0 0
      %801 = vmatprep.subr.bf16.mxu0 0
      %802 = vmatpush1.bf16.msra.mxu0 0
      %803 = vmatprep.subr.bf16.mxu0 0
      %804 = vmatpush1.bf16.msra.mxu0 0
      %805 = vmatprep.subr.bf16.mxu0 0
      %806 = vmatpush1.bf16.msra.mxu0 0
      %807 = vmatprep.subr.bf16.mxu0 0
      %808 = vmatpush1.bf16.msra.mxu0 0
      %809 = vmatprep.subr.bf16.mxu0 0
      %810 = vmatpush1.bf16.msra.mxu0 0
      %811 = vmatprep.subr.bf16.mxu0 0
      %812 = vmatpush1.bf16.msra.mxu0 0
      %813 = vmatprep.subr.bf16.mxu0 0
      %814 = vmatpush1.bf16.msra.mxu0 0
      %815 = vmatprep.mubr.bf16.mxu0 0
      %816 = vmatmul.mubr.bf16.gmra.mrb[0].mxu0 %v778
      %v817 = vpop.f32.mrb[0].mxu0
      %v818 = vadd.f32 %v772, %v817
      %v819 = vpop.f32.mrb[0].mxu0
      %v820 = vpop.f32.mrb[0].mxu0
      %v821 = vpop.f32.mrb[0].mxu0
      %822 = vdwg.mxu0
      %823 = vrot.lane.b32.xlu0 %v505, 112
      %v824 = vpop.permute.xlu0 %823
      %825 = vrot.lane.b32.xlu0 %v505, 80
      %v826 = vpop.permute.xlu0 %825
      %v828 = vsel %vm509, %v824, 0
      %v831 = vsel %vm509, %v826, 0
      %833 = vmatprep.subr.bf16.mxu0 0
      %834 = vmatpush1.bf16.xpose.msra.mxu0 %v831
      %835 = vmatprep.subr.bf16.mxu0 0
      %836 = vmatpush1.bf16.xpose.msra.mxu0 0
      %837 = vmatprep.subr.bf16.mxu0 0
      %838 = vmatpush1.bf16.xpose.msra.mxu0 0
      %839 = vmatprep.subr.bf16.mxu0 0
      %840 = vmatpush1.bf16.xpose.msra.mxu0 0
      %841 = vmatprep.subr.bf16.mxu0 0
      %842 = vmatpush1.bf16.xpose.msra.mxu0 0
      %843 = vmatprep.subr.bf16.mxu0 0
      %844 = vmatpush1.bf16.xpose.msra.mxu0 0
      %845 = vmatprep.subr.bf16.mxu0 0
      %846 = vmatpush1.bf16.xpose.msra.mxu0 0
      %847 = vmatprep.subr.bf16.mxu0 0
      %848 = vmatpush1.bf16.xpose.msra.mxu0 0
      %849 = vmatprep.subr.bf16.mxu0 0
      %850 = vmatpush1.bf16.xpose.msra.mxu0 0
      %851 = vmatprep.subr.bf16.mxu0 0
      %852 = vmatpush1.bf16.xpose.msra.mxu0 0
      %853 = vmatprep.subr.bf16.mxu0 0
      %854 = vmatpush1.bf16.xpose.msra.mxu0 0
      %855 = vmatprep.subr.bf16.mxu0 0
      %856 = vmatpush1.bf16.xpose.msra.mxu0 0
      %857 = vmatprep.subr.bf16.mxu0 0
      %858 = vmatpush1.bf16.xpose.msra.mxu0 0
      %859 = vmatprep.subr.bf16.mxu0 0
      %860 = vmatpush1.bf16.xpose.msra.mxu0 0
      %861 = vmatprep.subr.bf16.mxu0 0
      %862 = vmatpush1.bf16.xpose.msra.mxu0 0
      %863 = vmatprep.subr.bf16.mxu0 0
      %864 = vmatpush1.bf16.xpose.msra.mxu0 0
      %865 = vmatprep.mubr.bf16.mxu0 0
      %866 = vmatmul.mubr.bf16.gmra.mrb[0].mxu0 %v828
      %v867 = vpop.f32.mrb[0].mxu0
      %v868 = vadd.f32 0.0, %v867
      %v869 = vpop.f32.mrb[0].mxu0
      %v870 = vpop.f32.mrb[0].mxu0
      %v871 = vpop.f32.mrb[0].mxu0
      %872 = vdwg.mxu0
      %v873 = vsel %vm509, %v868, -inf
      %874 = vmax.xlane.f32.xlu0 %v873
      %v875 = vpop.xlane.xlu0 %874
      %v876 = vsub.f32 %v868, %v875
      %v877 = vmul.f32 %v876, 1.442695
      %v878 = vpow.pop %v877
      %v879 = vsel %vm509, %v878, 0.0
      %880 = vadd.xlane.f32.xlu0 %v879
      %v881 = vpop.xlane.xlu0 %880
      %v882 = vrcp.pop %v881
      %v883 = vmul.f32 %v878, %v882
      %v884 = vpack.c.bf16 %v883, %v883
      %885 = vrot.lane.b32.xlu0 %v505, 48
      %v886 = vpop.permute.xlu0 %885
      %v888 = vsel %vm509, %v884, 0
      %v891 = vsel %vm573, %v886, 0
      %893 = vmatprep.subr.bf16.mxu0 0
      %894 = vmatpush1.bf16.msra.mxu0 %v891
      %895 = vmatprep.subr.bf16.mxu0 0
      %896 = vmatpush1.bf16.msra.mxu0 0
      %897 = vmatprep.subr.bf16.mxu0 0
      %898 = vmatpush1.bf16.msra.mxu0 0
      %899 = vmatprep.subr.bf16.mxu0 0
      %900 = vmatpush1.bf16.msra.mxu0 0
      %901 = vmatprep.subr.bf16.mxu0 0
      %902 = vmatpush1.bf16.msra.mxu0 0
      %903 = vmatprep.subr.bf16.mxu0 0
      %904 = vmatpush1.bf16.msra.mxu0 0
      %905 = vmatprep.subr.bf16.mxu0 0
      %906 = vmatpush1.bf16.msra.mxu0 0
      %907 = vmatprep.subr.bf16.mxu0 0
      %908 = vmatpush1.bf16.msra.mxu0 0
      %909 = vmatprep.subr.bf16.mxu0 0
      %910 = vmatpush1.bf16.msra.mxu0 0
      %911 = vmatprep.subr.bf16.mxu0 0
      %912 = vmatpush1.bf16.msra.mxu0 0
      %913 = vmatprep.subr.bf16.mxu0 0
      %914 = vmatpush1.bf16.msra.mxu0 0
      %915 = vmatprep.subr.bf16.mxu0 0
      %916 = vmatpush1.bf16.msra.mxu0 0
      %917 = vmatprep.subr.bf16.mxu0 0
      %918 = vmatpush1.bf16.msra.mxu0 0
      %919 = vmatprep.subr.bf16.mxu0 0
      %920 = vmatpush1.bf16.msra.mxu0 0
      %921 = vmatprep.subr.bf16.mxu0 0
      %922 = vmatpush1.bf16.msra.mxu0 0
      %923 = vmatprep.subr.bf16.mxu0 0
      %924 = vmatpush1.bf16.msra.mxu0 0
      %925 = vmatprep.mubr.bf16.mxu0 0
      %926 = vmatmul.mubr.bf16.gmra.mrb[0].mxu0 %v888
      %v927 = vpop.f32.mrb[0].mxu0
      %v928 = vadd.f32 0.0, %v927
      %v929 = vpop.f32.mrb[0].mxu0
      %v930 = vpop.f32.mrb[0].mxu0
      %v931 = vpop.f32.mrb[0].mxu0
      %932 = vdwg.mxu0
      %v933 = vpack.c.bf16 %v928, %v928
      %v934 = vld [vmem:[%s3 + $0x8] sm:$0xf]
      %v936 = vsel %vm509, %v933, 0
      %v939 = vsel %vm573, %v934, 0
      %941 = vmatprep.subr.bf16.mxu0 0
      %942 = vmatpush1.bf16.msra.mxu0 %v939
      %943 = vmatprep.subr.bf16.mxu0 0
      %944 = vmatpush1.bf16.msra.mxu0 0
      %945 = vmatprep.subr.bf16.mxu0 0
      %946 = vmatpush1.bf16.msra.mxu0 0
      %947 = vmatprep.subr.bf16.mxu0 0
      %948 = vmatpush1.bf16.msra.mxu0 0
      %949 = vmatprep.subr.bf16.mxu0 0
      %950 = vmatpush1.bf16.msra.mxu0 0
      %951 = vmatprep.subr.bf16.mxu0 0
      %952 = vmatpush1.bf16.msra.mxu0 0
      %953 = vmatprep.subr.bf16.mxu0 0
      %954 = vmatpush1.bf16.msra.mxu0 0
      %955 = vmatprep.subr.bf16.mxu0 0
      %956 = vmatpush1.bf16.msra.mxu0 0
      %957 = vmatprep.subr.bf16.mxu0 0
      %958 = vmatpush1.bf16.msra.mxu0 0
      %959 = vmatprep.subr.bf16.mxu0 0
      %960 = vmatpush1.bf16.msra.mxu0 0
      %961 = vmatprep.subr.bf16.mxu0 0
      %962 = vmatpush1.bf16.msra.mxu0 0
      %963 = vmatprep.subr.bf16.mxu0 0
      %964 = vmatpush1.bf16.msra.mxu0 0
      %965 = vmatprep.subr.bf16.mxu0 0
      %966 = vmatpush1.bf16.msra.mxu0 0
      %967 = vmatprep.subr.bf16.mxu0 0
      %968 = vmatpush1.bf16.msra.mxu0 0
      %969 = vmatprep.subr.bf16.mxu0 0
      %970 = vmatpush1.bf16.msra.mxu0 0
      %971 = vmatprep.subr.bf16.mxu0 0
      %972 = vmatpush1.bf16.msra.mxu0 0
      %973 = vmatprep.mubr.bf16.mxu0 0
      %974 = vmatmul.mubr.bf16.gmra.mrb[0].mxu0 %v936
      %v975 = vpop.f32.mrb[0].mxu0
      %v976 = vadd.f32 0.0, %v975
      %v977 = vpop.f32.mrb[0].mxu0
      %v978 = vpop.f32.mrb[0].mxu0
      %v979 = vpop.f32.mrb[0].mxu0
      %980 = vdwg.mxu0
      %v981 = vadd.f32 %v818, %v976
      %982 = vrot.lane.b32.xlu0 %v505, 104
      %v983 = vpop.permute.xlu0 %982
      %984 = vrot.lane.b32.xlu0 %v505, 72
      %v985 = vpop.permute.xlu0 %984
      %v987 = vsel %vm509, %v983, 0
      %v990 = vsel %vm509, %v985, 0
      %992 = vmatprep.subr.bf16.mxu0 0
      %993 = vmatpush1.bf16.xpose.msra.mxu0 %v990
      %994 = vmatprep.subr.bf16.mxu0 0
      %995 = vmatpush1.bf16.xpose.msra.mxu0 0
      %996 = vmatprep.subr.bf16.mxu0 0
      %997 = vmatpush1.bf16.xpose.msra.mxu0 0
      %998 = vmatprep.subr.bf16.mxu0 0
      %999 = vmatpush1.bf16.xpose.msra.mxu0 0
      %1000 = vmatprep.subr.bf16.mxu0 0
      %1001 = vmatpush1.bf16.xpose.msra.mxu0 0
      %1002 = vmatprep.subr.bf16.mxu0 0
      %1003 = vmatpush1.bf16.xpose.msra.mxu0 0
      %1004 = vmatprep.subr.bf16.mxu0 0
      %1005 = vmatpush1.bf16.xpose.msra.mxu0 0
      %1006 = vmatprep.subr.bf16.mxu0 0
      %1007 = vmatpush1.bf16.xpose.msra.mxu0 0
      %1008 = vmatprep.subr.bf16.mxu0 0
      %1009 = vmatpush1.bf16.xpose.msra.mxu0 0
      %1010 = vmatprep.subr.bf16.mxu0 0
      %1011 = vmatpush1.bf16.xpose.msra.mxu0 0
      %1012 = vmatprep.subr.bf16.mxu0 0
      %1013 = vmatpush1.bf16.xpose.msra.mxu0 0
      %1014 = vmatprep.subr.bf16.mxu0 0
      %1015 = vmatpush1.bf16.xpose.msra.mxu0 0
      %1016 = vmatprep.subr.bf16.mxu0 0
      %1017 = vmatpush1.bf16.xpose.msra.mxu0 0
      %1018 = vmatprep.subr.bf16.mxu0 0
      %1019 = vmatpush1.bf16.xpose.msra.mxu0 0
      %1020 = vmatprep.subr.bf16.mxu0 0
      %1021 = vmatpush1.bf16.xpose.msra.mxu0 0
      %1022 = vmatprep.subr.bf16.mxu0 0
      %1023 = vmatpush1.bf16.xpose.msra.mxu0 0
      %1024 = vmatprep.mubr.bf16.mxu0 0
      %1025 = vmatmul.mubr.bf16.gmra.mrb[0].mxu0 %v987
      %v1026 = vpop.f32.mrb[0].mxu0
      %v1027 = vadd.f32 0.0, %v1026
      %v1028 = vpop.f32.mrb[0].mxu0
      %v1029 = vpop.f32.mrb[0].mxu0
      %v1030 = vpop.f32.mrb[0].mxu0
      %1031 = vdwg.mxu0
      %v1032 = vsel %vm509, %v1027, -inf
      %1033 = vmax.xlane.f32.xlu0 %v1032
      %v1034 = vpop.xlane.xlu0 %1033
      %v1035 = vsub.f32 %v1027, %v1034
      %v1036 = vmul.f32 %v1035, 1.442695
      %v1037 = vpow.pop %v1036
      %v1038 = vsel %vm509, %v1037, 0.0
      %1039 = vadd.xlane.f32.xlu0 %v1038
      %v1040 = vpop.xlane.xlu0 %1039
      %v1041 = vrcp.pop %v1040
      %v1042 = vmul.f32 %v1037, %v1041
      %v1043 = vpack.c.bf16 %v1042, %v1042
      %1044 = vrot.lane.b32.xlu0 %v505, 40
      %v1045 = vpop.permute.xlu0 %1044
      %v1047 = vsel %vm509, %v1043, 0
      %v1050 = vsel %vm573, %v1045, 0
      %1052 = vmatprep.subr.bf16.mxu0 0
      %1053 = vmatpush1.bf16.msra.mxu0 %v1050
      %1054 = vmatprep.subr.bf16.mxu0 0
      %1055 = vmatpush1.bf16.msra.mxu0 0
      %1056 = vmatprep.subr.bf16.mxu0 0
      %1057 = vmatpush1.bf16.msra.mxu0 0
      %1058 = vmatprep.subr.bf16.mxu0 0
      %1059 = vmatpush1.bf16.msra.mxu0 0
      %1060 = vmatprep.subr.bf16.mxu0 0
      %1061 = vmatpush1.bf16.msra.mxu0 0
      %1062 = vmatprep.subr.bf16.mxu0 0
      %1063 = vmatpush1.bf16.msra.mxu0 0
      %1064 = vmatprep.subr.bf16.mxu0 0
      %1065 = vmatpush1.bf16.msra.mxu0 0
      %1066 = vmatprep.subr.bf16.mxu0 0
      %1067 = vmatpush1.bf16.msra.mxu0 0
      %1068 = vmatprep.subr.bf16.mxu0 0
      %1069 = vmatpush1.bf16.msra.mxu0 0
      %1070 = vmatprep.subr.bf16.mxu0 0
      %1071 = vmatpush1.bf16.msra.mxu0 0
      %1072 = vmatprep.subr.bf16.mxu0 0
      %1073 = vmatpush1.bf16.msra.mxu0 0
      %1074 = vmatprep.subr.bf16.mxu0 0
      %1075 = vmatpush1.bf16.msra.mxu0 0
      %1076 = vmatprep.subr.bf16.mxu0 0
      %1077 = vmatpush1.bf16.msra.mxu0 0
      %1078 = vmatprep.subr.bf16.mxu0 0
      %1079 = vmatpush1.bf16.msra.mxu0 0
      %1080 = vmatprep.subr.bf16.mxu0 0
      %1081 = vmatpush1.bf16.msra.mxu0 0
      %1082 = vmatprep.subr.bf16.mxu0 0
      %1083 = vmatpush1.bf16.msra.mxu0 0
      %1084 = vmatprep.mubr.bf16.mxu0 0
      %1085 = vmatmul.mubr.bf16.gmra.mrb[0].mxu0 %v1047
      %v1086 = vpop.f32.mrb[0].mxu0
      %v1087 = vadd.f32 0.0, %v1086
      %v1088 = vpop.f32.mrb[0].mxu0
      %v1089 = vpop.f32.mrb[0].mxu0
      %v1090 = vpop.f32.mrb[0].mxu0
      %1091 = vdwg.mxu0
      %v1092 = vpack.c.bf16 %v1087, %v1087
      %v1093 = vld [vmem:[%s3 + $0xc] sm:$0xf]
      %v1095 = vsel %vm509, %v1092, 0
      %v1098 = vsel %vm573, %v1093, 0
      %1100 = vmatprep.subr.bf16.mxu0 0
      %1101 = vmatpush1.bf16.msra.mxu0 %v1098
      %1102 = vmatprep.subr.bf16.mxu0 0
      %1103 = vmatpush1.bf16.msra.mxu0 0
      %1104 = vmatprep.subr.bf16.mxu0 0
      %1105 = vmatpush1.bf16.msra.mxu0 0
      %1106 = vmatprep.subr.bf16.mxu0 0
      %1107 = vmatpush1.bf16.msra.mxu0 0
      %1108 = vmatprep.subr.bf16.mxu0 0
      %1109 = vmatpush1.bf16.msra.mxu0 0
      %1110 = vmatprep.subr.bf16.mxu0 0
      %1111 = vmatpush1.bf16.msra.mxu0 0
      %1112 = vmatprep.subr.bf16.mxu0 0
      %1113 = vmatpush1.bf16.msra.mxu0 0
      %1114 = vmatprep.subr.bf16.mxu0 0
      %1115 = vmatpush1.bf16.msra.mxu0 0
      %1116 = vmatprep.subr.bf16.mxu0 0
      %1117 = vmatpush1.bf16.msra.mxu0 0
      %1118 = vmatprep.subr.bf16.mxu0 0
      %1119 = vmatpush1.bf16.msra.mxu0 0
      %1120 = vmatprep.subr.bf16.mxu0 0
      %1121 = vmatpush1.bf16.msra.mxu0 0
      %1122 = vmatprep.subr.bf16.mxu0 0
      %1123 = vmatpush1.bf16.msra.mxu0 0
      %1124 = vmatprep.subr.bf16.mxu0 0
      %1125 = vmatpush1.bf16.msra.mxu0 0
      %1126 = vmatprep.subr.bf16.mxu0 0
      %1127 = vmatpush1.bf16.msra.mxu0 0
      %1128 = vmatprep.subr.bf16.mxu0 0
      %1129 = vmatpush1.bf16.msra.mxu0 0
      %1130 = vmatprep.subr.bf16.mxu0 0
      %1131 = vmatpush1.bf16.msra.mxu0 0
      %1132 = vmatprep.mubr.bf16.mxu0 0
      %1133 = vmatmul.mubr.bf16.gmra.mrb[0].mxu0 %v1095
      %v1134 = vpop.f32.mrb[0].mxu0
      %v1135 = vadd.f32 0.0, %v1134
      %v1136 = vpop.f32.mrb[0].mxu0
      %v1137 = vpop.f32.mrb[0].mxu0
      %v1138 = vpop.f32.mrb[0].mxu0
      %1139 = vdwg.mxu0
      %v1140 = vadd.f32 %v981, %v1135
      %v1141 = vld [vmem:[%s4] sm:$0x1]
      %v1143 = vlaneseq
      %v1144 = vshrl.u32 %v1143, 7
      %v1145 = vsub.s32 0, %v1144
      %v1146 = vrot.slane %v1141, %v1145
      %v1148 = vadd.f32 %v1140, %v1146
      %v1149 = vunpack.c.l.bf16 %v437
      %v1150 = vadd.f32 %v1148, %v1149
      %v1151 = vld [vmem:[%s5] sm:$0x1]
      %v1152 = vld [vmem:[%s6] sm:$0x1]
      %v1153 = vsel %vm461, %v1150, 0.0
      %1154 = vadd.xlane.f32.xlu0 %v1153
      %v1155 = vpop.xlane.xlu0 %1154
      %v1156 = vrcp.pop 32.0
      %v1157 = vmul.f32 %v1155, %v1156
      %v1158 = vsub.f32 %v1150, %v1157
      %v1159 = vmul.f32 %v1158, %v1158
      %v1160 = vsel %vm461, %v1159, 0.0
      %1161 = vadd.xlane.f32.xlu0 %v1160
      %v1162 = vpop.xlane.xlu0 %1161
      %v1163 = vmul.f32 %v1162, %v1156
      %v1164 = vadd.f32 %v1163, 1e-05
      %v1165 = vrsqrt.pop %v1164
      %v1166 = vmul.f32 %v1158, %v1165
      %v1168 = vlaneseq
      %v1169 = vshrl.u32 %v1168, 7
      %v1170 = vsub.s32 0, %v1169
      %v1171 = vrot.slane %v1151, %v1170
      %v1173 = vmul.f32 %v1166, %v1171
      %v1175 = vlaneseq
      %v1176 = vshrl.u32 %v1175, 7
      %v1177 = vsub.s32 0, %v1176
      %v1178 = vrot.slane %v1152, %v1177
      %v1180 = vadd.f32 %v1173, %v1178
      %v1181 = vpack.c.bf16 %v1180, %v1180
      %v1182 = vld [vmem:[%s7] sm:$0xf]
      %v1183 = vld [vmem:[%s7 + $0x4] sm:$0xf]
      %v1184 = vld [vmem:[%s7 + $0x8] sm:$0xf]
      %v1185 = vld [vmem:[%s7 + $0xc] sm:$0xf]
      %v1186 = vld [vmem:[%s8] sm:$0x1]
      %v1188 = vlaneseq
      %v1189 = vshrl.u32 %v1188, 7
      %v1190 = vsub.s32 0, %v1189
      %v1191 = vrot.slane %v1186, %v1190
      %v1197 = vunpack.c.l.b16 %v1182
      %v1198 = vunpack.c.l.b16 %v1183
      %v1199 = vunpack.c.l.b16 %v1184
      %v1200 = vunpack.c.l.b16 %v1185
      %v1201 = vpack.c.b16 %v1198, %v1197
      %v1202 = vpack.c.b16 %v1200, %v1199
      %v1206 = vsel %vm461, %v1181, 0
      %1208 = vmatprep.subr.bf16.mxu0 0
      %1209 = vmatpush1.bf16.msra.mxu0 %v1201
      %1210 = vmatprep.subr.bf16.mxu0 0
      %1211 = vmatpush1.bf16.msra.mxu0 %v1202
      %1212 = vmatprep.subr.bf16.mxu0 0
      %1213 = vmatpush1.bf16.msra.mxu0 0
      %1214 = vmatprep.subr.bf16.mxu0 0
      %1215 = vmatpush1.bf16.msra.mxu0 0
      %1216 = vmatprep.subr.bf16.mxu0 0
      %1217 = vmatpush1.bf16.msra.mxu0 0
      %1218 = vmatprep.subr.bf16.mxu0 0
      %1219 = vmatpush1.bf16.msra.mxu0 0
      %1220 = vmatprep.subr.bf16.mxu0 0
      %1221 = vmatpush1.bf16.msra.mxu0 0
      %1222 = vmatprep.subr.bf16.mxu0 0
      %1223 = vmatpush1.bf16.msra.mxu0 0
      %1224 = vmatprep.subr.bf16.mxu0 0
      %1225 = vmatpush1.bf16.msra.mxu0 0
      %1226 = vmatprep.subr.bf16.mxu0 0
      %1227 = vmatpush1.bf16.msra.mxu0 0
      %1228 = vmatprep.subr.bf16.mxu0 0
      %1229 = vmatpush1.bf16.msra.mxu0 0
      %1230 = vmatprep.subr.bf16.mxu0 0
      %1231 = vmatpush1.bf16.msra.mxu0 0
      %1232 = vmatprep.subr.bf16.mxu0 0
      %1233 = vmatpush1.bf16.msra.mxu0 0
      %1234 = vmatprep.subr.bf16.mxu0 0
      %1235 = vmatpush1.bf16.msra.mxu0 0
      %1236 = vmatprep.subr.bf16.mxu0 0
      %1237 = vmatpush1.bf16.msra.mxu0 0
      %1238 = vmatprep.subr.bf16.mxu0 0
      %1239 = vmatpush1.bf16.msra.mxu0 0
      %1240 = vmatprep.mubr.bf16.mxu0 0
      %1241 = vmatmul.mubr.bf16.gmra.mrb[0].mxu0 %v1206
      %v1242 = vpop.f32.mrb[0].mxu0
      %v1243 = vadd.f32 %v1191, %v1242
      %v1244 = vpop.f32.mrb[0].mxu0
      %v1245 = vpop.f32.mrb[0].mxu0
      %v1246 = vpop.f32.mrb[0].mxu0
      %1247 = vdwg.mxu0
      %v1248 = vmax.f32 %v1243, 0.0
      %v1249 = vpack.c.bf16 %v1248, %v1248
      %v1250 = vld [vmem:[%s9] sm:$0xf]
      %v1251 = vld [vmem:[%s9 + $0x4] sm:$0xf]
      %v1252 = vld [vmem:[%s9 + $0x8] sm:$0xf]
      %v1253 = vld [vmem:[%s9 + $0xc] sm:$0xf]
      %v1254 = vld [vmem:[%s9 + $0x10] sm:$0xf]
      %v1255 = vld [vmem:[%s9 + $0x14] sm:$0xf]
      %v1256 = vld [vmem:[%s9 + $0x18] sm:$0xf]
      %v1257 = vld [vmem:[%s9 + $0x1c] sm:$0xf]
      %v1258 = vld [vmem:[%s10] sm:$0x1]
      %v1260 = vlaneseq
      %v1261 = vshrl.u32 %v1260, 7
      %v1262 = vsub.s32 0, %v1261
      %v1263 = vrot.slane %v1258, %v1262
      %v1273 = vunpack.c.l.b16 %v1250
      %v1274 = vunpack.c.l.b16 %v1251
      %v1275 = vunpack.c.l.b16 %v1252
      %v1276 = vunpack.c.l.b16 %v1253
      %v1277 = vunpack.c.l.b16 %v1254
      %v1278 = vunpack.c.l.b16 %v1255
      %v1279 = vunpack.c.l.b16 %v1256
      %v1280 = vunpack.c.l.b16 %v1257
      %v1281 = vpack.c.b16 %v1274, %v1273
      %v1282 = vpack.c.b16 %v1276, %v1275
      %v1283 = vpack.c.b16 %v1278, %v1277
      %v1284 = vpack.c.b16 %v1280, %v1279
      %vm1289 = vcmask 523264
      %v1291 = vsel %vm1289, %v1249, 0
      %1293 = vmatprep.subr.bf16.mxu0 0
      %1294 = vmatpush1.bf16.msra.mxu0 %v1281
      %1295 = vmatprep.subr.bf16.mxu0 0
      %1296 = vmatpush1.bf16.msra.mxu0 %v1282
      %1297 = vmatprep.subr.bf16.mxu0 0
      %1298 = vmatpush1.bf16.msra.mxu0 %v1283
      %1299 = vmatprep.subr.bf16.mxu0 0
      %1300 = vmatpush1.bf16.msra.mxu0 %v1284
      %1301 = vmatprep.subr.bf16.mxu0 0
      %1302 = vmatpush1.bf16.msra.mxu0 0
      %1303 = vmatprep.subr.bf16.mxu0 0
      %1304 = vmatpush1.bf16.msra.mxu0 0
      %1305 = vmatprep.subr.bf16.mxu0 0
      %1306 = vmatpush1.bf16.msra.mxu0 0
      %1307 = vmatprep.subr.bf16.mxu0 0
      %1308 = vmatpush1.bf16.msra.mxu0 0
      %1309 = vmatprep.subr.bf16.mxu0 0
      %1310 = vmatpush1.bf16.msra.mxu0 0
      %1311 = vmatprep.subr.bf16.mxu0 0
      %1312 = vmatpush1.bf16.msra.mxu0 0
      %1313 = vmatprep.subr.bf16.mxu0 0
      %1314 = vmatpush1.bf16.msra.mxu0 0
      %1315 = vmatprep.subr.bf16.mxu0 0
      %1316 = vmatpush1.bf16.msra.mxu0 0
      %1317 = vmatprep.subr.bf16.mxu0 0
      %1318 = vmatpush1.bf16.msra.mxu0 0
      %1319 = vmatprep.subr.bf16.mxu0 0
      %1320 = vmatpush1.bf16.msra.mxu0 0
      %1321 = vmatprep.subr.bf16.mxu0 0
      %1322 = vmatpush1.bf16.msra.mxu0 0
      %1323 = vmatprep.subr.bf16.mxu0 0
      %1324 = vmatpush1.bf16.msra.mxu0 0
      %1325 = vmatprep.mubr.bf16.mxu0 0
      %1326 = vmatmul.mubr.bf16.gmra.mrb[0].mxu0 %v1291
      %v1327 = vpop.f32.mrb[0].mxu0
      %v1328 = vadd.f32 %v1263, %v1327
      %v1329 = vpop.f32.mrb[0].mxu0
      %v1330 = vpop.f32.mrb[0].mxu0
      %v1331 = vpop.f32.mrb[0].mxu0
      %1332 = vdwg.mxu0
      %v1333 = vadd.f32 %v1328, %v1180
      %v1334 = vld [vmem:[%s11] sm:$0x1]
      %v1335 = vld [vmem:[%s12] sm:$0x1]
      %v1336 = vsel %vm461, %v1333, 0.0
      %1337 = vadd.xlane.f32.xlu0 %v1336
      %v1338 = vpop.xlane.xlu0 %1337
      %v1339 = vmul.f32 %v1338, %v1156
      %v1340 = vsub.f32 %v1333, %v1339
      %v1341 = vmul.f32 %v1340, %v1340
      %v1342 = vsel %vm461, %v1341, 0.0
      %1343 = vadd.xlane.f32.xlu0 %v1342
      %v1344 = vpop.xlane.xlu0 %1343
      %v1345 = vmul.f32 %v1344, %v1156
      %v1346 = vadd.f32 %v1345, 1e-05
      %v1347 = vrsqrt.pop %v1346
      %v1348 = vmul.f32 %v1340, %v1347
      %v1350 = vlaneseq
      %v1351 = vshrl.u32 %v1350, 7
      %v1352 = vsub.s32 0, %v1351
      %v1353 = vrot.slane %v1334, %v1352
      %v1355 = vmul.f32 %v1348, %v1353
      %v1357 = vlaneseq
      %v1358 = vshrl.u32 %v1357, 7
      %v1359 = vsub.s32 0, %v1358
      %v1360 = vrot.slane %v1335, %v1359
      %v1362 = vadd.f32 %v1355, %v1360
      %v1363 = vpack.c.bf16 %v1362, %v1362
      %vm1364 = vcmask 257024
      %1365 = vst.msk [vmem:[%s435] sm:$0xf] %vm1364, %v1363
      %p1366 = scmp.lt.s32.totalorder %s24, 1
      %s1367 = scalar_select %p1366, %s24, 1
      %s1368 = smul.addr %s1367, 4
      %s1369 = scalar_lea.vmem %s13, %s1368
      // Predicated region
      $region73: #{_lambda_.7} parent=71 // pred_check
        %p1370 = pneg %p320
      $region74: #{_lambda_.7} parent=71 // pred_check_branch
        %1372 = sbr.rel (%p1370) target = $region76
      $region75: #{_lambda_.7} parent=71 // pred_region
        _
      $region76: #{_lambda_.7} parent=71 // pred_fallthru
        _
    $region72: #{_lambda_.7} parent=5 // pred_fallthru
      _
    %p1373 = scmp.le.s32.totalorder 2, %s19
    // Predicated region
    $region77: #{_lambda_.7} parent=5 // pred_check
      %p1374 = pneg %p1373
    $region78: #{_lambda_.7} parent=5 // pred_check_branch
      %1376 = sbr.rel (%p1374) target = $region80
    $region79: #{_lambda_.7} parent=5 // pred_region
      %s1377 = ssub.s32 %s19, 2
      // Predicated region
      $region81: #{_lambda_.7} parent=79 // pred_check
        %p1378 = pneg %p326
      $region82: #{_lambda_.7} parent=79 // pred_check_branch
        %1380 = sbr.rel (%p1378) target = $region84
      $region83: #{_lambda_.7} parent=79 // pred_region
        %p1381 = scmp.lt.s32.totalorder %s25, 1
        %s1382 = scalar_select %p1381, %s25, 1
        %s1383 = smul.addr %s1382, 4
        %s1384 = scalar_lea.vmem %s13, %s1383
      $region84: #{_lambda_.7} parent=79 // pred_fallthru
        _
    $region80: #{_lambda_.7} parent=5 // pred_fallthru
      _
  $region6: #{_lambda_.7} parent=0 // loop_footer
    %s23 = sadd.s32 1, %s19
  $region7: #{_lambda_.7} parent=0 // loop_footer_branch
    %18 = sbr.rel target = $region3
  $region8: #{_lambda_.7} parent=0 // loop_exit
    _

// kernel: _lambda_.10
$region0: #{_lambda_.10}
  #allocation0 [shape = 'u32[]', space=smem, size = 0x4, offset = 0x4, fixed_abs, tag = 'smem constant byte address 0x4 - core index']
  #allocation1 [shape = 'u32[144,128]{1,0:T(1,128)}', space=vmem, size = 0x12000, scoped, tag = 'internal scratch']
  %s0 = inlined_call_operand.vmem [shape: bf16[2,8,32], index: 0, kind: input, shape index: {}]
  %s1 = inlined_call_operand.vmem [shape: bf16[2,8,32], index: 1, kind: input, shape index: {}]
  %s2 = inlined_call_operand.vmem [shape: bf16[32,96], index: 2, kind: input, shape index: {}]
  %s3 = inlined_call_operand.vmem [shape: f32[1,96], index: 3, kind: input, shape index: {}]
  %s4 = inlined_call_operand.vmem [shape: bf16[32,32], index: 4, kind: input, shape index: {}]
  %s5 = inlined_call_operand.vmem [shape: f32[1,32], index: 5, kind: input, shape index: {}]
  %s6 = inlined_call_operand.vmem [shape: f32[1,32], index: 6, kind: input, shape index: {}]
  %s7 = inlined_call_operand.vmem [shape: f32[1,32], index: 7, kind: input, shape index: {}]
  %s8 = inlined_call_operand.vmem [shape: bf16[32,32], index: 8, kind: input, shape index: {}]
  %s9 = inlined_call_operand.vmem [shape: f32[1,32], index: 9, kind: input, shape index: {}]
  %s10 = inlined_call_operand.vmem [shape: bf16[32,64], index: 10, kind: input, shape index: {}]
  %s11 = inlined_call_operand.vmem [shape: f32[1,64], index: 11, kind: input, shape index: {}]
  %s12 = inlined_call_operand.vmem [shape: bf16[32,32], index: 12, kind: input, shape index: {}]
  %s13 = inlined_call_operand.vmem [shape: f32[1,32], index: 13, kind: input, shape index: {}]
  %s14 = inlined_call_operand.vmem [shape: f32[1,32], index: 14, kind: input, shape index: {}]
  %s15 = inlined_call_operand.vmem [shape: f32[1,32], index: 15, kind: input, shape index: {}]
  %s16 = inlined_call_operand.vmem [shape: bf16[32,64], index: 16, kind: input, shape index: {}]
  %s17 = inlined_call_operand.vmem [shape: f32[1,64], index: 17, kind: input, shape index: {}]
  %s18 = inlined_call_operand.vmem [shape: bf16[64,32], index: 18, kind: input, shape index: {}]
  %s19 = inlined_call_operand.vmem [shape: f32[1,32], index: 19, kind: input, shape index: {}]
  %s20 = inlined_call_operand.vmem [shape: f32[1,32], index: 20, kind: input, shape index: {}]
  %s21 = inlined_call_operand.vmem [shape: f32[1,32], index: 21, kind: input, shape index: {}]
  %s22 = inlined_call_operand.vmem [shape: bf16[2,8,32], index: 22, kind: output, shape index: {}]
  %s23 = sld [smem:[#allocation0]]
  $region121: #{_lambda_.10} parent=0
    _
  %s25 = ssub.s32 1, %s23
  %s26 = scalar_select 0, %s25, %s23
  loop: start=0, step=1, limit=4
  $region2: #{_lambda_.10} parent=0 // loop_pre_header
    _
  $region3: #{_lambda_.10} parent=0 // loop_header
    %s28 = sphi 0, %s32
    %p29 = scmp.ge.s32.totalorder %s28, 4
    %s38 = sphi 0, %s40
    %s41 = sphi 0, %s38
    %s42 = sphi 0, %s41
    %s58 = sphi 0, %s42
    %s64 = sphi 0, %s66
    %s67 = sphi 0, %s64
    %s68 = sphi 0, %s67
    %s84 = sphi 0, %s68
    %s88 = sphi 0, %s88
    %s90 = sphi 0, %s88
    %s91 = sphi 0, %s90
    %s105 = sphi 0, %s91
    %s109 = sphi 0, %s109
    %s111 = sphi 0, %s109
    %s112 = sphi 0, %s111
    %s126 = sphi 0, %s112
    %s130 = sphi 0, %s130
    %s132 = sphi 0, %s130
    %s133 = sphi 0, %s132
    %s147 = sphi 0, %s133
    %s151 = sphi 0, %s151
    %s153 = sphi 0, %s151
    %s154 = sphi 0, %s153
    %s168 = sphi 0, %s154
    %s172 = sphi 0, %s172
    %s174 = sphi 0, %s172
    %s175 = sphi 0, %s174
    %s189 = sphi 0, %s175
    %s193 = sphi 0, %s193
    %s195 = sphi 0, %s193
    %s196 = sphi 0, %s195
    %s210 = sphi 0, %s196
    %s214 = sphi 0, %s214
    %s216 = sphi 0, %s214
    %s217 = sphi 0, %s216
    %s231 = sphi 0, %s217
    %s235 = sphi 0, %s235
    %s237 = sphi 0, %s235
    %s238 = sphi 0, %s237
    %s252 = sphi 0, %s238
    %s256 = sphi 0, %s256
    %s258 = sphi 0, %s256
    %s259 = sphi 0, %s258
    %s273 = sphi 0, %s259
    %s277 = sphi 0, %s277
    %s279 = sphi 0, %s277
    %s280 = sphi 0, %s279
    %s294 = sphi 0, %s280
    %s298 = sphi 0, %s298
    %s300 = sphi 0, %s298
    %s301 = sphi 0, %s300
    %s315 = sphi 0, %s301
    %s319 = sphi 0, %s319
    %s321 = sphi 0, %s319
    %s322 = sphi 0, %s321
    %s336 = sphi 0, %s322
    %s340 = sphi 0, %s340
    %s342 = sphi 0, %s340
    %s343 = sphi 0, %s342
    %s357 = sphi 0, %s343
    %s361 = sphi 0, %s361
    %s363 = sphi 0, %s361
    %s364 = sphi 0, %s363
    %s378 = sphi 0, %s364
    %s382 = sphi 0, %s382
    %s384 = sphi 0, %s382
    %s385 = sphi 0, %s384
    %s399 = sphi 0, %s385
    %s403 = sphi 0, %s403
    %s405 = sphi 0, %s403
    %s406 = sphi 0, %s405
    %s420 = sphi 0, %s406
    %s424 = sphi 0, %s424
    %s426 = sphi 0, %s424
    %s427 = sphi 0, %s426
    %s441 = sphi 0, %s427
    %s445 = sphi 0, %s445
    %s447 = sphi 0, %s445
    %s448 = sphi 0, %s447
    %s462 = sphi 0, %s448
    %s466 = sphi 0, %s466
    %s468 = sphi 0, %s466
    %s469 = sphi 0, %s468
    %s483 = sphi 0, %s469
    %s487 = sphi 0, %s487
    %s489 = sphi 0, %s487
    %s490 = sphi 0, %s489
    %s504 = sphi 0, %s490
    %s510 = sphi 0, %s512
    %s513 = sphi 0, %s510
    %s514 = sphi 0, %s513
    %s530 = sphi 0, %s514
  $region4: #{_lambda_.10} parent=0 // loop_header_branch
    %31 = sbr.rel (%p29) target = $region8
  $region5: #{_lambda_.10} parent=0 // loop_body
    %s33 = ssub.s32 %s28, 1
    %s34 = ssub.s32 %s28, 2
    %s35 = sadd.s32 %s28, 1
    %s36 = ssub.s32 %s28, %s35
    %p37 = scmp.eq.s32.totalorder %s36, 0
    %s39 = sadd.s32 %s38, 1
    %s40 = scalar_select %p37, %s38, %s39
    %p43 = pneg %p37
    %p44 = scmp.eq.s32.totalorder %s28, 1
    %p45 = por %p43, %p44
    %p46 = scmp.ne.s32.totalorder %s38, %s41
    %p47 = scmp.eq.s32.totalorder %s28, 0
    %p48 = por %p46, %p47
    %p49 = scmp.ne.s32.totalorder %s38, %s41
    %p50 = scmp.eq.s32.totalorder %s33, 1
    %p51 = por %p49, %p50
    %p52 = scmp.ne.s32.totalorder %s41, %s42
    %p53 = scmp.eq.s32.totalorder %s33, 0
    %p54 = por %p52, %p53
    %p55 = scmp.ne.s32.totalorder %s41, %s42
    %p56 = scmp.eq.s32.totalorder %s34, 1
    %p57 = por %p55, %p56
    %p59 = scmp.ne.s32.totalorder %s42, %s58
    %p60 = scmp.eq.s32.totalorder %s34, 0
    %p61 = por %p59, %p60
    %s62 = ssub.s32 %s28, %s35
    %p63 = scmp.eq.s32.totalorder %s62, 0
    %s65 = sadd.s32 %s64, 1
    %s66 = scalar_select %p63, %s64, %s65
    %p69 = pneg %p63
    %p70 = scmp.eq.s32.totalorder %s28, 1
    %p71 = por %p69, %p70
    %p72 = scmp.ne.s32.totalorder %s64, %s67
    %p73 = scmp.eq.s32.totalorder %s28, 0
    %p74 = por %p72, %p73
    %p75 = scmp.ne.s32.totalorder %s64, %s67
    %p76 = scmp.eq.s32.totalorder %s33, 1
    %p77 = por %p75, %p76
    %p78 = scmp.ne.s32.totalorder %s67, %s68
    %p79 = scmp.eq.s32.totalorder %s33, 0
    %p80 = por %p78, %p79
    %p81 = scmp.ne.s32.totalorder %s67, %s68
    %p82 = scmp.eq.s32.totalorder %s34, 1
    %p83 = por %p81, %p82
    %p85 = scmp.ne.s32.totalorder %s68, %s84
    %p86 = scmp.eq.s32.totalorder %s34, 0
    %p87 = por %p85, %p86
    %s89 = sadd.s32 %s88, 1
    %p92 = scmp.eq.s32.totalorder %s28, 1
    %p93 = scmp.ne.s32.totalorder %s88, %s90
    %p94 = scmp.eq.s32.totalorder %s28, 0
    %p95 = por %p93, %p94
    %p96 = scmp.ne.s32.totalorder %s88, %s90
    %p97 = scmp.eq.s32.totalorder %s33, 1
    %p98 = por %p96, %p97
    %p99 = scmp.ne.s32.totalorder %s90, %s91
    %p100 = scmp.eq.s32.totalorder %s33, 0
    %p101 = por %p99, %p100
    %p102 = scmp.ne.s32.totalorder %s90, %s91
    %p103 = scmp.eq.s32.totalorder %s34, 1
    %p104 = por %p102, %p103
    %p106 = scmp.ne.s32.totalorder %s91, %s105
    %p107 = scmp.eq.s32.totalorder %s34, 0
    %p108 = por %p106, %p107
    %s110 = sadd.s32 %s109, 1
    %p113 = scmp.eq.s32.totalorder %s28, 1
    %p114 = scmp.ne.s32.totalorder %s109, %s111
    %p115 = scmp.eq.s32.totalorder %s28, 0
    %p116 = por %p114, %p115
    %p117 = scmp.ne.s32.totalorder %s109, %s111
    %p118 = scmp.eq.s32.totalorder %s33, 1
    %p119 = por %p117, %p118
    %p120 = scmp.ne.s32.totalorder %s111, %s112
    %p121 = scmp.eq.s32.totalorder %s33, 0
    %p122 = por %p120, %p121
    %p123 = scmp.ne.s32.totalorder %s111, %s112
    %p124 = scmp.eq.s32.totalorder %s34, 1
    %p125 = por %p123, %p124
    %p127 = scmp.ne.s32.totalorder %s112, %s126
    %p128 = scmp.eq.s32.totalorder %s34, 0
    %p129 = por %p127, %p128
    %s131 = sadd.s32 %s130, 1
    %p134 = scmp.eq.s32.totalorder %s28, 1
    %p135 = scmp.ne.s32.totalorder %s130, %s132
    %p136 = scmp.eq.s32.totalorder %s28, 0
    %p137 = por %p135, %p136
    %p138 = scmp.ne.s32.totalorder %s130, %s132
    %p139 = scmp.eq.s32.totalorder %s33, 1
    %p140 = por %p138, %p139
    %p141 = scmp.ne.s32.totalorder %s132, %s133
    %p142 = scmp.eq.s32.totalorder %s33, 0
    %p143 = por %p141, %p142
    %p144 = scmp.ne.s32.totalorder %s132, %s133
    %p145 = scmp.eq.s32.totalorder %s34, 1
    %p146 = por %p144, %p145
    %p148 = scmp.ne.s32.totalorder %s133, %s147
    %p149 = scmp.eq.s32.totalorder %s34, 0
    %p150 = por %p148, %p149
    %s152 = sadd.s32 %s151, 1
    %p155 = scmp.eq.s32.totalorder %s28, 1
    %p156 = scmp.ne.s32.totalorder %s151, %s153
    %p157 = scmp.eq.s32.totalorder %s28, 0
    %p158 = por %p156, %p157
    %p159 = scmp.ne.s32.totalorder %s151, %s153
    %p160 = scmp.eq.s32.totalorder %s33, 1
    %p161 = por %p159, %p160
    %p162 = scmp.ne.s32.totalorder %s153, %s154
    %p163 = scmp.eq.s32.totalorder %s33, 0
    %p164 = por %p162, %p163
    %p165 = scmp.ne.s32.totalorder %s153, %s154
    %p166 = scmp.eq.s32.totalorder %s34, 1
    %p167 = por %p165, %p166
    %p169 = scmp.ne.s32.totalorder %s154, %s168
    %p170 = scmp.eq.s32.totalorder %s34, 0
    %p171 = por %p169, %p170
    %s173 = sadd.s32 %s172, 1
    %p176 = scmp.eq.s32.totalorder %s28, 1
    %p177 = scmp.ne.s32.totalorder %s172, %s174
    %p178 = scmp.eq.s32.totalorder %s28, 0
    %p179 = por %p177, %p178
    %p180 = scmp.ne.s32.totalorder %s172, %s174
    %p181 = scmp.eq.s32.totalorder %s33, 1
    %p182 = por %p180, %p181
    %p183 = scmp.ne.s32.totalorder %s174, %s175
    %p184 = scmp.eq.s32.totalorder %s33, 0
    %p185 = por %p183, %p184
    %p186 = scmp.ne.s32.totalorder %s174, %s175
    %p187 = scmp.eq.s32.totalorder %s34, 1
    %p188 = por %p186, %p187
    %p190 = scmp.ne.s32.totalorder %s175, %s189
    %p191 = scmp.eq.s32.totalorder %s34, 0
    %p192 = por %p190, %p191
    %s194 = sadd.s32 %s193, 1
    %p197 = scmp.eq.s32.totalorder %s28, 1
    %p198 = scmp.ne.s32.totalorder %s193, %s195
    %p199 = scmp.eq.s32.totalorder %s28, 0
    %p200 = por %p198, %p199
    %p201 = scmp.ne.s32.totalorder %s193, %s195
    %p202 = scmp.eq.s32.totalorder %s33, 1
    %p203 = por %p201, %p202
    %p204 = scmp.ne.s32.totalorder %s195, %s196
    %p205 = scmp.eq.s32.totalorder %s33, 0
    %p206 = por %p204, %p205
    %p207 = scmp.ne.s32.totalorder %s195, %s196
    %p208 = scmp.eq.s32.totalorder %s34, 1
    %p209 = por %p207, %p208
    %p211 = scmp.ne.s32.totalorder %s196, %s210
    %p212 = scmp.eq.s32.totalorder %s34, 0
    %p213 = por %p211, %p212
    %s215 = sadd.s32 %s214, 1
    %p218 = scmp.eq.s32.totalorder %s28, 1
    %p219 = scmp.ne.s32.totalorder %s214, %s216
    %p220 = scmp.eq.s32.totalorder %s28, 0
    %p221 = por %p219, %p220
    %p222 = scmp.ne.s32.totalorder %s214, %s216
    %p223 = scmp.eq.s32.totalorder %s33, 1
    %p224 = por %p222, %p223
    %p225 = scmp.ne.s32.totalorder %s216, %s217
    %p226 = scmp.eq.s32.totalorder %s33, 0
    %p227 = por %p225, %p226
    %p228 = scmp.ne.s32.totalorder %s216, %s217
    %p229 = scmp.eq.s32.totalorder %s34, 1
    %p230 = por %p228, %p229
    %p232 = scmp.ne.s32.totalorder %s217, %s231
    %p233 = scmp.eq.s32.totalorder %s34, 0
    %p234 = por %p232, %p233
    %s236 = sadd.s32 %s235, 1
    %p239 = scmp.eq.s32.totalorder %s28, 1
    %p240 = scmp.ne.s32.totalorder %s235, %s237
    %p241 = scmp.eq.s32.totalorder %s28, 0
    %p242 = por %p240, %p241
    %p243 = scmp.ne.s32.totalorder %s235, %s237
    %p244 = scmp.eq.s32.totalorder %s33, 1
    %p245 = por %p243, %p244
    %p246 = scmp.ne.s32.totalorder %s237, %s238
    %p247 = scmp.eq.s32.totalorder %s33, 0
    %p248 = por %p246, %p247
    %p249 = scmp.ne.s32.totalorder %s237, %s238
    %p250 = scmp.eq.s32.totalorder %s34, 1
    %p251 = por %p249, %p250
    %p253 = scmp.ne.s32.totalorder %s238, %s252
    %p254 = scmp.eq.s32.totalorder %s34, 0
    %p255 = por %p253, %p254
    %s257 = sadd.s32 %s256, 1
    %p260 = scmp.eq.s32.totalorder %s28, 1
    %p261 = scmp.ne.s32.totalorder %s256, %s258
    %p262 = scmp.eq.s32.totalorder %s28, 0
    %p263 = por %p261, %p262
    %p264 = scmp.ne.s32.totalorder %s256, %s258
    %p265 = scmp.eq.s32.totalorder %s33, 1
    %p266 = por %p264, %p265
    %p267 = scmp.ne.s32.totalorder %s258, %s259
    %p268 = scmp.eq.s32.totalorder %s33, 0
    %p269 = por %p267, %p268
    %p270 = scmp.ne.s32.totalorder %s258, %s259
    %p271 = scmp.eq.s32.totalorder %s34, 1
    %p272 = por %p270, %p271
    %p274 = scmp.ne.s32.totalorder %s259, %s273
    %p275 = scmp.eq.s32.totalorder %s34, 0
    %p276 = por %p274, %p275
    %s278 = sadd.s32 %s277, 1
    %p281 = scmp.eq.s32.totalorder %s28, 1
    %p282 = scmp.ne.s32.totalorder %s277, %s279
    %p283 = scmp.eq.s32.totalorder %s28, 0
    %p284 = por %p282, %p283
    %p285 = scmp.ne.s32.totalorder %s277, %s279
    %p286 = scmp.eq.s32.totalorder %s33, 1
    %p287 = por %p285, %p286
    %p288 = scmp.ne.s32.totalorder %s279, %s280
    %p289 = scmp.eq.s32.totalorder %s33, 0
    %p290 = por %p288, %p289
    %p291 = scmp.ne.s32.totalorder %s279, %s280
    %p292 = scmp.eq.s32.totalorder %s34, 1
    %p293 = por %p291, %p292
    %p295 = scmp.ne.s32.totalorder %s280, %s294
    %p296 = scmp.eq.s32.totalorder %s34, 0
    %p297 = por %p295, %p296
    %s299 = sadd.s32 %s298, 1
    %p302 = scmp.eq.s32.totalorder %s28, 1
    %p303 = scmp.ne.s32.totalorder %s298, %s300
    %p304 = scmp.eq.s32.totalorder %s28, 0
    %p305 = por %p303, %p304
    %p306 = scmp.ne.s32.totalorder %s298, %s300
    %p307 = scmp.eq.s32.totalorder %s33, 1
    %p308 = por %p306, %p307
    %p309 = scmp.ne.s32.totalorder %s300, %s301
    %p310 = scmp.eq.s32.totalorder %s33, 0
    %p311 = por %p309, %p310
    %p312 = scmp.ne.s32.totalorder %s300, %s301
    %p313 = scmp.eq.s32.totalorder %s34, 1
    %p314 = por %p312, %p313
    %p316 = scmp.ne.s32.totalorder %s301, %s315
    %p317 = scmp.eq.s32.totalorder %s34, 0
    %p318 = por %p316, %p317
    %s320 = sadd.s32 %s319, 1
    %p323 = scmp.eq.s32.totalorder %s28, 1
    %p324 = scmp.ne.s32.totalorder %s319, %s321
    %p325 = scmp.eq.s32.totalorder %s28, 0
    %p326 = por %p324, %p325
    %p327 = scmp.ne.s32.totalorder %s319, %s321
    %p328 = scmp.eq.s32.totalorder %s33, 1
    %p329 = por %p327, %p328
    %p330 = scmp.ne.s32.totalorder %s321, %s322
    %p331 = scmp.eq.s32.totalorder %s33, 0
    %p332 = por %p330, %p331
    %p333 = scmp.ne.s32.totalorder %s321, %s322
    %p334 = scmp.eq.s32.totalorder %s34, 1
    %p335 = por %p333, %p334
    %p337 = scmp.ne.s32.totalorder %s322, %s336
    %p338 = scmp.eq.s32.totalorder %s34, 0
    %p339 = por %p337, %p338
    %s341 = sadd.s32 %s340, 1
    %p344 = scmp.eq.s32.totalorder %s28, 1
    %p345 = scmp.ne.s32.totalorder %s340, %s342
    %p346 = scmp.eq.s32.totalorder %s28, 0
    %p347 = por %p345, %p346
    %p348 = scmp.ne.s32.totalorder %s340, %s342
    %p349 = scmp.eq.s32.totalorder %s33, 1
    %p350 = por %p348, %p349
    %p351 = scmp.ne.s32.totalorder %s342, %s343
    %p352 = scmp.eq.s32.totalorder %s33, 0
    %p353 = por %p351, %p352
    %p354 = scmp.ne.s32.totalorder %s342, %s343
    %p355 = scmp.eq.s32.totalorder %s34, 1
    %p356 = por %p354, %p355
    %p358 = scmp.ne.s32.totalorder %s343, %s357
    %p359 = scmp.eq.s32.totalorder %s34, 0
    %p360 = por %p358, %p359
    %s362 = sadd.s32 %s361, 1
    %p365 = scmp.eq.s32.totalorder %s28, 1
    %p366 = scmp.ne.s32.totalorder %s361, %s363
    %p367 = scmp.eq.s32.totalorder %s28, 0
    %p368 = por %p366, %p367
    %p369 = scmp.ne.s32.totalorder %s361, %s363
    %p370 = scmp.eq.s32.totalorder %s33, 1
    %p371 = por %p369, %p370
    %p372 = scmp.ne.s32.totalorder %s363, %s364
    %p373 = scmp.eq.s32.totalorder %s33, 0
    %p374 = por %p372, %p373
    %p375 = scmp.ne.s32.totalorder %s363, %s364
    %p376 = scmp.eq.s32.totalorder %s34, 1
    %p377 = por %p375, %p376
    %p379 = scmp.ne.s32.totalorder %s364, %s378
    %p380 = scmp.eq.s32.totalorder %s34, 0
    %p381 = por %p379, %p380
    %s383 = sadd.s32 %s382, 1
    %p386 = scmp.eq.s32.totalorder %s28, 1
    %p387 = scmp.ne.s32.totalorder %s382, %s384
    %p388 = scmp.eq.s32.totalorder %s28, 0
    %p389 = por %p387, %p388
    %p390 = scmp.ne.s32.totalorder %s382, %s384
    %p391 = scmp.eq.s32.totalorder %s33, 1
    %p392 = por %p390, %p391
    %p393 = scmp.ne.s32.totalorder %s384, %s385
    %p394 = scmp.eq.s32.totalorder %s33, 0
    %p395 = por %p393, %p394
    %p396 = scmp.ne.s32.totalorder %s384, %s385
    %p397 = scmp.eq.s32.totalorder %s34, 1
    %p398 = por %p396, %p397
    %p400 = scmp.ne.s32.totalorder %s385, %s399
    %p401 = scmp.eq.s32.totalorder %s34, 0
    %p402 = por %p400, %p401
    %s404 = sadd.s32 %s403, 1
    %p407 = scmp.eq.s32.totalorder %s28, 1
    %p408 = scmp.ne.s32.totalorder %s403, %s405
    %p409 = scmp.eq.s32.totalorder %s28, 0
    %p410 = por %p408, %p409
    %p411 = scmp.ne.s32.totalorder %s403, %s405
    %p412 = scmp.eq.s32.totalorder %s33, 1
    %p413 = por %p411, %p412
    %p414 = scmp.ne.s32.totalorder %s405, %s406
    %p415 = scmp.eq.s32.totalorder %s33, 0
    %p416 = por %p414, %p415
    %p417 = scmp.ne.s32.totalorder %s405, %s406
    %p418 = scmp.eq.s32.totalorder %s34, 1
    %p419 = por %p417, %p418
    %p421 = scmp.ne.s32.totalorder %s406, %s420
    %p422 = scmp.eq.s32.totalorder %s34, 0
    %p423 = por %p421, %p422
    %s425 = sadd.s32 %s424, 1
    %p428 = scmp.eq.s32.totalorder %s28, 1
    %p429 = scmp.ne.s32.totalorder %s424, %s426
    %p430 = scmp.eq.s32.totalorder %s28, 0
    %p431 = por %p429, %p430
    %p432 = scmp.ne.s32.totalorder %s424, %s426
    %p433 = scmp.eq.s32.totalorder %s33, 1
    %p434 = por %p432, %p433
    %p435 = scmp.ne.s32.totalorder %s426, %s427
    %p436 = scmp.eq.s32.totalorder %s33, 0
    %p437 = por %p435, %p436
    %p438 = scmp.ne.s32.totalorder %s426, %s427
    %p439 = scmp.eq.s32.totalorder %s34, 1
    %p440 = por %p438, %p439
    %p442 = scmp.ne.s32.totalorder %s427, %s441
    %p443 = scmp.eq.s32.totalorder %s34, 0
    %p444 = por %p442, %p443
    %s446 = sadd.s32 %s445, 1
    %p449 = scmp.eq.s32.totalorder %s28, 1
    %p450 = scmp.ne.s32.totalorder %s445, %s447
    %p451 = scmp.eq.s32.totalorder %s28, 0
    %p452 = por %p450, %p451
    %p453 = scmp.ne.s32.totalorder %s445, %s447
    %p454 = scmp.eq.s32.totalorder %s33, 1
    %p455 = por %p453, %p454
    %p456 = scmp.ne.s32.totalorder %s447, %s448
    %p457 = scmp.eq.s32.totalorder %s33, 0
    %p458 = por %p456, %p457
    %p459 = scmp.ne.s32.totalorder %s447, %s448
    %p460 = scmp.eq.s32.totalorder %s34, 1
    %p461 = por %p459, %p460
    %p463 = scmp.ne.s32.totalorder %s448, %s462
    %p464 = scmp.eq.s32.totalorder %s34, 0
    %p465 = por %p463, %p464
    %s467 = sadd.s32 %s466, 1
    %p470 = scmp.eq.s32.totalorder %s28, 1
    %p471 = scmp.ne.s32.totalorder %s466, %s468
    %p472 = scmp.eq.s32.totalorder %s28, 0
    %p473 = por %p471, %p472
    %p474 = scmp.ne.s32.totalorder %s466, %s468
    %p475 = scmp.eq.s32.totalorder %s33, 1
    %p476 = por %p474, %p475
    %p477 = scmp.ne.s32.totalorder %s468, %s469
    %p478 = scmp.eq.s32.totalorder %s33, 0
    %p479 = por %p477, %p478
    %p480 = scmp.ne.s32.totalorder %s468, %s469
    %p481 = scmp.eq.s32.totalorder %s34, 1
    %p482 = por %p480, %p481
    %p484 = scmp.ne.s32.totalorder %s469, %s483
    %p485 = scmp.eq.s32.totalorder %s34, 0
    %p486 = por %p484, %p485
    %s488 = sadd.s32 %s487, 1
    %p491 = scmp.eq.s32.totalorder %s28, 1
    %p492 = scmp.ne.s32.totalorder %s487, %s489
    %p493 = scmp.eq.s32.totalorder %s28, 0
    %p494 = por %p492, %p493
    %p495 = scmp.ne.s32.totalorder %s487, %s489
    %p496 = scmp.eq.s32.totalorder %s33, 1
    %p497 = por %p495, %p496
    %p498 = scmp.ne.s32.totalorder %s489, %s490
    %p499 = scmp.eq.s32.totalorder %s33, 0
    %p500 = por %p498, %p499
    %p501 = scmp.ne.s32.totalorder %s489, %s490
    %p502 = scmp.eq.s32.totalorder %s34, 1
    %p503 = por %p501, %p502
    %p505 = scmp.ne.s32.totalorder %s490, %s504
    %p506 = scmp.eq.s32.totalorder %s34, 0
    %p507 = por %p505, %p506
    %s508 = ssub.s32 %s28, %s35
    %p509 = scmp.eq.s32.totalorder %s508, 0
    %s511 = sadd.s32 %s510, 1
    %s512 = scalar_select %p509, %s510, %s511
    %p515 = pneg %p509
    %p516 = scmp.eq.s32.totalorder %s28, 1
    %p517 = por %p515, %p516
    %p518 = scmp.ne.s32.totalorder %s510, %s513
    %p519 = scmp.eq.s32.totalorder %s28, 0
    %p520 = por %p518, %p519
    %p521 = scmp.ne.s32.totalorder %s510, %s513
    %p522 = scmp.eq.s32.totalorder %s33, 1
    %p523 = por %p521, %p522
    %p524 = scmp.ne.s32.totalorder %s513, %s514
    %p525 = scmp.eq.s32.totalorder %s33, 0
    %p526 = por %p524, %p525
    %p527 = scmp.ne.s32.totalorder %s513, %s514
    %p528 = scmp.eq.s32.totalorder %s34, 1
    %p529 = por %p527, %p528
    %p531 = scmp.ne.s32.totalorder %s514, %s530
    %p532 = scmp.eq.s32.totalorder %s34, 0
    %p533 = por %p531, %p532
    %p534 = scmp.le.s32.totalorder 1, %s28
    %p535 = scmp.lt.s32.totalorder %s28, 3
    %p536 = pnand %p534, %p535
    %p537 = pneg %p536
    // Predicated region
    $region9: #{_lambda_.10} parent=5 // pred_check
      _
    $region10: #{_lambda_.10} parent=5 // pred_check_branch
      %539 = sbr.rel (%p536) target = $region12
    $region11: #{_lambda_.10} parent=5 // pred_region
      %s540 = ssub.s32 %s28, 1
      // Predicated region
      $region13: #{_lambda_.10} parent=11 // pred_check
        %p541 = pneg %p101
      $region14: #{_lambda_.10} parent=11 // pred_check_branch
        %543 = sbr.rel (%p541) target = $region16
      $region15: #{_lambda_.10} parent=11 // pred_region
        _
      $region16: #{_lambda_.10} parent=11 // pred_fallthru
        _
      // Predicated region
      $region17: #{_lambda_.10} parent=11 // pred_check
        %p544 = pneg %p122
      $region18: #{_lambda_.10} parent=11 // pred_check_branch
        %546 = sbr.rel (%p544) target = $region20
      $region19: #{_lambda_.10} parent=11 // pred_region
        _
      $region20: #{_lambda_.10} parent=11 // pred_fallthru
        _
      // Predicated region
      $region21: #{_lambda_.10} parent=11 // pred_check
        %p547 = pneg %p143
      $region22: #{_lambda_.10} parent=11 // pred_check_branch
        %549 = sbr.rel (%p547) target = $region24
      $region23: #{_lambda_.10} parent=11 // pred_region
        _
      $region24: #{_lambda_.10} parent=11 // pred_fallthru
        _
      // Predicated region
      $region25: #{_lambda_.10} parent=11 // pred_check
        %p550 = pneg %p164
      $region26: #{_lambda_.10} parent=11 // pred_check_branch
        %552 = sbr.rel (%p550) target = $region28
      $region27: #{_lambda_.10} parent=11 // pred_region
        _
      $region28: #{_lambda_.10} parent=11 // pred_fallthru
        _
      // Predicated region
      $region29: #{_lambda_.10} parent=11 // pred_check
        %p553 = pneg %p185
      $region30: #{_lambda_.10} parent=11 // pred_check_branch
        %555 = sbr.rel (%p553) target = $region32
      $region31: #{_lambda_.10} parent=11 // pred_region
        _
      $region32: #{_lambda_.10} parent=11 // pred_fallthru
        _
      // Predicated region
      $region33: #{_lambda_.10} parent=11 // pred_check
        %p556 = pneg %p206
      $region34: #{_lambda_.10} parent=11 // pred_check_branch
        %558 = sbr.rel (%p556) target = $region36
      $region35: #{_lambda_.10} parent=11 // pred_region
        _
      $region36: #{_lambda_.10} parent=11 // pred_fallthru
        _
      // Predicated region
      $region37: #{_lambda_.10} parent=11 // pred_check
        %p559 = pneg %p227
      $region38: #{_lambda_.10} parent=11 // pred_check_branch
        %561 = sbr.rel (%p559) target = $region40
      $region39: #{_lambda_.10} parent=11 // pred_region
        _
      $region40: #{_lambda_.10} parent=11 // pred_fallthru
        _
      // Predicated region
      $region41: #{_lambda_.10} parent=11 // pred_check
        %p562 = pneg %p248
      $region42: #{_lambda_.10} parent=11 // pred_check_branch
        %564 = sbr.rel (%p562) target = $region44
      $region43: #{_lambda_.10} parent=11 // pred_region
        _
      $region44: #{_lambda_.10} parent=11 // pred_fallthru
        _
      // Predicated region
      $region45: #{_lambda_.10} parent=11 // pred_check
        %p565 = pneg %p269
      $region46: #{_lambda_.10} parent=11 // pred_check_branch
        %567 = sbr.rel (%p565) target = $region48
      $region47: #{_lambda_.10} parent=11 // pred_region
        _
      $region48: #{_lambda_.10} parent=11 // pred_fallthru
        _
      // Predicated region
      $region49: #{_lambda_.10} parent=11 // pred_check
        %p568 = pneg %p290
      $region50: #{_lambda_.10} parent=11 // pred_check_branch
        %570 = sbr.rel (%p568) target = $region52
      $region51: #{_lambda_.10} parent=11 // pred_region
        _
      $region52: #{_lambda_.10} parent=11 // pred_fallthru
        _
      // Predicated region
      $region53: #{_lambda_.10} parent=11 // pred_check
        %p571 = pneg %p311
      $region54: #{_lambda_.10} parent=11 // pred_check_branch
        %573 = sbr.rel (%p571) target = $region56
      $region55: #{_lambda_.10} parent=11 // pred_region
        _
      $region56: #{_lambda_.10} parent=11 // pred_fallthru
        _
      // Predicated region
      $region57: #{_lambda_.10} parent=11 // pred_check
        %p574 = pneg %p332
      $region58: #{_lambda_.10} parent=11 // pred_check_branch
        %576 = sbr.rel (%p574) target = $region60
      $region59: #{_lambda_.10} parent=11 // pred_region
        _
      $region60: #{_lambda_.10} parent=11 // pred_fallthru
        _
      // Predicated region
      $region61: #{_lambda_.10} parent=11 // pred_check
        %p577 = pneg %p353
      $region62: #{_lambda_.10} parent=11 // pred_check_branch
        %579 = sbr.rel (%p577) target = $region64
      $region63: #{_lambda_.10} parent=11 // pred_region
        _
      $region64: #{_lambda_.10} parent=11 // pred_fallthru
        _
      // Predicated region
      $region65: #{_lambda_.10} parent=11 // pred_check
        %p580 = pneg %p374
      $region66: #{_lambda_.10} parent=11 // pred_check_branch
        %582 = sbr.rel (%p580) target = $region68
      $region67: #{_lambda_.10} parent=11 // pred_region
        _
      $region68: #{_lambda_.10} parent=11 // pred_fallthru
        _
      // Predicated region
      $region69: #{_lambda_.10} parent=11 // pred_check
        %p583 = pneg %p395
      $region70: #{_lambda_.10} parent=11 // pred_check_branch
        %585 = sbr.rel (%p583) target = $region72
      $region71: #{_lambda_.10} parent=11 // pred_region
        _
      $region72: #{_lambda_.10} parent=11 // pred_fallthru
        _
      // Predicated region
      $region73: #{_lambda_.10} parent=11 // pred_check
        %p586 = pneg %p416
      $region74: #{_lambda_.10} parent=11 // pred_check_branch
        %588 = sbr.rel (%p586) target = $region76
      $region75: #{_lambda_.10} parent=11 // pred_region
        _
      $region76: #{_lambda_.10} parent=11 // pred_fallthru
        _
      // Predicated region
      $region77: #{_lambda_.10} parent=11 // pred_check
        %p589 = pneg %p437
      $region78: #{_lambda_.10} parent=11 // pred_check_branch
        %591 = sbr.rel (%p589) target = $region80
      $region79: #{_lambda_.10} parent=11 // pred_region
        _
      $region80: #{_lambda_.10} parent=11 // pred_fallthru
        _
      // Predicated region
      $region81: #{_lambda_.10} parent=11 // pred_check
        %p592 = pneg %p458
      $region82: #{_lambda_.10} parent=11 // pred_check_branch
        %594 = sbr.rel (%p592) target = $region84
      $region83: #{_lambda_.10} parent=11 // pred_region
        _
      $region84: #{_lambda_.10} parent=11 // pred_fallthru
        _
      // Predicated region
      $region85: #{_lambda_.10} parent=11 // pred_check
        %p595 = pneg %p479
      $region86: #{_lambda_.10} parent=11 // pred_check_branch
        %597 = sbr.rel (%p595) target = $region88
      $region87: #{_lambda_.10} parent=11 // pred_region
        _
      $region88: #{_lambda_.10} parent=11 // pred_fallthru
        _
      // Predicated region
      $region89: #{_lambda_.10} parent=11 // pred_check
        %p598 = pneg %p500
      $region90: #{_lambda_.10} parent=11 // pred_check_branch
        %600 = sbr.rel (%p598) target = $region92
      $region91: #{_lambda_.10} parent=11 // pred_region
        _
      $region92: #{_lambda_.10} parent=11 // pred_fallthru
        _
    $region12: #{_lambda_.10} parent=5 // pred_fallthru
      _
    %p601 = scmp.lt.s32.totalorder %s28, 2
    // Predicated region
    $region93: #{_lambda_.10} parent=5 // pred_check
      %p602 = pneg %p601
    $region94: #{_lambda_.10} parent=5 // pred_check_branch
      %604 = sbr.rel (%p602) target = $region96
    $region95: #{_lambda_.10} parent=5 // pred_region
      // Predicated region
      $region97: #{_lambda_.10} parent=95 // pred_check
        %p605 = pneg %p48
      $region98: #{_lambda_.10} parent=95 // pred_check_branch
        %607 = sbr.rel (%p605) target = $region100
      $region99: #{_lambda_.10} parent=95 // pred_region
        %p608 = scmp.lt.s32.totalorder %s28, 1
        %s609 = scalar_select %p608, %s28, 1
        %s610 = smul.addr %s609, 4
        %s611 = scalar_lea.vmem %s0, %s610
      $region100: #{_lambda_.10} parent=95 // pred_fallthru
        _
      // Predicated region
      $region101: #{_lambda_.10} parent=95 // pred_check
        %p612 = pneg %p74
      $region102: #{_lambda_.10} parent=95 // pred_check_branch
        %614 = sbr.rel (%p612) target = $region104
      $region103: #{_lambda_.10} parent=95 // pred_region
        %p615 = scmp.lt.s32.totalorder %s28, 1
        %s616 = scalar_select %p615, %s28, 1
        %s617 = smul.addr %s616, 4
        %s618 = scalar_lea.vmem %s1, %s617
      $region104: #{_lambda_.10} parent=95 // pred_fallthru
        _
    $region96: #{_lambda_.10} parent=5 // pred_fallthru
      _
    %p619 = scmp.le.s32.totalorder 1, %s28
    %p620 = scmp.lt.s32.totalorder %s28, 3
    %p621 = pnand %p619, %p620
    %p622 = pneg %p621
    // Predicated region
    $region105: #{_lambda_.10} parent=5 // pred_check
      _
    $region106: #{_lambda_.10} parent=5 // pred_check_branch
      %624 = sbr.rel (%p621) target = $region108
    $region107: #{_lambda_.10} parent=5 // pred_region
      %s625 = ssub.s32 %s28, 1
      %p626 = scmp.lt.s32.totalorder %s33, 1
      %s627 = scalar_select %p626, %s33, 1
      %s628 = smul.addr %s627, 4
      %s629 = scalar_lea.vmem %s0, %s628
      %p630 = pneg %p54
      %p631 = pneg %p51
      %p632 = scmp.lt.s32.totalorder %s33, 1
      %s633 = scalar_select %p632, %s33, 1
      %s634 = smul.addr %s633, 4
      %s635 = scalar_lea.vmem %s1, %s634
      %p636 = pneg %p80
      %p637 = pneg %p77
      %p638 = pneg %p101
      %p639 = pneg %p98
      %p640 = pneg %p122
      %p641 = pneg %p119
      %p642 = pneg %p143
      %p643 = pneg %p140
      %p644 = pneg %p164
      %p645 = pneg %p161
      %p646 = pneg %p185
      %p647 = pneg %p182
      %p648 = pneg %p206
      %p649 = pneg %p203
      %p650 = pneg %p227
      %p651 = pneg %p224
      %p652 = pneg %p248
      %p653 = pneg %p245
      %p654 = pneg %p269
      %p655 = pneg %p266
      %p656 = pneg %p290
      %p657 = pneg %p287
      %p658 = pneg %p311
      %p659 = pneg %p308
      %p660 = pneg %p332
      %p661 = pneg %p329
      %p662 = pneg %p353
      %p663 = pneg %p350
      %p664 = pneg %p374
      %p665 = pneg %p371
      %p666 = pneg %p395
      %p667 = pneg %p392
      %p668 = pneg %p416
      %p669 = pneg %p413
      %p670 = pneg %p437
      %p671 = pneg %p434
      %p672 = pneg %p458
      %p673 = pneg %p455
      %p674 = pneg %p479
      %p675 = pneg %p476
      %p676 = pneg %p500
      %p677 = pneg %p497
      %p678 = pneg %p526
      %p679 = pneg %p523
      %p680 = scmp.lt.s32.totalorder %s33, 1
      %s681 = scalar_select %p680, %s33, 1
      %s682 = smul.addr %s681, 4
      %s683 = scalar_lea.vmem %s22, %s682
      %p684 = scmp.lt.s32.totalorder %s33, 1
      %s685 = scalar_select %p684, %s33, 1
      %s686 = smul.addr %s685, 4
      %s687 = scalar_lea.vmem %s0, %s686
      %p688 = scmp.lt.s32.totalorder %s33, 1
      %s689 = scalar_select %p688, %s33, 1
      %s690 = smul.addr %s689, 4
      %s691 = scalar_lea.vmem %s1, %s690
      %p692 = scmp.lt.s32.totalorder %s33, 1
      %s693 = scalar_select %p692, %s33, 1
      %s694 = smul.addr %s693, 4
      %s695 = scalar_lea.vmem %s22, %s694
      %v697 = vld [vmem:[%s687] sm:$0xf]
      %v698 = vld [vmem:[%s691] sm:$0xf]
      %v699 = vld [vmem:[%s2] sm:$0xf]
      %v700 = vld [vmem:[%s2 + $0x4] sm:$0xf]
      %v701 = vld [vmem:[%s2 + $0x8] sm:$0xf]
      %v702 = vld [vmem:[%s2 + $0xc] sm:$0xf]
      %v703 = vld [vmem:[%s3] sm:$0x1]
      %v705 = vlaneseq
      %v706 = vshrl.u32 %v705, 7
      %v707 = vsub.s32 0, %v706
      %v708 = vrot.slane %v703, %v707
      %v714 = vunpack.c.l.b16 %v699
      %v715 = vunpack.c.l.b16 %v700
      %v716 = vunpack.c.l.b16 %v701
      %v717 = vunpack.c.l.b16 %v702
      %v718 = vpack.c.b16 %v715, %v714
      %v719 = vpack.c.b16 %v717, %v716
      %vm722 = vcmask 261120
      %v724 = vsel %vm722, %v697, 0
      %726 = vmatprep.subr.bf16.mxu0 0
      %727 = vmatpush1.bf16.msra.mxu0 %v718
      %728 = vmatprep.subr.bf16.mxu0 0
      %729 = vmatpush1.bf16.msra.mxu0 %v719
      %730 = vmatprep.subr.bf16.mxu0 0
      %731 = vmatpush1.bf16.msra.mxu0 0
      %732 = vmatprep.subr.bf16.mxu0 0
      %733 = vmatpush1.bf16.msra.mxu0 0
      %734 = vmatprep.subr.bf16.mxu0 0
      %735 = vmatpush1.bf16.msra.mxu0 0
      %736 = vmatprep.subr.bf16.mxu0 0
      %737 = vmatpush1.bf16.msra.mxu0 0
      %738 = vmatprep.subr.bf16.mxu0 0
      %739 = vmatpush1.bf16.msra.mxu0 0
      %740 = vmatprep.subr.bf16.mxu0 0
      %741 = vmatpush1.bf16.msra.mxu0 0
      %742 = vmatprep.subr.bf16.mxu0 0
      %743 = vmatpush1.bf16.msra.mxu0 0
      %744 = vmatprep.subr.bf16.mxu0 0
      %745 = vmatpush1.bf16.msra.mxu0 0
      %746 = vmatprep.subr.bf16.mxu0 0
      %747 = vmatpush1.bf16.msra.mxu0 0
      %748 = vmatprep.subr.bf16.mxu0 0
      %749 = vmatpush1.bf16.msra.mxu0 0
      %750 = vmatprep.subr.bf16.mxu0 0
      %751 = vmatpush1.bf16.msra.mxu0 0
      %752 = vmatprep.subr.bf16.mxu0 0
      %753 = vmatpush1.bf16.msra.mxu0 0
      %754 = vmatprep.subr.bf16.mxu0 0
      %755 = vmatpush1.bf16.msra.mxu0 0
      %756 = vmatprep.subr.bf16.mxu0 0
      %757 = vmatpush1.bf16.msra.mxu0 0
      %758 = vmatprep.mubr.bf16.mxu0 0
      %759 = vmatmul.mubr.bf16.gmra.mrb[0].mxu0 %v724
      %v760 = vpop.f32.mrb[0].mxu0
      %v761 = vadd.f32 %v708, %v760
      %v762 = vpop.f32.mrb[0].mxu0
      %v763 = vpop.f32.mrb[0].mxu0
      %v764 = vpop.f32.mrb[0].mxu0
      %765 = vdwg.mxu0
      %v766 = vpack.c.bf16 %v761, %v761
      %768 = vrot.lane.b32.xlu0 %v766, 96
      %v769 = vpop.permute.xlu0 %768
      %vm770 = vcmask 64512
      %v772 = vsel %vm770, %v766, 0
      %v775 = vsel %vm770, %v769, 0
      %777 = vmatprep.subr.bf16.mxu0 0
      %778 = vmatpush1.bf16.xpose.msra.mxu0 %v775
      %779 = vmatprep.subr.bf16.mxu0 0
      %780 = vmatpush1.bf16.xpose.msra.mxu0 0
      %781 = vmatprep.subr.bf16.mxu0 0
      %782 = vmatpush1.bf16.xpose.msra.mxu0 0
      %783 = vmatprep.subr.bf16.mxu0 0
      %784 = vmatpush1.bf16.xpose.msra.mxu0 0
      %785 = vmatprep.subr.bf16.mxu0 0
      %786 = vmatpush1.bf16.xpose.msra.mxu0 0
      %787 = vmatprep.subr.bf16.mxu0 0
      %788 = vmatpush1.bf16.xpose.msra.mxu0 0
      %789 = vmatprep.subr.bf16.mxu0 0
      %790 = vmatpush1.bf16.xpose.msra.mxu0 0
      %791 = vmatprep.subr.bf16.mxu0 0
      %792 = vmatpush1.bf16.xpose.msra.mxu0 0
      %793 = vmatprep.subr.bf16.mxu0 0
      %794 = vmatpush1.bf16.xpose.msra.mxu0 0
      %795 = vmatprep.subr.bf16.mxu0 0
      %796 = vmatpush1.bf16.xpose.msra.mxu0 0
      %797 = vmatprep.subr.bf16.mxu0 0
      %798 = vmatpush1.bf16.xpose.msra.mxu0 0
      %799 = vmatprep.subr.bf16.mxu0 0
      %800 = vmatpush1.bf16.xpose.msra.mxu0 0
      %801 = vmatprep.subr.bf16.mxu0 0
      %802 = vmatpush1.bf16.xpose.msra.mxu0 0
      %803 = vmatprep.subr.bf16.mxu0 0
      %804 = vmatpush1.bf16.xpose.msra.mxu0 0
      %805 = vmatprep.subr.bf16.mxu0 0
      %806 = vmatpush1.bf16.xpose.msra.mxu0 0
      %807 = vmatprep.subr.bf16.mxu0 0
      %808 = vmatpush1.bf16.xpose.msra.mxu0 0
      %809 = vmatprep.mubr.bf16.mxu0 0
      %810 = vmatmul.mubr.bf16.gmra.mrb[0].mxu0 %v772
      %v811 = vpop.f32.mrb[0].mxu0
      %v812 = vadd.f32 0.0, %v811
      %v813 = vpop.f32.mrb[0].mxu0
      %v814 = vpop.f32.mrb[0].mxu0
      %v815 = vpop.f32.mrb[0].mxu0
      %816 = vdwg.mxu0
      %v817 = vsel %vm770, %v812, -inf
      %818 = vmax.xlane.f32.xlu0 %v817
      %v819 = vpop.xlane.xlu0 %818
      %v820 = vsub.f32 %v812, %v819
      %v821 = vmul.f32 %v820, 1.442695
      %v822 = vpow.pop %v821
      %v823 = vsel %vm770, %v822, 0.0
      %824 = vadd.xlane.f32.xlu0 %v823
      %v825 = vpop.xlane.xlu0 %824
      %v826 = vrcp.pop %v825
      %v827 = vmul.f32 %v822, %v826
      %v828 = vpack.c.bf16 %v827, %v827
      %829 = vrot.lane.b32.xlu0 %v766, 64
      %v830 = vpop.permute.xlu0 %829
      %v832 = vsel %vm770, %v828, 0
      %vm834 = vcmask 1043456
      %v836 = vsel %vm834, %v830, 0
      %838 = vmatprep.subr.bf16.mxu0 0
      %839 = vmatpush1.bf16.msra.mxu0 %v836
      %840 = vmatprep.subr.bf16.mxu0 0
      %841 = vmatpush1.bf16.msra.mxu0 0
      %842 = vmatprep.subr.bf16.mxu0 0
      %843 = vmatpush1.bf16.msra.mxu0 0
      %844 = vmatprep.subr.bf16.mxu0 0
      %845 = vmatpush1.bf16.msra.mxu0 0
      %846 = vmatprep.subr.bf16.mxu0 0
      %847 = vmatpush1.bf16.msra.mxu0 0
      %848 = vmatprep.subr.bf16.mxu0 0
      %849 = vmatpush1.bf16.msra.mxu0 0
      %850 = vmatprep.subr.bf16.mxu0 0
      %851 = vmatpush1.bf16.msra.mxu0 0
      %852 = vmatprep.subr.bf16.mxu0 0
      %853 = vmatpush1.bf16.msra.mxu0 0
      %854 = vmatprep.subr.bf16.mxu0 0
      %855 = vmatpush1.bf16.msra.mxu0 0
      %856 = vmatprep.subr.bf16.mxu0 0
      %857 = vmatpush1.bf16.msra.mxu0 0
      %858 = vmatprep.subr.bf16.mxu0 0
      %859 = vmatpush1.bf16.msra.mxu0 0
      %860 = vmatprep.subr.bf16.mxu0 0
      %861 = vmatpush1.bf16.msra.mxu0 0
      %862 = vmatprep.subr.bf16.mxu0 0
      %863 = vmatpush1.bf16.msra.mxu0 0
      %864 = vmatprep.subr.bf16.mxu0 0
      %865 = vmatpush1.bf16.msra.mxu0 0
      %866 = vmatprep.subr.bf16.mxu0 0
      %867 = vmatpush1.bf16.msra.mxu0 0
      %868 = vmatprep.subr.bf16.mxu0 0
      %869 = vmatpush1.bf16.msra.mxu0 0
      %870 = vmatprep.mubr.bf16.mxu0 0
      %871 = vmatmul.mubr.bf16.gmra.mrb[0].mxu0 %v832
      %v872 = vpop.f32.mrb[0].mxu0
      %v873 = vadd.f32 0.0, %v872
      %v874 = vpop.f32.mrb[0].mxu0
      %v875 = vpop.f32.mrb[0].mxu0
      %v876 = vpop.f32.mrb[0].mxu0
      %877 = vdwg.mxu0
      %v878 = vpack.c.bf16 %v873, %v873
      %v879 = vld [vmem:[%s4] sm:$0xf]
      %880 = vrot.lane.b32.xlu0 %v766, 120
      %v881 = vpop.permute.xlu0 %880
      %882 = vrot.lane.b32.xlu0 %v766, 88
      %v883 = vpop.permute.xlu0 %882
      %v885 = vsel %vm770, %v881, 0
      %v888 = vsel %vm770, %v883, 0
      %890 = vmatprep.subr.bf16.mxu0 0
      %891 = vmatpush1.bf16.xpose.msra.mxu0 %v888
      %892 = vmatprep.subr.bf16.mxu0 0
      %893 = vmatpush1.bf16.xpose.msra.mxu0 0
      %894 = vmatprep.subr.bf16.mxu0 0
      %895 = vmatpush1.bf16.xpose.msra.mxu0 0
      %896 = vmatprep.subr.bf16.mxu0 0
      %897 = vmatpush1.bf16.xpose.msra.mxu0 0
      %898 = vmatprep.subr.bf16.mxu0 0
      %899 = vmatpush1.bf16.xpose.msra.mxu0 0
      %900 = vmatprep.subr.bf16.mxu0 0
      %901 = vmatpush1.bf16.xpose.msra.mxu0 0
      %902 = vmatprep.subr.bf16.mxu0 0
      %903 = vmatpush1.bf16.xpose.msra.mxu0 0
      %904 = vmatprep.subr.bf16.mxu0 0
      %905 = vmatpush1.bf16.xpose.msra.mxu0 0
      %906 = vmatprep.subr.bf16.mxu0 0
      %907 = vmatpush1.bf16.xpose.msra.mxu0 0
      %908 = vmatprep.subr.bf16.mxu0 0
      %909 = vmatpush1.bf16.xpose.msra.mxu0 0
      %910 = vmatprep.subr.bf16.mxu0 0
      %911 = vmatpush1.bf16.xpose.msra.mxu0 0
      %912 = vmatprep.subr.bf16.mxu0 0
      %913 = vmatpush1.bf16.xpose.msra.mxu0 0
      %914 = vmatprep.subr.bf16.mxu0 0
      %915 = vmatpush1.bf16.xpose.msra.mxu0 0
      %916 = vmatprep.subr.bf16.mxu0 0
      %917 = vmatpush1.bf16.xpose.msra.mxu0 0
      %918 = vmatprep.subr.bf16.mxu0 0
      %919 = vmatpush1.bf16.xpose.msra.mxu0 0
      %920 = vmatprep.subr.bf16.mxu0 0
      %921 = vmatpush1.bf16.xpose.msra.mxu0 0
      %922 = vmatprep.mubr.bf16.mxu0 0
      %923 = vmatmul.mubr.bf16.gmra.mrb[0].mxu0 %v885
      %v924 = vpop.f32.mrb[0].mxu0
      %v925 = vadd.f32 0.0, %v924
      %v926 = vpop.f32.mrb[0].mxu0
      %v927 = vpop.f32.mrb[0].mxu0
      %v928 = vpop.f32.mrb[0].mxu0
      %929 = vdwg.mxu0
      %v930 = vsel %vm770, %v925, -inf
      %931 = vmax.xlane.f32.xlu0 %v930
      %v932 = vpop.xlane.xlu0 %931
      %v933 = vsub.f32 %v925, %v932
      %v934 = vmul.f32 %v933, 1.442695
      %v935 = vpow.pop %v934
      %v936 = vsel %vm770, %v935, 0.0
      %937 = vadd.xlane.f32.xlu0 %v936
      %v938 = vpop.xlane.xlu0 %937
      %v939 = vrcp.pop %v938
      %v940 = vmul.f32 %v935, %v939
      %v941 = vpack.c.bf16 %v940, %v940
      %942 = vrot.lane.b32.xlu0 %v766, 56
      %v943 = vpop.permute.xlu0 %942
      %v945 = vsel %vm770, %v941, 0
      %v948 = vsel %vm834, %v943, 0
      %950 = vmatprep.subr.bf16.mxu0 0
      %951 = vmatpush1.bf16.msra.mxu0 %v948
      %952 = vmatprep.subr.bf16.mxu0 0
      %953 = vmatpush1.bf16.msra.mxu0 0
      %954 = vmatprep.subr.bf16.mxu0 0
      %955 = vmatpush1.bf16.msra.mxu0 0
      %956 = vmatprep.subr.bf16.mxu0 0
      %957 = vmatpush1.bf16.msra.mxu0 0
      %958 = vmatprep.subr.bf16.mxu0 0
      %959 = vmatpush1.bf16.msra.mxu0 0
      %960 = vmatprep.subr.bf16.mxu0 0
      %961 = vmatpush1.bf16.msra.mxu0 0
      %962 = vmatprep.subr.bf16.mxu0 0
      %963 = vmatpush1.bf16.msra.mxu0 0
      %964 = vmatprep.subr.bf16.mxu0 0
      %965 = vmatpush1.bf16.msra.mxu0 0
      %966 = vmatprep.subr.bf16.mxu0 0
      %967 = vmatpush1.bf16.msra.mxu0 0
      %968 = vmatprep.subr.bf16.mxu0 0
      %969 = vmatpush1.bf16.msra.mxu0 0
      %970 = vmatprep.subr.bf16.mxu0 0
      %971 = vmatpush1.bf16.msra.mxu0 0
      %972 = vmatprep.subr.bf16.mxu0 0
      %973 = vmatpush1.bf16.msra.mxu0 0
      %974 = vmatprep.subr.bf16.mxu0 0
      %975 = vmatpush1.bf16.msra.mxu0 0
      %976 = vmatprep.subr.bf16.mxu0 0
      %977 = vmatpush1.bf16.msra.mxu0 0
      %978 = vmatprep.subr.bf16.mxu0 0
      %979 = vmatpush1.bf16.msra.mxu0 0
      %980 = vmatprep.subr.bf16.mxu0 0
      %981 = vmatpush1.bf16.msra.mxu0 0
      %982 = vmatprep.mubr.bf16.mxu0 0
      %983 = vmatmul.mubr.bf16.gmra.mrb[0].mxu0 %v945
      %v984 = vpop.f32.mrb[0].mxu0
      %v985 = vadd.f32 0.0, %v984
      %v986 = vpop.f32.mrb[0].mxu0
      %v987 = vpop.f32.mrb[0].mxu0
      %v988 = vpop.f32.mrb[0].mxu0
      %989 = vdwg.mxu0
      %v990 = vpack.c.bf16 %v985, %v985
      %v991 = vld [vmem:[%s4 + $0x4] sm:$0xf]
      %v993 = vsel %vm770, %v990, 0
      %v996 = vsel %vm834, %v991, 0
      %998 = vmatprep.subr.bf16.mxu0 0
      %999 = vmatpush1.bf16.msra.mxu0 %v996
      %1000 = vmatprep.subr.bf16.mxu0 0
      %1001 = vmatpush1.bf16.msra.mxu0 0
      %1002 = vmatprep.subr.bf16.mxu0 0
      %1003 = vmatpush1.bf16.msra.mxu0 0
      %1004 = vmatprep.subr.bf16.mxu0 0
      %1005 = vmatpush1.bf16.msra.mxu0 0
      %1006 = vmatprep.subr.bf16.mxu0 0
      %1007 = vmatpush1.bf16.msra.mxu0 0
      %1008 = vmatprep.subr.bf16.mxu0 0
      %1009 = vmatpush1.bf16.msra.mxu0 0
      %1010 = vmatprep.subr.bf16.mxu0 0
      %1011 = vmatpush1.bf16.msra.mxu0 0
      %1012 = vmatprep.subr.bf16.mxu0 0
      %1013 = vmatpush1.bf16.msra.mxu0 0
      %1014 = vmatprep.subr.bf16.mxu0 0
      %1015 = vmatpush1.bf16.msra.mxu0 0
      %1016 = vmatprep.subr.bf16.mxu0 0
      %1017 = vmatpush1.bf16.msra.mxu0 0
      %1018 = vmatprep.subr.bf16.mxu0 0
      %1019 = vmatpush1.bf16.msra.mxu0 0
      %1020 = vmatprep.subr.bf16.mxu0 0
      %1021 = vmatpush1.bf16.msra.mxu0 0
      %1022 = vmatprep.subr.bf16.mxu0 0
      %1023 = vmatpush1.bf16.msra.mxu0 0
      %1024 = vmatprep.subr.bf16.mxu0 0
      %1025 = vmatpush1.bf16.msra.mxu0 0
      %1026 = vmatprep.subr.bf16.mxu0 0
      %1027 = vmatpush1.bf16.msra.mxu0 0
      %1028 = vmatprep.subr.bf16.mxu0 0
      %1029 = vmatpush1.bf16.msra.mxu0 0
      %1030 = vmatprep.mubr.bf16.mxu0 0
      %1031 = vmatmul.mubr.bf16.gmra.mrb[0].mxu0 %v993
      %v1032 = vpop.f32.mrb[0].mxu0
      %v1033 = vadd.f32 0.0, %v1032
      %v1034 = vpop.f32.mrb[0].mxu0
      %v1035 = vpop.f32.mrb[0].mxu0
      %v1036 = vpop.f32.mrb[0].mxu0
      %1037 = vdwg.mxu0
      %v1039 = vsel %vm770, %v878, 0
      %v1042 = vsel %vm834, %v879, 0
      %1044 = vmatprep.subr.bf16.mxu0 0
      %1045 = vmatpush1.bf16.msra.mxu0 %v1042
      %1046 = vmatprep.subr.bf16.mxu0 0
      %1047 = vmatpush1.bf16.msra.mxu0 0
      %1048 = vmatprep.subr.bf16.mxu0 0
      %1049 = vmatpush1.bf16.msra.mxu0 0
      %1050 = vmatprep.subr.bf16.mxu0 0
      %1051 = vmatpush1.bf16.msra.mxu0 0
      %1052 = vmatprep.subr.bf16.mxu0 0
      %1053 = vmatpush1.bf16.msra.mxu0 0
      %1054 = vmatprep.subr.bf16.mxu0 0
      %1055 = vmatpush1.bf16.msra.mxu0 0
      %1056 = vmatprep.subr.bf16.mxu0 0
      %1057 = vmatpush1.bf16.msra.mxu0 0
      %1058 = vmatprep.subr.bf16.mxu0 0
      %1059 = vmatpush1.bf16.msra.mxu0 0
      %1060 = vmatprep.subr.bf16.mxu0 0
      %1061 = vmatpush1.bf16.msra.mxu0 0
      %1062 = vmatprep.subr.bf16.mxu0 0
      %1063 = vmatpush1.bf16.msra.mxu0 0
      %1064 = vmatprep.subr.bf16.mxu0 0
      %1065 = vmatpush1.bf16.msra.mxu0 0
      %1066 = vmatprep.subr.bf16.mxu0 0
      %1067 = vmatpush1.bf16.msra.mxu0 0
      %1068 = vmatprep.subr.bf16.mxu0 0
      %1069 = vmatpush1.bf16.msra.mxu0 0
      %1070 = vmatprep.subr.bf16.mxu0 0
      %1071 = vmatpush1.bf16.msra.mxu0 0
      %1072 = vmatprep.subr.bf16.mxu0 0
      %1073 = vmatpush1.bf16.msra.mxu0 0
      %1074 = vmatprep.subr.bf16.mxu0 0
      %1075 = vmatpush1.bf16.msra.mxu0 0
      %1076 = vmatprep.mubr.bf16.mxu0 0
      %1077 = vmatmul.mubr.bf16.gmra.mrb[0].mxu0 %v1039
      %v1078 = vpop.f32.mrb[0].mxu0
      %v1079 = vadd.f32 %v1033, %v1078
      %v1080 = vpop.f32.mrb[0].mxu0
      %v1081 = vpop.f32.mrb[0].mxu0
      %v1082 = vpop.f32.mrb[0].mxu0
      %1083 = vdwg.mxu0
      %1084 = vrot.lane.b32.xlu0 %v766, 112
      %v1085 = vpop.permute.xlu0 %1084
      %1086 = vrot.lane.b32.xlu0 %v766, 80
      %v1087 = vpop.permute.xlu0 %1086
      %v1089 = vsel %vm770, %v1085, 0
      %v1092 = vsel %vm770, %v1087, 0
      %1094 = vmatprep.subr.bf16.mxu0 0
      %1095 = vmatpush1.bf16.xpose.msra.mxu0 %v1092
      %1096 = vmatprep.subr.bf16.mxu0 0
      %1097 = vmatpush1.bf16.xpose.msra.mxu0 0
      %1098 = vmatprep.subr.bf16.mxu0 0
      %1099 = vmatpush1.bf16.xpose.msra.mxu0 0
      %1100 = vmatprep.subr.bf16.mxu0 0
      %1101 = vmatpush1.bf16.xpose.msra.mxu0 0
      %1102 = vmatprep.subr.bf16.mxu0 0
      %1103 = vmatpush1.bf16.xpose.msra.mxu0 0
      %1104 = vmatprep.subr.bf16.mxu0 0
      %1105 = vmatpush1.bf16.xpose.msra.mxu0 0
      %1106 = vmatprep.subr.bf16.mxu0 0
      %1107 = vmatpush1.bf16.xpose.msra.mxu0 0
      %1108 = vmatprep.subr.bf16.mxu0 0
      %1109 = vmatpush1.bf16.xpose.msra.mxu0 0
      %1110 = vmatprep.subr.bf16.mxu0 0
      %1111 = vmatpush1.bf16.xpose.msra.mxu0 0
      %1112 = vmatprep.subr.bf16.mxu0 0
      %1113 = vmatpush1.bf16.xpose.msra.mxu0 0
      %1114 = vmatprep.subr.bf16.mxu0 0
      %1115 = vmatpush1.bf16.xpose.msra.mxu0 0
      %1116 = vmatprep.subr.bf16.mxu0 0
      %1117 = vmatpush1.bf16.xpose.msra.mxu0 0
      %1118 = vmatprep.subr.bf16.mxu0 0
      %1119 = vmatpush1.bf16.xpose.msra.mxu0 0
      %1120 = vmatprep.subr.bf16.mxu0 0
      %1121 = vmatpush1.bf16.xpose.msra.mxu0 0
      %1122 = vmatprep.subr.bf16.mxu0 0
      %1123 = vmatpush1.bf16.xpose.msra.mxu0 0
      %1124 = vmatprep.subr.bf16.mxu0 0
      %1125 = vmatpush1.bf16.xpose.msra.mxu0 0
      %1126 = vmatprep.mubr.bf16.mxu0 0
      %1127 = vmatmul.mubr.bf16.gmra.mrb[0].mxu0 %v1089
      %v1128 = vpop.f32.mrb[0].mxu0
      %v1129 = vadd.f32 0.0, %v1128
      %v1130 = vpop.f32.mrb[0].mxu0
      %v1131 = vpop.f32.mrb[0].mxu0
      %v1132 = vpop.f32.mrb[0].mxu0
      %1133 = vdwg.mxu0
      %v1134 = vsel %vm770, %v1129, -inf
      %1135 = vmax.xlane.f32.xlu0 %v1134
      %v1136 = vpop.xlane.xlu0 %1135
      %v1137 = vsub.f32 %v1129, %v1136
      %v1138 = vmul.f32 %v1137, 1.442695
      %v1139 = vpow.pop %v1138
      %v1140 = vsel %vm770, %v1139, 0.0
      %1141 = vadd.xlane.f32.xlu0 %v1140
      %v1142 = vpop.xlane.xlu0 %1141
      %v1143 = vrcp.pop %v1142
      %v1144 = vmul.f32 %v1139, %v1143
      %v1145 = vpack.c.bf16 %v1144, %v1144
      %1146 = vrot.lane.b32.xlu0 %v766, 48
      %v1147 = vpop.permute.xlu0 %1146
      %v1149 = vsel %vm770, %v1145, 0
      %v1152 = vsel %vm834, %v1147, 0
      %1154 = vmatprep.subr.bf16.mxu0 0
      %1155 = vmatpush1.bf16.msra.mxu0 %v1152
      %1156 = vmatprep.subr.bf16.mxu0 0
      %1157 = vmatpush1.bf16.msra.mxu0 0
      %1158 = vmatprep.subr.bf16.mxu0 0
      %1159 = vmatpush1.bf16.msra.mxu0 0
      %1160 = vmatprep.subr.bf16.mxu0 0
      %1161 = vmatpush1.bf16.msra.mxu0 0
      %1162 = vmatprep.subr.bf16.mxu0 0
      %1163 = vmatpush1.bf16.msra.mxu0 0
      %1164 = vmatprep.subr.bf16.mxu0 0
      %1165 = vmatpush1.bf16.msra.mxu0 0
      %1166 = vmatprep.subr.bf16.mxu0 0
      %1167 = vmatpush1.bf16.msra.mxu0 0
      %1168 = vmatprep.subr.bf16.mxu0 0
      %1169 = vmatpush1.bf16.msra.mxu0 0
      %1170 = vmatprep.subr.bf16.mxu0 0
      %1171 = vmatpush1.bf16.msra.mxu0 0
      %1172 = vmatprep.subr.bf16.mxu0 0
      %1173 = vmatpush1.bf16.msra.mxu0 0
      %1174 = vmatprep.subr.bf16.mxu0 0
      %1175 = vmatpush1.bf16.msra.mxu0 0
      %1176 = vmatprep.subr.bf16.mxu0 0
      %1177 = vmatpush1.bf16.msra.mxu0 0
      %1178 = vmatprep.subr.bf16.mxu0 0
      %1179 = vmatpush1.bf16.msra.mxu0 0
      %1180 = vmatprep.subr.bf16.mxu0 0
      %1181 = vmatpush1.bf16.msra.mxu0 0
      %1182 = vmatprep.subr.bf16.mxu0 0
      %1183 = vmatpush1.bf16.msra.mxu0 0
      %1184 = vmatprep.subr.bf16.mxu0 0
      %1185 = vmatpush1.bf16.msra.mxu0 0
      %1186 = vmatprep.mubr.bf16.mxu0 0
      %1187 = vmatmul.mubr.bf16.gmra.mrb[0].mxu0 %v1149
      %v1188 = vpop.f32.mrb[0].mxu0
      %v1189 = vadd.f32 0.0, %v1188
      %v1190 = vpop.f32.mrb[0].mxu0
      %v1191 = vpop.f32.mrb[0].mxu0
      %v1192 = vpop.f32.mrb[0].mxu0
      %1193 = vdwg.mxu0
      %v1194 = vpack.c.bf16 %v1189, %v1189
      %v1195 = vld [vmem:[%s4 + $0x8] sm:$0xf]
      %v1197 = vsel %vm770, %v1194, 0
      %v1200 = vsel %vm834, %v1195, 0
      %1202 = vmatprep.subr.bf16.mxu0 0
      %1203 = vmatpush1.bf16.msra.mxu0 %v1200
      %1204 = vmatprep.subr.bf16.mxu0 0
      %1205 = vmatpush1.bf16.msra.mxu0 0
      %1206 = vmatprep.subr.bf16.mxu0 0
      %1207 = vmatpush1.bf16.msra.mxu0 0
      %1208 = vmatprep.subr.bf16.mxu0 0
      %1209 = vmatpush1.bf16.msra.mxu0 0
      %1210 = vmatprep.subr.bf16.mxu0 0
      %1211 = vmatpush1.bf16.msra.mxu0 0
      %1212 = vmatprep.subr.bf16.mxu0 0
      %1213 = vmatpush1.bf16.msra.mxu0 0
      %1214 = vmatprep.subr.bf16.mxu0 0
      %1215 = vmatpush1.bf16.msra.mxu0 0
      %1216 = vmatprep.subr.bf16.mxu0 0
      %1217 = vmatpush1.bf16.msra.mxu0 0
      %1218 = vmatprep.subr.bf16.mxu0 0
      %1219 = vmatpush1.bf16.msra.mxu0 0
      %1220 = vmatprep.subr.bf16.mxu0 0
      %1221 = vmatpush1.bf16.msra.mxu0 0
      %1222 = vmatprep.subr.bf16.mxu0 0
      %1223 = vmatpush1.bf16.msra.mxu0 0
      %1224 = vmatprep.subr.bf16.mxu0 0
      %1225 = vmatpush1.bf16.msra.mxu0 0
      %1226 = vmatprep.subr.bf16.mxu0 0
      %1227 = vmatpush1.bf16.msra.mxu0 0
      %1228 = vmatprep.subr.bf16.mxu0 0
      %1229 = vmatpush1.bf16.msra.mxu0 0
      %1230 = vmatprep.subr.bf16.mxu0 0
      %1231 = vmatpush1.bf16.msra.mxu0 0
      %1232 = vmatprep.subr.bf16.mxu0 0
      %1233 = vmatpush1.bf16.msra.mxu0 0
      %1234 = vmatprep.mubr.bf16.mxu0 0
      %1235 = vmatmul.mubr.bf16.gmra.mrb[0].mxu0 %v1197
      %v1236 = vpop.f32.mrb[0].mxu0
      %v1237 = vadd.f32 0.0, %v1236
      %v1238 = vpop.f32.mrb[0].mxu0
      %v1239 = vpop.f32.mrb[0].mxu0
      %v1240 = vpop.f32.mrb[0].mxu0
      %1241 = vdwg.mxu0
      %v1242 = vadd.f32 %v1079, %v1237
      %1243 = vrot.lane.b32.xlu0 %v766, 104
      %v1244 = vpop.permute.xlu0 %1243
      %1245 = vrot.lane.b32.xlu0 %v766, 72
      %v1246 = vpop.permute.xlu0 %1245
      %v1248 = vsel %vm770, %v1244, 0
      %v1251 = vsel %vm770, %v1246, 0
      %1253 = vmatprep.subr.bf16.mxu0 0
      %1254 = vmatpush1.bf16.xpose.msra.mxu0 %v1251
      %1255 = vmatprep.subr.bf16.mxu0 0
      %1256 = vmatpush1.bf16.xpose.msra.mxu0 0
      %1257 = vmatprep.subr.bf16.mxu0 0
      %1258 = vmatpush1.bf16.xpose.msra.mxu0 0
      %1259 = vmatprep.subr.bf16.mxu0 0
      %1260 = vmatpush1.bf16.xpose.msra.mxu0 0
      %1261 = vmatprep.subr.bf16.mxu0 0
      %1262 = vmatpush1.bf16.xpose.msra.mxu0 0
      %1263 = vmatprep.subr.bf16.mxu0 0
      %1264 = vmatpush1.bf16.xpose.msra.mxu0 0
      %1265 = vmatprep.subr.bf16.mxu0 0
      %1266 = vmatpush1.bf16.xpose.msra.mxu0 0
      %1267 = vmatprep.subr.bf16.mxu0 0
      %1268 = vmatpush1.bf16.xpose.msra.mxu0 0
      %1269 = vmatprep.subr.bf16.mxu0 0
      %1270 = vmatpush1.bf16.xpose.msra.mxu0 0
      %1271 = vmatprep.subr.bf16.mxu0 0
      %1272 = vmatpush1.bf16.xpose.msra.mxu0 0
      %1273 = vmatprep.subr.bf16.mxu0 0
      %1274 = vmatpush1.bf16.xpose.msra.mxu0 0
      %1275 = vmatprep.subr.bf16.mxu0 0
      %1276 = vmatpush1.bf16.xpose.msra.mxu0 0
      %1277 = vmatprep.subr.bf16.mxu0 0
      %1278 = vmatpush1.bf16.xpose.msra.mxu0 0
      %1279 = vmatprep.subr.bf16.mxu0 0
      %1280 = vmatpush1.bf16.xpose.msra.mxu0 0
      %1281 = vmatprep.subr.bf16.mxu0 0
      %1282 = vmatpush1.bf16.xpose.msra.mxu0 0
      %1283 = vmatprep.subr.bf16.mxu0 0
      %1284 = vmatpush1.bf16.xpose.msra.mxu0 0
      %1285 = vmatprep.mubr.bf16.mxu0 0
      %1286 = vmatmul.mubr.bf16.gmra.mrb[0].mxu0 %v1248
      %v1287 = vpop.f32.mrb[0].mxu0
      %v1288 = vadd.f32 0.0, %v1287
      %v1289 = vpop.f32.mrb[0].mxu0
      %v1290 = vpop.f32.mrb[0].mxu0
      %v1291 = vpop.f32.mrb[0].mxu0
      %1292 = vdwg.mxu0
      %v1293 = vsel %vm770, %v1288, -inf
      %1294 = vmax.xlane.f32.xlu0 %v1293
      %v1295 = vpop.xlane.xlu0 %1294
      %v1296 = vsub.f32 %v1288, %v1295
      %v1297 = vmul.f32 %v1296, 1.442695
      %v1298 = vpow.pop %v1297
      %v1299 = vsel %vm770, %v1298, 0.0
      %1300 = vadd.xlane.f32.xlu0 %v1299
      %v1301 = vpop.xlane.xlu0 %1300
      %v1302 = vrcp.pop %v1301
      %v1303 = vmul.f32 %v1298, %v1302
      %v1304 = vpack.c.bf16 %v1303, %v1303
      %1305 = vrot.lane.b32.xlu0 %v766, 40
      %v1306 = vpop.permute.xlu0 %1305
      %v1308 = vsel %vm770, %v1304, 0
      %v1311 = vsel %vm834, %v1306, 0
      %1313 = vmatprep.subr.bf16.mxu0 0
      %1314 = vmatpush1.bf16.msra.mxu0 %v1311
      %1315 = vmatprep.subr.bf16.mxu0 0
      %1316 = vmatpush1.bf16.msra.mxu0 0
      %1317 = vmatprep.subr.bf16.mxu0 0
      %1318 = vmatpush1.bf16.msra.mxu0 0
      %1319 = vmatprep.subr.bf16.mxu0 0
      %1320 = vmatpush1.bf16.msra.mxu0 0
      %1321 = vmatprep.subr.bf16.mxu0 0
      %1322 = vmatpush1.bf16.msra.mxu0 0
      %1323 = vmatprep.subr.bf16.mxu0 0
      %1324 = vmatpush1.bf16.msra.mxu0 0
      %1325 = vmatprep.subr.bf16.mxu0 0
      %1326 = vmatpush1.bf16.msra.mxu0 0
      %1327 = vmatprep.subr.bf16.mxu0 0
      %1328 = vmatpush1.bf16.msra.mxu0 0
      %1329 = vmatprep.subr.bf16.mxu0 0
      %1330 = vmatpush1.bf16.msra.mxu0 0
      %1331 = vmatprep.subr.bf16.mxu0 0
      %1332 = vmatpush1.bf16.msra.mxu0 0
      %1333 = vmatprep.subr.bf16.mxu0 0
      %1334 = vmatpush1.bf16.msra.mxu0 0
      %1335 = vmatprep.subr.bf16.mxu0 0
      %1336 = vmatpush1.bf16.msra.mxu0 0
      %1337 = vmatprep.subr.bf16.mxu0 0
      %1338 = vmatpush1.bf16.msra.mxu0 0
      %1339 = vmatprep.subr.bf16.mxu0 0
      %1340 = vmatpush1.bf16.msra.mxu0 0
      %1341 = vmatprep.subr.bf16.mxu0 0
      %1342 = vmatpush1.bf16.msra.mxu0 0
      %1343 = vmatprep.subr.bf16.mxu0 0
      %1344 = vmatpush1.bf16.msra.mxu0 0
      %1345 = vmatprep.mubr.bf16.mxu0 0
      %1346 = vmatmul.mubr.bf16.gmra.mrb[0].mxu0 %v1308
      %v1347 = vpop.f32.mrb[0].mxu0
      %v1348 = vadd.f32 0.0, %v1347
      %v1349 = vpop.f32.mrb[0].mxu0
      %v1350 = vpop.f32.mrb[0].mxu0
      %v1351 = vpop.f32.mrb[0].mxu0
      %1352 = vdwg.mxu0
      %v1353 = vpack.c.bf16 %v1348, %v1348
      %v1354 = vld [vmem:[%s4 + $0xc] sm:$0xf]
      %v1356 = vsel %vm770, %v1353, 0
      %v1359 = vsel %vm834, %v1354, 0
      %1361 = vmatprep.subr.bf16.mxu0 0
      %1362 = vmatpush1.bf16.msra.mxu0 %v1359
      %1363 = vmatprep.subr.bf16.mxu0 0
      %1364 = vmatpush1.bf16.msra.mxu0 0
      %1365 = vmatprep.subr.bf16.mxu0 0
      %1366 = vmatpush1.bf16.msra.mxu0 0
      %1367 = vmatprep.subr.bf16.mxu0 0
      %1368 = vmatpush1.bf16.msra.mxu0 0
      %1369 = vmatprep.subr.bf16.mxu0 0
      %1370 = vmatpush1.bf16.msra.mxu0 0
      %1371 = vmatprep.subr.bf16.mxu0 0
      %1372 = vmatpush1.bf16.msra.mxu0 0
      %1373 = vmatprep.subr.bf16.mxu0 0
      %1374 = vmatpush1.bf16.msra.mxu0 0
      %1375 = vmatprep.subr.bf16.mxu0 0
      %1376 = vmatpush1.bf16.msra.mxu0 0
      %1377 = vmatprep.subr.bf16.mxu0 0
      %1378 = vmatpush1.bf16.msra.mxu0 0
      %1379 = vmatprep.subr.bf16.mxu0 0
      %1380 = vmatpush1.bf16.msra.mxu0 0
      %1381 = vmatprep.subr.bf16.mxu0 0
      %1382 = vmatpush1.bf16.msra.mxu0 0
      %1383 = vmatprep.subr.bf16.mxu0 0
      %1384 = vmatpush1.bf16.msra.mxu0 0
      %1385 = vmatprep.subr.bf16.mxu0 0
      %1386 = vmatpush1.bf16.msra.mxu0 0
      %1387 = vmatprep.subr.bf16.mxu0 0
      %1388 = vmatpush1.bf16.msra.mxu0 0
      %1389 = vmatprep.subr.bf16.mxu0 0
      %1390 = vmatpush1.bf16.msra.mxu0 0
      %1391 = vmatprep.subr.bf16.mxu0 0
      %1392 = vmatpush1.bf16.msra.mxu0 0
      %1393 = vmatprep.mubr.bf16.mxu0 0
      %1394 = vmatmul.mubr.bf16.gmra.mrb[0].mxu0 %v1356
      %v1395 = vpop.f32.mrb[0].mxu0
      %v1396 = vadd.f32 0.0, %v1395
      %v1397 = vpop.f32.mrb[0].mxu0
      %v1398 = vpop.f32.mrb[0].mxu0
      %v1399 = vpop.f32.mrb[0].mxu0
      %1400 = vdwg.mxu0
      %v1401 = vadd.f32 %v1242, %v1396
      %v1402 = vld [vmem:[%s5] sm:$0x1]
      %v1404 = vlaneseq
      %v1405 = vshrl.u32 %v1404, 7
      %v1406 = vsub.s32 0, %v1405
      %v1407 = vrot.slane %v1402, %v1406
      %v1409 = vadd.f32 %v1401, %v1407
      %v1410 = vunpack.c.l.bf16 %v697
      %v1411 = vadd.f32 %v1409, %v1410
      %v1412 = vld [vmem:[%s6] sm:$0x1]
      %v1413 = vld [vmem:[%s7] sm:$0x1]
      %v1414 = vsel %vm722, %v1411, 0.0
      %1415 = vadd.xlane.f32.xlu0 %v1414
      %v1416 = vpop.xlane.xlu0 %1415
      %v1417 = vrcp.pop 32.0
      %v1418 = vmul.f32 %v1416, %v1417
      %v1419 = vsub.f32 %v1411, %v1418
      %v1420 = vmul.f32 %v1419, %v1419
      %v1421 = vsel %vm722, %v1420, 0.0
      %1422 = vadd.xlane.f32.xlu0 %v1421
      %v1423 = vpop.xlane.xlu0 %1422
      %v1424 = vmul.f32 %v1423, %v1417
      %v1425 = vadd.f32 %v1424, 1e-05
      %v1426 = vrsqrt.pop %v1425
      %v1427 = vmul.f32 %v1419, %v1426
      %v1429 = vlaneseq
      %v1430 = vshrl.u32 %v1429, 7
      %v1431 = vsub.s32 0, %v1430
      %v1432 = vrot.slane %v1412, %v1431
      %v1434 = vmul.f32 %v1427, %v1432
      %v1436 = vlaneseq
      %v1437 = vshrl.u32 %v1436, 7
      %v1438 = vsub.s32 0, %v1437
      %v1439 = vrot.slane %v1413, %v1438
      %v1441 = vadd.f32 %v1434, %v1439
      %v1442 = vpack.c.bf16 %v1441, %v1441
      %v1443 = vld [vmem:[%s8] sm:$0xf]
      %v1444 = vld [vmem:[%s8 + $0x4] sm:$0xf]
      %v1445 = vld [vmem:[%s8 + $0x8] sm:$0xf]
      %v1446 = vld [vmem:[%s8 + $0xc] sm:$0xf]
      %v1447 = vld [vmem:[%s9] sm:$0x1]
      %v1449 = vlaneseq
      %v1450 = vshrl.u32 %v1449, 7
      %v1451 = vsub.s32 0, %v1450
      %v1452 = vrot.slane %v1447, %v1451
      %v1458 = vunpack.c.l.b16 %v1443
      %v1459 = vunpack.c.l.b16 %v1444
      %v1460 = vunpack.c.l.b16 %v1445
      %v1461 = vunpack.c.l.b16 %v1446
      %v1462 = vpack.c.b16 %v1459, %v1458
      %v1463 = vpack.c.b16 %v1461, %v1460
      %v1467 = vsel %vm722, %v1442, 0
      %1469 = vmatprep.subr.bf16.mxu0 0
      %1470 = vmatpush1.bf16.msra.mxu0 %v1462
      %1471 = vmatprep.subr.bf16.mxu0 0
      %1472 = vmatpush1.bf16.msra.mxu0 %v1463
      %1473 = vmatprep.subr.bf16.mxu0 0
      %1474 = vmatpush1.bf16.msra.mxu0 0
      %1475 = vmatprep.subr.bf16.mxu0 0
      %1476 = vmatpush1.bf16.msra.mxu0 0
      %1477 = vmatprep.subr.bf16.mxu0 0
      %1478 = vmatpush1.bf16.msra.mxu0 0
      %1479 = vmatprep.subr.bf16.mxu0 0
      %1480 = vmatpush1.bf16.msra.mxu0 0
      %1481 = vmatprep.subr.bf16.mxu0 0
      %1482 = vmatpush1.bf16.msra.mxu0 0
      %1483 = vmatprep.subr.bf16.mxu0 0
      %1484 = vmatpush1.bf16.msra.mxu0 0
      %1485 = vmatprep.subr.bf16.mxu0 0
      %1486 = vmatpush1.bf16.msra.mxu0 0
      %1487 = vmatprep.subr.bf16.mxu0 0
      %1488 = vmatpush1.bf16.msra.mxu0 0
      %1489 = vmatprep.subr.bf16.mxu0 0
      %1490 = vmatpush1.bf16.msra.mxu0 0
      %1491 = vmatprep.subr.bf16.mxu0 0
      %1492 = vmatpush1.bf16.msra.mxu0 0
      %1493 = vmatprep.subr.bf16.mxu0 0
      %1494 = vmatpush1.bf16.msra.mxu0 0
      %1495 = vmatprep.subr.bf16.mxu0 0
      %1496 = vmatpush1.bf16.msra.mxu0 0
      %1497 = vmatprep.subr.bf16.mxu0 0
      %1498 = vmatpush1.bf16.msra.mxu0 0
      %1499 = vmatprep.subr.bf16.mxu0 0
      %1500 = vmatpush1.bf16.msra.mxu0 0
      %1501 = vmatprep.mubr.bf16.mxu0 0
      %1502 = vmatmul.mubr.bf16.gmra.mrb[0].mxu0 %v1467
      %v1503 = vpop.f32.mrb[0].mxu0
      %v1504 = vadd.f32 %v1452, %v1503
      %v1505 = vpop.f32.mrb[0].mxu0
      %v1506 = vpop.f32.mrb[0].mxu0
      %v1507 = vpop.f32.mrb[0].mxu0
      %1508 = vdwg.mxu0
      %v1509 = vpack.c.bf16 %v1504, %v1504
      %v1510 = vld [vmem:[%s10] sm:$0xf]
      %v1511 = vld [vmem:[%s10 + $0x4] sm:$0xf]
      %v1512 = vld [vmem:[%s10 + $0x8] sm:$0xf]
      %v1513 = vld [vmem:[%s10 + $0xc] sm:$0xf]
      %v1514 = vld [vmem:[%s11] sm:$0x1]
      %v1516 = vlaneseq
      %v1517 = vshrl.u32 %v1516, 7
      %v1518 = vsub.s32 0, %v1517
      %v1519 = vrot.slane %v1514, %v1518
      %v1525 = vunpack.c.l.b16 %v1510
      %v1526 = vunpack.c.l.b16 %v1511
      %v1527 = vunpack.c.l.b16 %v1512
      %v1528 = vunpack.c.l.b16 %v1513
      %v1529 = vpack.c.b16 %v1526, %v1525
      %v1530 = vpack.c.b16 %v1528, %v1527
      %v1534 = vsel %vm722, %v698, 0
      %1536 = vmatprep.subr.bf16.mxu0 0
      %1537 = vmatpush1.bf16.msra.mxu0 %v1529
      %1538 = vmatprep.subr.bf16.mxu0 0
      %1539 = vmatpush1.bf16.msra.mxu0 %v1530
      %1540 = vmatprep.subr.bf16.mxu0 0
      %1541 = vmatpush1.bf16.msra.mxu0 0
      %1542 = vmatprep.subr.bf16.mxu0 0
      %1543 = vmatpush1.bf16.msra.mxu0 0
      %1544 = vmatprep.subr.bf16.mxu0 0
      %1545 = vmatpush1.bf16.msra.mxu0 0
      %1546 = vmatprep.subr.bf16.mxu0 0
      %1547 = vmatpush1.bf16.msra.mxu0 0
      %1548 = vmatprep.subr.bf16.mxu0 0
      %1549 = vmatpush1.bf16.msra.mxu0 0
      %1550 = vmatprep.subr.bf16.mxu0 0
      %1551 = vmatpush1.bf16.msra.mxu0 0
      %1552 = vmatprep.subr.bf16.mxu0 0
      %1553 = vmatpush1.bf16.msra.mxu0 0
      %1554 = vmatprep.subr.bf16.mxu0 0
      %1555 = vmatpush1.bf16.msra.mxu0 0
      %1556 = vmatprep.subr.bf16.mxu0 0
      %1557 = vmatpush1.bf16.msra.mxu0 0
      %1558 = vmatprep.subr.bf16.mxu0 0
      %1559 = vmatpush1.bf16.msra.mxu0 0
      %1560 = vmatprep.subr.bf16.mxu0 0
      %1561 = vmatpush1.bf16.msra.mxu0 0
      %1562 = vmatprep.subr.bf16.mxu0 0
      %1563 = vmatpush1.bf16.msra.mxu0 0
      %1564 = vmatprep.subr.bf16.mxu0 0
      %1565 = vmatpush1.bf16.msra.mxu0 0
      %1566 = vmatprep.subr.bf16.mxu0 0
      %1567 = vmatpush1.bf16.msra.mxu0 0
      %1568 = vmatprep.mubr.bf16.mxu0 0
      %1569 = vmatmul.mubr.bf16.gmra.mrb[0].mxu0 %v1534
      %v1570 = vpop.f32.mrb[0].mxu0
      %v1571 = vadd.f32 %v1519, %v1570
      %v1572 = vpop.f32.mrb[0].mxu0
      %v1573 = vpop.f32.mrb[0].mxu0
      %v1574 = vpop.f32.mrb[0].mxu0
      %1575 = vdwg.mxu0
      %v1576 = vpack.c.bf16 %v1571, %v1571
      %v1578 = vsel %vm770, %v1509, 0
      %v1581 = vsel %vm770, %v1576, 0
      %1583 = vmatprep.subr.bf16.mxu0 0
      %1584 = vmatpush1.bf16.xpose.msra.mxu0 %v1581
      %1585 = vmatprep.subr.bf16.mxu0 0
      %1586 = vmatpush1.bf16.xpose.msra.mxu0 0
      %1587 = vmatprep.subr.bf16.mxu0 0
      %1588 = vmatpush1.bf16.xpose.msra.mxu0 0
      %1589 = vmatprep.subr.bf16.mxu0 0
      %1590 = vmatpush1.bf16.xpose.msra.mxu0 0
      %1591 = vmatprep.subr.bf16.mxu0 0
      %1592 = vmatpush1.bf16.xpose.msra.mxu0 0
      %1593 = vmatprep.subr.bf16.mxu0 0
      %1594 = vmatpush1.bf16.xpose.msra.mxu0 0
      %1595 = vmatprep.subr.bf16.mxu0 0
      %1596 = vmatpush1.bf16.xpose.msra.mxu0 0
      %1597 = vmatprep.subr.bf16.mxu0 0
      %1598 = vmatpush1.bf16.xpose.msra.mxu0 0
      %1599 = vmatprep.subr.bf16.mxu0 0
      %1600 = vmatpush1.bf16.xpose.msra.mxu0 0
      %1601 = vmatprep.subr.bf16.mxu0 0
      %1602 = vmatpush1.bf16.xpose.msra.mxu0 0
      %1603 = vmatprep.subr.bf16.mxu0 0
      %1604 = vmatpush1.bf16.xpose.msra.mxu0 0
      %1605 = vmatprep.subr.bf16.mxu0 0
      %1606 = vmatpush1.bf16.xpose.msra.mxu0 0
      %1607 = vmatprep.subr.bf16.mxu0 0
      %1608 = vmatpush1.bf16.xpose.msra.mxu0 0
      %1609 = vmatprep.subr.bf16.mxu0 0
      %1610 = vmatpush1.bf16.xpose.msra.mxu0 0
      %1611 = vmatprep.subr.bf16.mxu0 0
      %1612 = vmatpush1.bf16.xpose.msra.mxu0 0
      %1613 = vmatprep.subr.bf16.mxu0 0
      %1614 = vmatpush1.bf16.xpose.msra.mxu0 0
      %1615 = vmatprep.mubr.bf16.mxu0 0
      %1616 = vmatmul.mubr.bf16.gmra.mrb[0].mxu0 %v1578
      %v1617 = vpop.f32.mrb[0].mxu0
      %v1618 = vadd.f32 0.0, %v1617
      %v1619 = vpop.f32.mrb[0].mxu0
      %v1620 = vpop.f32.mrb[0].mxu0
      %v1621 = vpop.f32.mrb[0].mxu0
      %1622 = vdwg.mxu0
      %v1623 = vsel %vm770, %v1618, -inf
      %1624 = vmax.xlane.f32.xlu0 %v1623
      %v1625 = vpop.xlane.xlu0 %1624
      %v1626 = vsub.f32 %v1618, %v1625
      %v1627 = vmul.f32 %v1626, 1.442695
      %v1628 = vpow.pop %v1627
      %v1629 = vsel %vm770, %v1628, 0.0
      %1630 = vadd.xlane.f32.xlu0 %v1629
      %v1631 = vpop.xlane.xlu0 %1630
      %v1632 = vrcp.pop %v1631
      %v1633 = vmul.f32 %v1628, %v1632
      %v1634 = vpack.c.bf16 %v1633, %v1633
      %1636 = vrot.lane.b32.xlu0 %v1576, 96
      %v1637 = vpop.permute.xlu0 %1636
      %v1639 = vsel %vm770, %v1634, 0
      %v1642 = vsel %vm834, %v1637, 0
      %1644 = vmatprep.subr.bf16.mxu0 0
      %1645 = vmatpush1.bf16.msra.mxu0 %v1642
      %1646 = vmatprep.subr.bf16.mxu0 0
      %1647 = vmatpush1.bf16.msra.mxu0 0
      %1648 = vmatprep.subr.bf16.mxu0 0
      %1649 = vmatpush1.bf16.msra.mxu0 0
      %1650 = vmatprep.subr.bf16.mxu0 0
      %1651 = vmatpush1.bf16.msra.mxu0 0
      %1652 = vmatprep.subr.bf16.mxu0 0
      %1653 = vmatpush1.bf16.msra.mxu0 0
      %1654 = vmatprep.subr.bf16.mxu0 0
      %1655 = vmatpush1.bf16.msra.mxu0 0
      %1656 = vmatprep.subr.bf16.mxu0 0
      %1657 = vmatpush1.bf16.msra.mxu0 0
      %1658 = vmatprep.subr.bf16.mxu0 0
      %1659 = vmatpush1.bf16.msra.mxu0 0
      %1660 = vmatprep.subr.bf16.mxu0 0
      %1661 = vmatpush1.bf16.msra.mxu0 0
      %1662 = vmatprep.subr.bf16.mxu0 0
      %1663 = vmatpush1.bf16.msra.mxu0 0
      %1664 = vmatprep.subr.bf16.mxu0 0
      %1665 = vmatpush1.bf16.msra.mxu0 0
      %1666 = vmatprep.subr.bf16.mxu0 0
      %1667 = vmatpush1.bf16.msra.mxu0 0
      %1668 = vmatprep.subr.bf16.mxu0 0
      %1669 = vmatpush1.bf16.msra.mxu0 0
      %1670 = vmatprep.subr.bf16.mxu0 0
      %1671 = vmatpush1.bf16.msra.mxu0 0
      %1672 = vmatprep.subr.bf16.mxu0 0
      %1673 = vmatpush1.bf16.msra.mxu0 0
      %1674 = vmatprep.subr.bf16.mxu0 0
      %1675 = vmatpush1.bf16.msra.mxu0 0
      %1676 = vmatprep.mubr.bf16.mxu0 0
      %1677 = vmatmul.mubr.bf16.gmra.mrb[0].mxu0 %v1639
      %v1678 = vpop.f32.mrb[0].mxu0
      %v1679 = vadd.f32 0.0, %v1678
      %v1680 = vpop.f32.mrb[0].mxu0
      %v1681 = vpop.f32.mrb[0].mxu0
      %v1682 = vpop.f32.mrb[0].mxu0
      %1683 = vdwg.mxu0
      %v1684 = vpack.c.bf16 %v1679, %v1679
      %v1685 = vld [vmem:[%s12] sm:$0xf]
      %1687 = vrot.lane.b32.xlu0 %v1509, 120
      %v1688 = vpop.permute.xlu0 %1687
      %1689 = vrot.lane.b32.xlu0 %v1576, 120
      %v1690 = vpop.permute.xlu0 %1689
      %v1692 = vsel %vm770, %v1688, 0
      %v1695 = vsel %vm770, %v1690, 0
      %1697 = vmatprep.subr.bf16.mxu0 0
      %1698 = vmatpush1.bf16.xpose.msra.mxu0 %v1695
      %1699 = vmatprep.subr.bf16.mxu0 0
      %1700 = vmatpush1.bf16.xpose.msra.mxu0 0
      %1701 = vmatprep.subr.bf16.mxu0 0
      %1702 = vmatpush1.bf16.xpose.msra.mxu0 0
      %1703 = vmatprep.subr.bf16.mxu0 0
      %1704 = vmatpush1.bf16.xpose.msra.mxu0 0
      %1705 = vmatprep.subr.bf16.mxu0 0
      %1706 = vmatpush1.bf16.xpose.msra.mxu0 0
      %1707 = vmatprep.subr.bf16.mxu0 0
      %1708 = vmatpush1.bf16.xpose.msra.mxu0 0
      %1709 = vmatprep.subr.bf16.mxu0 0
      %1710 = vmatpush1.bf16.xpose.msra.mxu0 0
      %1711 = vmatprep.subr.bf16.mxu0 0
      %1712 = vmatpush1.bf16.xpose.msra.mxu0 0
      %1713 = vmatprep.subr.bf16.mxu0 0
      %1714 = vmatpush1.bf16.xpose.msra.mxu0 0
      %1715 = vmatprep.subr.bf16.mxu0 0
      %1716 = vmatpush1.bf16.xpose.msra.mxu0 0
      %1717 = vmatprep.subr.bf16.mxu0 0
      %1718 = vmatpush1.bf16.xpose.msra.mxu0 0
      %1719 = vmatprep.subr.bf16.mxu0 0
      %1720 = vmatpush1.bf16.xpose.msra.mxu0 0
      %1721 = vmatprep.subr.bf16.mxu0 0
      %1722 = vmatpush1.bf16.xpose.msra.mxu0 0
      %1723 = vmatprep.subr.bf16.mxu0 0
      %1724 = vmatpush1.bf16.xpose.msra.mxu0 0
      %1725 = vmatprep.subr.bf16.mxu0 0
      %1726 = vmatpush1.bf16.xpose.msra.mxu0 0
      %1727 = vmatprep.subr.bf16.mxu0 0
      %1728 = vmatpush1.bf16.xpose.msra.mxu0 0
      %1729 = vmatprep.mubr.bf16.mxu0 0
      %1730 = vmatmul.mubr.bf16.gmra.mrb[0].mxu0 %v1692
      %v1731 = vpop.f32.mrb[0].mxu0
      %v1732 = vadd.f32 0.0, %v1731
      %v1733 = vpop.f32.mrb[0].mxu0
      %v1734 = vpop.f32.mrb[0].mxu0
      %v1735 = vpop.f32.mrb[0].mxu0
      %1736 = vdwg.mxu0
      %v1737 = vsel %vm770, %v1732, -inf
      %1738 = vmax.xlane.f32.xlu0 %v1737
      %v1739 = vpop.xlane.xlu0 %1738
      %v1740 = vsub.f32 %v1732, %v1739
      %v1741 = vmul.f32 %v1740, 1.442695
      %v1742 = vpow.pop %v1741
      %v1743 = vsel %vm770, %v1742, 0.0
      %1744 = vadd.xlane.f32.xlu0 %v1743
      %v1745 = vpop.xlane.xlu0 %1744
      %v1746 = vrcp.pop %v1745
      %v1747 = vmul.f32 %v1742, %v1746
      %v1748 = vpack.c.bf16 %v1747, %v1747
      %1749 = vrot.lane.b32.xlu0 %v1576, 88
      %v1750 = vpop.permute.xlu0 %1749
      %v1752 = vsel %vm770, %v1748, 0
      %v1755 = vsel %vm834, %v1750, 0
      %1757 = vmatprep.subr.bf16.mxu0 0
      %1758 = vmatpush1.bf16.msra.mxu0 %v1755
      %1759 = vmatprep.subr.bf16.mxu0 0
      %1760 = vmatpush1.bf16.msra.mxu0 0
      %1761 = vmatprep.subr.bf16.mxu0 0
      %1762 = vmatpush1.bf16.msra.mxu0 0
      %1763 = vmatprep.subr.bf16.mxu0 0
      %1764 = vmatpush1.bf16.msra.mxu0 0
      %1765 = vmatprep.subr.bf16.mxu0 0
      %1766 = vmatpush1.bf16.msra.mxu0 0
      %1767 = vmatprep.subr.bf16.mxu0 0
      %1768 = vmatpush1.bf16.msra.mxu0 0
      %1769 = vmatprep.subr.bf16.mxu0 0
      %1770 = vmatpush1.bf16.msra.mxu0 0
      %1771 = vmatprep.subr.bf16.mxu0 0
      %1772 = vmatpush1.bf16.msra.mxu0 0
      %1773 = vmatprep.subr.bf16.mxu0 0
      %1774 = vmatpush1.bf16.msra.mxu0 0
      %1775 = vmatprep.subr.bf16.mxu0 0
      %1776 = vmatpush1.bf16.msra.mxu0 0
      %1777 = vmatprep.subr.bf16.mxu0 0
      %1778 = vmatpush1.bf16.msra.mxu0 0
      %1779 = vmatprep.subr.bf16.mxu0 0
      %1780 = vmatpush1.bf16.msra.mxu0 0
      %1781 = vmatprep.subr.bf16.mxu0 0
      %1782 = vmatpush1.bf16.msra.mxu0 0
      %1783 = vmatprep.subr.bf16.mxu0 0
      %1784 = vmatpush1.bf16.msra.mxu0 0
      %1785 = vmatprep.subr.bf16.mxu0 0
      %1786 = vmatpush1.bf16.msra.mxu0 0
      %1787 = vmatprep.subr.bf16.mxu0 0
      %1788 = vmatpush1.bf16.msra.mxu0 0
      %1789 = vmatprep.mubr.bf16.mxu0 0
      %1790 = vmatmul.mubr.bf16.gmra.mrb[0].mxu0 %v1752
      %v1791 = vpop.f32.mrb[0].mxu0
      %v1792 = vadd.f32 0.0, %v1791
      %v1793 = vpop.f32.mrb[0].mxu0
      %v1794 = vpop.f32.mrb[0].mxu0
      %v1795 = vpop.f32.mrb[0].mxu0
      %1796 = vdwg.mxu0
      %v1797 = vpack.c.bf16 %v1792, %v1792
      %v1798 = vld [vmem:[%s12 + $0x4] sm:$0xf]
      %v1800 = vsel %vm770, %v1797, 0
      %v1803 = vsel %vm834, %v1798, 0
      %1805 = vmatprep.subr.bf16.mxu0 0
      %1806 = vmatpush1.bf16.msra.mxu0 %v1803
      %1807 = vmatprep.subr.bf16.mxu0 0
      %1808 = vmatpush1.bf16.msra.mxu0 0
      %1809 = vmatprep.subr.bf16.mxu0 0
      %1810 = vmatpush1.bf16.msra.mxu0 0
      %1811 = vmatprep.subr.bf16.mxu0 0
      %1812 = vmatpush1.bf16.msra.mxu0 0
      %1813 = vmatprep.subr.bf16.mxu0 0
      %1814 = vmatpush1.bf16.msra.mxu0 0
      %1815 = vmatprep.subr.bf16.mxu0 0
      %1816 = vmatpush1.bf16.msra.mxu0 0
      %1817 = vmatprep.subr.bf16.mxu0 0
      %1818 = vmatpush1.bf16.msra.mxu0 0
      %1819 = vmatprep.subr.bf16.mxu0 0
      %1820 = vmatpush1.bf16.msra.mxu0 0
      %1821 = vmatprep.subr.bf16.mxu0 0
      %1822 = vmatpush1.bf16.msra.mxu0 0
      %1823 = vmatprep.subr.bf16.mxu0 0
      %1824 = vmatpush1.bf16.msra.mxu0 0
      %1825 = vmatprep.subr.bf16.mxu0 0
      %1826 = vmatpush1.bf16.msra.mxu0 0
      %1827 = vmatprep.subr.bf16.mxu0 0
      %1828 = vmatpush1.bf16.msra.mxu0 0
      %1829 = vmatprep.subr.bf16.mxu0 0
      %1830 = vmatpush1.bf16.msra.mxu0 0
      %1831 = vmatprep.subr.bf16.mxu0 0
      %1832 = vmatpush1.bf16.msra.mxu0 0
      %1833 = vmatprep.subr.bf16.mxu0 0
      %1834 = vmatpush1.bf16.msra.mxu0 0
      %1835 = vmatprep.subr.bf16.mxu0 0
      %1836 = vmatpush1.bf16.msra.mxu0 0
      %1837 = vmatprep.mubr.bf16.mxu0 0
      %1838 = vmatmul.mubr.bf16.gmra.mrb[0].mxu0 %v1800
      %v1839 = vpop.f32.mrb[0].mxu0
      %v1840 = vadd.f32 0.0, %v1839
      %v1841 = vpop.f32.mrb[0].mxu0
      %v1842 = vpop.f32.mrb[0].mxu0
      %v1843 = vpop.f32.mrb[0].mxu0
      %1844 = vdwg.mxu0
      %v1846 = vsel %vm770, %v1684, 0
      %v1849 = vsel %vm834, %v1685, 0
      %1851 = vmatprep.subr.bf16.mxu0 0
      %1852 = vmatpush1.bf16.msra.mxu0 %v1849
      %1853 = vmatprep.subr.bf16.mxu0 0
      %1854 = vmatpush1.bf16.msra.mxu0 0
      %1855 = vmatprep.subr.bf16.mxu0 0
      %1856 = vmatpush1.bf16.msra.mxu0 0
      %1857 = vmatprep.subr.bf16.mxu0 0
      %1858 = vmatpush1.bf16.msra.mxu0 0
      %1859 = vmatprep.subr.bf16.mxu0 0
      %1860 = vmatpush1.bf16.msra.mxu0 0
      %1861 = vmatprep.subr.bf16.mxu0 0
      %1862 = vmatpush1.bf16.msra.mxu0 0
      %1863 = vmatprep.subr.bf16.mxu0 0
      %1864 = vmatpush1.bf16.msra.mxu0 0
      %1865 = vmatprep.subr.bf16.mxu0 0
      %1866 = vmatpush1.bf16.msra.mxu0 0
      %1867 = vmatprep.subr.bf16.mxu0 0
      %1868 = vmatpush1.bf16.msra.mxu0 0
      %1869 = vmatprep.subr.bf16.mxu0 0
      %1870 = vmatpush1.bf16.msra.mxu0 0
      %1871 = vmatprep.subr.bf16.mxu0 0
      %1872 = vmatpush1.bf16.msra.mxu0 0
      %1873 = vmatprep.subr.bf16.mxu0 0
      %1874 = vmatpush1.bf16.msra.mxu0 0
      %1875 = vmatprep.subr.bf16.mxu0 0
      %1876 = vmatpush1.bf16.msra.mxu0 0
      %1877 = vmatprep.subr.bf16.mxu0 0
      %1878 = vmatpush1.bf16.msra.mxu0 0
      %1879 = vmatprep.subr.bf16.mxu0 0
      %1880 = vmatpush1.bf16.msra.mxu0 0
      %1881 = vmatprep.subr.bf16.mxu0 0
      %1882 = vmatpush1.bf16.msra.mxu0 0
      %1883 = vmatprep.mubr.bf16.mxu0 0
      %1884 = vmatmul.mubr.bf16.gmra.mrb[0].mxu0 %v1846
      %v1885 = vpop.f32.mrb[0].mxu0
      %v1886 = vadd.f32 %v1840, %v1885
      %v1887 = vpop.f32.mrb[0].mxu0
      %v1888 = vpop.f32.mrb[0].mxu0
      %v1889 = vpop.f32.mrb[0].mxu0
      %1890 = vdwg.mxu0
      %1891 = vrot.lane.b32.xlu0 %v1509, 112
      %v1892 = vpop.permute.xlu0 %1891
      %1893 = vrot.lane.b32.xlu0 %v1576, 112
      %v1894 = vpop.permute.xlu0 %1893
      %v1896 = vsel %vm770, %v1892, 0
      %v1899 = vsel %vm770, %v1894, 0
      %1901 = vmatprep.subr.bf16.mxu0 0
      %1902 = vmatpush1.bf16.xpose.msra.mxu0 %v1899
      %1903 = vmatprep.subr.bf16.mxu0 0
      %1904 = vmatpush1.bf16.xpose.msra.mxu0 0
      %1905 = vmatprep.subr.bf16.mxu0 0
      %1906 = vmatpush1.bf16.xpose.msra.mxu0 0
      %1907 = vmatprep.subr.bf16.mxu0 0
      %1908 = vmatpush1.bf16.xpose.msra.mxu0 0
      %1909 = vmatprep.subr.bf16.mxu0 0
      %1910 = vmatpush1.bf16.xpose.msra.mxu0 0
      %1911 = vmatprep.subr.bf16.mxu0 0
      %1912 = vmatpush1.bf16.xpose.msra.mxu0 0
      %1913 = vmatprep.subr.bf16.mxu0 0
      %1914 = vmatpush1.bf16.xpose.msra.mxu0 0
      %1915 = vmatprep.subr.bf16.mxu0 0
      %1916 = vmatpush1.bf16.xpose.msra.mxu0 0
      %1917 = vmatprep.subr.bf16.mxu0 0
      %1918 = vmatpush1.bf16.xpose.msra.mxu0 0
      %1919 = vmatprep.subr.bf16.mxu0 0
      %1920 = vmatpush1.bf16.xpose.msra.mxu0 0
      %1921 = vmatprep.subr.bf16.mxu0 0
      %1922 = vmatpush1.bf16.xpose.msra.mxu0 0
      %1923 = vmatprep.subr.bf16.mxu0 0
      %1924 = vmatpush1.bf16.xpose.msra.mxu0 0
      %1925 = vmatprep.subr.bf16.mxu0 0
      %1926 = vmatpush1.bf16.xpose.msra.mxu0 0
      %1927 = vmatprep.subr.bf16.mxu0 0
      %1928 = vmatpush1.bf16.xpose.msra.mxu0 0
      %1929 = vmatprep.subr.bf16.mxu0 0
      %1930 = vmatpush1.bf16.xpose.msra.mxu0 0
      %1931 = vmatprep.subr.bf16.mxu0 0
      %1932 = vmatpush1.bf16.xpose.msra.mxu0 0
      %1933 = vmatprep.mubr.bf16.mxu0 0
      %1934 = vmatmul.mubr.bf16.gmra.mrb[0].mxu0 %v1896
      %v1935 = vpop.f32.mrb[0].mxu0
      %v1936 = vadd.f32 0.0, %v1935
      %v1937 = vpop.f32.mrb[0].mxu0
      %v1938 = vpop.f32.mrb[0].mxu0
      %v1939 = vpop.f32.mrb[0].mxu0
      %1940 = vdwg.mxu0
      %v1941 = vsel %vm770, %v1936, -inf
      %1942 = vmax.xlane.f32.xlu0 %v1941
      %v1943 = vpop.xlane.xlu0 %1942
      %v1944 = vsub.f32 %v1936, %v1943
      %v1945 = vmul.f32 %v1944, 1.442695
      %v1946 = vpow.pop %v1945
      %v1947 = vsel %vm770, %v1946, 0.0
      %1948 = vadd.xlane.f32.xlu0 %v1947
      %v1949 = vpop.xlane.xlu0 %1948
      %v1950 = vrcp.pop %v1949
      %v1951 = vmul.f32 %v1946, %v1950
      %v1952 = vpack.c.bf16 %v1951, %v1951
      %1953 = vrot.lane.b32.xlu0 %v1576, 80
      %v1954 = vpop.permute.xlu0 %1953
      %v1956 = vsel %vm770, %v1952, 0
      %v1959 = vsel %vm834, %v1954, 0
      %1961 = vmatprep.subr.bf16.mxu0 0
      %1962 = vmatpush1.bf16.msra.mxu0 %v1959
      %1963 = vmatprep.subr.bf16.mxu0 0
      %1964 = vmatpush1.bf16.msra.mxu0 0
      %1965 = vmatprep.subr.bf16.mxu0 0
      %1966 = vmatpush1.bf16.msra.mxu0 0
      %1967 = vmatprep.subr.bf16.mxu0 0
      %1968 = vmatpush1.bf16.msra.mxu0 0
      %1969 = vmatprep.subr.bf16.mxu0 0
      %1970 = vmatpush1.bf16.msra.mxu0 0
      %1971 = vmatprep.subr.bf16.mxu0 0
      %1972 = vmatpush1.bf16.msra.mxu0 0
      %1973 = vmatprep.subr.bf16.mxu0 0
      %1974 = vmatpush1.bf16.msra.mxu0 0
      %1975 = vmatprep.subr.bf16.mxu0 0
      %1976 = vmatpush1.bf16.msra.mxu0 0
      %1977 = vmatprep.subr.bf16.mxu0 0
      %1978 = vmatpush1.bf16.msra.mxu0 0
      %1979 = vmatprep.subr.bf16.mxu0 0
      %1980 = vmatpush1.bf16.msra.mxu0 0
      %1981 = vmatprep.subr.bf16.mxu0 0
      %1982 = vmatpush1.bf16.msra.mxu0 0
      %1983 = vmatprep.subr.bf16.mxu0 0
      %1984 = vmatpush1.bf16.msra.mxu0 0
      %1985 = vmatprep.subr.bf16.mxu0 0
      %1986 = vmatpush1.bf16.msra.mxu0 0
      %1987 = vmatprep.subr.bf16.mxu0 0
      %1988 = vmatpush1.bf16.msra.mxu0 0
      %1989 = vmatprep.subr.bf16.mxu0 0
      %1990 = vmatpush1.bf16.msra.mxu0 0
      %1991 = vmatprep.subr.bf16.mxu0 0
      %1992 = vmatpush1.bf16.msra.mxu0 0
      %1993 = vmatprep.mubr.bf16.mxu0 0
      %1994 = vmatmul.mubr.bf16.gmra.mrb[0].mxu0 %v1956
      %v1995 = vpop.f32.mrb[0].mxu0
      %v1996 = vadd.f32 0.0, %v1995
      %v1997 = vpop.f32.mrb[0].mxu0
      %v1998 = vpop.f32.mrb[0].mxu0
      %v1999 = vpop.f32.mrb[0].mxu0
      %2000 = vdwg.mxu0
      %v2001 = vpack.c.bf16 %v1996, %v1996
      %v2002 = vld [vmem:[%s12 + $0x8] sm:$0xf]
      %v2004 = vsel %vm770, %v2001, 0
      %v2007 = vsel %vm834, %v2002, 0
      %2009 = vmatprep.subr.bf16.mxu0 0
      %2010 = vmatpush1.bf16.msra.mxu0 %v2007
      %2011 = vmatprep.subr.bf16.mxu0 0
      %2012 = vmatpush1.bf16.msra.mxu0 0
      %2013 = vmatprep.subr.bf16.mxu0 0
      %2014 = vmatpush1.bf16.msra.mxu0 0
      %2015 = vmatprep.subr.bf16.mxu0 0
      %2016 = vmatpush1.bf16.msra.mxu0 0
      %2017 = vmatprep.subr.bf16.mxu0 0
      %2018 = vmatpush1.bf16.msra.mxu0 0
      %2019 = vmatprep.subr.bf16.mxu0 0
      %2020 = vmatpush1.bf16.msra.mxu0 0
      %2021 = vmatprep.subr.bf16.mxu0 0
      %2022 = vmatpush1.bf16.msra.mxu0 0
      %2023 = vmatprep.subr.bf16.mxu0 0
      %2024 = vmatpush1.bf16.msra.mxu0 0
      %2025 = vmatprep.subr.bf16.mxu0 0
      %2026 = vmatpush1.bf16.msra.mxu0 0
      %2027 = vmatprep.subr.bf16.mxu0 0
      %2028 = vmatpush1.bf16.msra.mxu0 0
      %2029 = vmatprep.subr.bf16.mxu0 0
      %2030 = vmatpush1.bf16.msra.mxu0 0
      %2031 = vmatprep.subr.bf16.mxu0 0
      %2032 = vmatpush1.bf16.msra.mxu0 0
      %2033 = vmatprep.subr.bf16.mxu0 0
      %2034 = vmatpush1.bf16.msra.mxu0 0
      %2035 = vmatprep.subr.bf16.mxu0 0
      %2036 = vmatpush1.bf16.msra.mxu0 0
      %2037 = vmatprep.subr.bf16.mxu0 0
      %2038 = vmatpush1.bf16.msra.mxu0 0
      %2039 = vmatprep.subr.bf16.mxu0 0
      %2040 = vmatpush1.bf16.msra.mxu0 0
      %2041 = vmatprep.mubr.bf16.mxu0 0
      %2042 = vmatmul.mubr.bf16.gmra.mrb[0].mxu0 %v2004
      %v2043 = vpop.f32.mrb[0].mxu0
      %v2044 = vadd.f32 0.0, %v2043
      %v2045 = vpop.f32.mrb[0].mxu0
      %v2046 = vpop.f32.mrb[0].mxu0
      %v2047 = vpop.f32.mrb[0].mxu0
      %2048 = vdwg.mxu0
      %v2049 = vadd.f32 %v1886, %v2044
      %2050 = vrot.lane.b32.xlu0 %v1509, 104
      %v2051 = vpop.permute.xlu0 %2050
      %2052 = vrot.lane.b32.xlu0 %v1576, 104
      %v2053 = vpop.permute.xlu0 %2052
      %v2055 = vsel %vm770, %v2051, 0
      %v2058 = vsel %vm770, %v2053, 0
      %2060 = vmatprep.subr.bf16.mxu0 0
      %2061 = vmatpush1.bf16.xpose.msra.mxu0 %v2058
      %2062 = vmatprep.subr.bf16.mxu0 0
      %2063 = vmatpush1.bf16.xpose.msra.mxu0 0
      %2064 = vmatprep.subr.bf16.mxu0 0
      %2065 = vmatpush1.bf16.xpose.msra.mxu0 0
      %2066 = vmatprep.subr.bf16.mxu0 0
      %2067 = vmatpush1.bf16.xpose.msra.mxu0 0
      %2068 = vmatprep.subr.bf16.mxu0 0
      %2069 = vmatpush1.bf16.xpose.msra.mxu0 0
      %2070 = vmatprep.subr.bf16.mxu0 0
      %2071 = vmatpush1.bf16.xpose.msra.mxu0 0
      %2072 = vmatprep.subr.bf16.mxu0 0
      %2073 = vmatpush1.bf16.xpose.msra.mxu0 0
      %2074 = vmatprep.subr.bf16.mxu0 0
      %2075 = vmatpush1.bf16.xpose.msra.mxu0 0
      %2076 = vmatprep.subr.bf16.mxu0 0
      %2077 = vmatpush1.bf16.xpose.msra.mxu0 0
      %2078 = vmatprep.subr.bf16.mxu0 0
      %2079 = vmatpush1.bf16.xpose.msra.mxu0 0
      %2080 = vmatprep.subr.bf16.mxu0 0
      %2081 = vmatpush1.bf16.xpose.msra.mxu0 0
      %2082 = vmatprep.subr.bf16.mxu0 0
      %2083 = vmatpush1.bf16.xpose.msra.mxu0 0
      %2084 = vmatprep.subr.bf16.mxu0 0
      %2085 = vmatpush1.bf16.xpose.msra.mxu0 0
      %2086 = vmatprep.subr.bf16.mxu0 0
      %2087 = vmatpush1.bf16.xpose.msra.mxu0 0
      %2088 = vmatprep.subr.bf16.mxu0 0
      %2089 = vmatpush1.bf16.xpose.msra.mxu0 0
      %2090 = vmatprep.subr.bf16.mxu0 0
      %2091 = vmatpush1.bf16.xpose.msra.mxu0 0
      %2092 = vmatprep.mubr.bf16.mxu0 0
      %2093 = vmatmul.mubr.bf16.gmra.mrb[0].mxu0 %v2055
      %v2094 = vpop.f32.mrb[0].mxu0
      %v2095 = vadd.f32 0.0, %v2094
      %v2096 = vpop.f32.mrb[0].mxu0
      %v2097 = vpop.f32.mrb[0].mxu0
      %v2098 = vpop.f32.mrb[0].mxu0
      %2099 = vdwg.mxu0
      %v2100 = vsel %vm770, %v2095, -inf
      %2101 = vmax.xlane.f32.xlu0 %v2100
      %v2102 = vpop.xlane.xlu0 %2101
      %v2103 = vsub.f32 %v2095, %v2102
      %v2104 = vmul.f32 %v2103, 1.442695
      %v2105 = vpow.pop %v2104
      %v2106 = vsel %vm770, %v2105, 0.0
      %2107 = vadd.xlane.f32.xlu0 %v2106
      %v2108 = vpop.xlane.xlu0 %2107
      %v2109 = vrcp.pop %v2108
      %v2110 = vmul.f32 %v2105, %v2109
      %v2111 = vpack.c.bf16 %v2110, %v2110
      %2112 = vrot.lane.b32.xlu0 %v1576, 72
      %v2113 = vpop.permute.xlu0 %2112
      %v2115 = vsel %vm770, %v2111, 0
      %v2118 = vsel %vm834, %v2113, 0
      %2120 = vmatprep.subr.bf16.mxu0 0
      %2121 = vmatpush1.bf16.msra.mxu0 %v2118
      %2122 = vmatprep.subr.bf16.mxu0 0
      %2123 = vmatpush1.bf16.msra.mxu0 0
      %2124 = vmatprep.subr.bf16.mxu0 0
      %2125 = vmatpush1.bf16.msra.mxu0 0
      %2126 = vmatprep.subr.bf16.mxu0 0
      %2127 = vmatpush1.bf16.msra.mxu0 0
      %2128 = vmatprep.subr.bf16.mxu0 0
      %2129 = vmatpush1.bf16.msra.mxu0 0
      %2130 = vmatprep.subr.bf16.mxu0 0
      %2131 = vmatpush1.bf16.msra.mxu0 0
      %2132 = vmatprep.subr.bf16.mxu0 0
      %2133 = vmatpush1.bf16.msra.mxu0 0
      %2134 = vmatprep.subr.bf16.mxu0 0
      %2135 = vmatpush1.bf16.msra.mxu0 0
      %2136 = vmatprep.subr.bf16.mxu0 0
      %2137 = vmatpush1.bf16.msra.mxu0 0
      %2138 = vmatprep.subr.bf16.mxu0 0
      %2139 = vmatpush1.bf16.msra.mxu0 0
      %2140 = vmatprep.subr.bf16.mxu0 0
      %2141 = vmatpush1.bf16.msra.mxu0 0
      %2142 = vmatprep.subr.bf16.mxu0 0
      %2143 = vmatpush1.bf16.msra.mxu0 0
      %2144 = vmatprep.subr.bf16.mxu0 0
      %2145 = vmatpush1.bf16.msra.mxu0 0
      %2146 = vmatprep.subr.bf16.mxu0 0
      %2147 = vmatpush1.bf16.msra.mxu0 0
      %2148 = vmatprep.subr.bf16.mxu0 0
      %2149 = vmatpush1.bf16.msra.mxu0 0
      %2150 = vmatprep.subr.bf16.mxu0 0
      %2151 = vmatpush1.bf16.msra.mxu0 0
      %2152 = vmatprep.mubr.bf16.mxu0 0
      %2153 = vmatmul.mubr.bf16.gmra.mrb[0].mxu0 %v2115
      %v2154 = vpop.f32.mrb[0].mxu0
      %v2155 = vadd.f32 0.0, %v2154
      %v2156 = vpop.f32.mrb[0].mxu0
      %v2157 = vpop.f32.mrb[0].mxu0
      %v2158 = vpop.f32.mrb[0].mxu0
      %2159 = vdwg.mxu0
      %v2160 = vpack.c.bf16 %v2155, %v2155
      %v2161 = vld [vmem:[%s12 + $0xc] sm:$0xf]
      %v2163 = vsel %vm770, %v2160, 0
      %v2166 = vsel %vm834, %v2161, 0
      %2168 = vmatprep.subr.bf16.mxu0 0
      %2169 = vmatpush1.bf16.msra.mxu0 %v2166
      %2170 = vmatprep.subr.bf16.mxu0 0
      %2171 = vmatpush1.bf16.msra.mxu0 0
      %2172 = vmatprep.subr.bf16.mxu0 0
      %2173 = vmatpush1.bf16.msra.mxu0 0
      %2174 = vmatprep.subr.bf16.mxu0 0
      %2175 = vmatpush1.bf16.msra.mxu0 0
      %2176 = vmatprep.subr.bf16.mxu0 0
      %2177 = vmatpush1.bf16.msra.mxu0 0
      %2178 = vmatprep.subr.bf16.mxu0 0
      %2179 = vmatpush1.bf16.msra.mxu0 0
      %2180 = vmatprep.subr.bf16.mxu0 0
      %2181 = vmatpush1.bf16.msra.mxu0 0
      %2182 = vmatprep.subr.bf16.mxu0 0
      %2183 = vmatpush1.bf16.msra.mxu0 0
      %2184 = vmatprep.subr.bf16.mxu0 0
      %2185 = vmatpush1.bf16.msra.mxu0 0
      %2186 = vmatprep.subr.bf16.mxu0 0
      %2187 = vmatpush1.bf16.msra.mxu0 0
      %2188 = vmatprep.subr.bf16.mxu0 0
      %2189 = vmatpush1.bf16.msra.mxu0 0
      %2190 = vmatprep.subr.bf16.mxu0 0
      %2191 = vmatpush1.bf16.msra.mxu0 0
      %2192 = vmatprep.subr.bf16.mxu0 0
      %2193 = vmatpush1.bf16.msra.mxu0 0
      %2194 = vmatprep.subr.bf16.mxu0 0
      %2195 = vmatpush1.bf16.msra.mxu0 0
      %2196 = vmatprep.subr.bf16.mxu0 0
      %2197 = vmatpush1.bf16.msra.mxu0 0
      %2198 = vmatprep.subr.bf16.mxu0 0
      %2199 = vmatpush1.bf16.msra.mxu0 0
      %2200 = vmatprep.mubr.bf16.mxu0 0
      %2201 = vmatmul.mubr.bf16.gmra.mrb[0].mxu0 %v2163
      %v2202 = vpop.f32.mrb[0].mxu0
      %v2203 = vadd.f32 0.0, %v2202
      %v2204 = vpop.f32.mrb[0].mxu0
      %v2205 = vpop.f32.mrb[0].mxu0
      %v2206 = vpop.f32.mrb[0].mxu0
      %2207 = vdwg.mxu0
      %v2208 = vadd.f32 %v2049, %v2203
      %v2209 = vld [vmem:[%s13] sm:$0x1]
      %v2211 = vlaneseq
      %v2212 = vshrl.u32 %v2211, 7
      %v2213 = vsub.s32 0, %v2212
      %v2214 = vrot.slane %v2209, %v2213
      %v2216 = vadd.f32 %v2208, %v2214
      %v2217 = vadd.f32 %v2216, %v1441
      %v2218 = vld [vmem:[%s14] sm:$0x1]
      %v2219 = vld [vmem:[%s15] sm:$0x1]
      %v2220 = vsel %vm722, %v2217, 0.0
      %2221 = vadd.xlane.f32.xlu0 %v2220
      %v2222 = vpop.xlane.xlu0 %2221
      %v2223 = vmul.f32 %v2222, %v1417
      %v2224 = vsub.f32 %v2217, %v2223
      %v2225 = vmul.f32 %v2224, %v2224
      %v2226 = vsel %vm722, %v2225, 0.0
      %2227 = vadd.xlane.f32.xlu0 %v2226
      %v2228 = vpop.xlane.xlu0 %2227
      %v2229 = vmul.f32 %v2228, %v1417
      %v2230 = vadd.f32 %v2229, 1e-05
      %v2231 = vrsqrt.pop %v2230
      %v2232 = vmul.f32 %v2224, %v2231
      %v2234 = vlaneseq
      %v2235 = vshrl.u32 %v2234, 7
      %v2236 = vsub.s32 0, %v2235
      %v2237 = vrot.slane %v2218, %v2236
      %v2239 = vmul.f32 %v2232, %v2237
      %v2241 = vlaneseq
      %v2242 = vshrl.u32 %v2241, 7
      %v2243 = vsub.s32 0, %v2242
      %v2244 = vrot.slane %v2219, %v2243
      %v2246 = vadd.f32 %v2239, %v2244
      %v2247 = vpack.c.bf16 %v2246, %v2246
      %v2248 = vld [vmem:[%s16] sm:$0xf]
      %v2249 = vld [vmem:[%s16 + $0x4] sm:$0xf]
      %v2250 = vld [vmem:[%s16 + $0x8] sm:$0xf]
      %v2251 = vld [vmem:[%s16 + $0xc] sm:$0xf]
      %v2252 = vld [vmem:[%s17] sm:$0x1]
      %v2254 = vlaneseq
      %v2255 = vshrl.u32 %v2254, 7
      %v2256 = vsub.s32 0, %v2255
      %v2257 = vrot.slane %v2252, %v2256
      %v2263 = vunpack.c.l.b16 %v2248
      %v2264 = vunpack.c.l.b16 %v2249
      %v2265 = vunpack.c.l.b16 %v2250
      %v2266 = vunpack.c.l.b16 %v2251
      %v2267 = vpack.c.b16 %v2264, %v2263
      %v2268 = vpack.c.b16 %v2266, %v2265
      %v2272 = vsel %vm722, %v2247, 0
      %2274 = vmatprep.subr.bf16.mxu0 0
      %2275 = vmatpush1.bf16.msra.mxu0 %v2267
      %2276 = vmatprep.subr.bf16.mxu0 0
      %2277 = vmatpush1.bf16.msra.mxu0 %v2268
      %2278 = vmatprep.subr.bf16.mxu0 0
      %2279 = vmatpush1.bf16.msra.mxu0 0
      %2280 = vmatprep.subr.bf16.mxu0 0
      %2281 = vmatpush1.bf16.msra.mxu0 0
      %2282 = vmatprep.subr.bf16.mxu0 0
      %2283 = vmatpush1.bf16.msra.mxu0 0
      %2284 = vmatprep.subr.bf16.mxu0 0
      %2285 = vmatpush1.bf16.msra.mxu0 0
      %2286 = vmatprep.subr.bf16.mxu0 0
      %2287 = vmatpush1.bf16.msra.mxu0 0
      %2288 = vmatprep.subr.bf16.mxu0 0
      %2289 = vmatpush1.bf16.msra.mxu0 0
      %2290 = vmatprep.subr.bf16.mxu0 0
      %2291 = vmatpush1.bf16.msra.mxu0 0
      %2292 = vmatprep.subr.bf16.mxu0 0
      %2293 = vmatpush1.bf16.msra.mxu0 0
      %2294 = vmatprep.subr.bf16.mxu0 0
      %2295 = vmatpush1.bf16.msra.mxu0 0
      %2296 = vmatprep.subr.bf16.mxu0 0
      %2297 = vmatpush1.bf16.msra.mxu0 0
      %2298 = vmatprep.subr.bf16.mxu0 0
      %2299 = vmatpush1.bf16.msra.mxu0 0
      %2300 = vmatprep.subr.bf16.mxu0 0
      %2301 = vmatpush1.bf16.msra.mxu0 0
      %2302 = vmatprep.subr.bf16.mxu0 0
      %2303 = vmatpush1.bf16.msra.mxu0 0
      %2304 = vmatprep.subr.bf16.mxu0 0
      %2305 = vmatpush1.bf16.msra.mxu0 0
      %2306 = vmatprep.mubr.bf16.mxu0 0
      %2307 = vmatmul.mubr.bf16.gmra.mrb[0].mxu0 %v2272
      %v2308 = vpop.f32.mrb[0].mxu0
      %v2309 = vadd.f32 %v2257, %v2308
      %v2310 = vpop.f32.mrb[0].mxu0
      %v2311 = vpop.f32.mrb[0].mxu0
      %v2312 = vpop.f32.mrb[0].mxu0
      %2313 = vdwg.mxu0
      %v2314 = vmax.f32 %v2309, 0.0
      %v2315 = vpack.c.bf16 %v2314, %v2314
      %v2316 = vld [vmem:[%s18] sm:$0xf]
      %v2317 = vld [vmem:[%s18 + $0x4] sm:$0xf]
      %v2318 = vld [vmem:[%s18 + $0x8] sm:$0xf]
      %v2319 = vld [vmem:[%s18 + $0xc] sm:$0xf]
      %v2320 = vld [vmem:[%s18 + $0x10] sm:$0xf]
      %v2321 = vld [vmem:[%s18 + $0x14] sm:$0xf]
      %v2322 = vld [vmem:[%s18 + $0x18] sm:$0xf]
      %v2323 = vld [vmem:[%s18 + $0x1c] sm:$0xf]
      %v2324 = vld [vmem:[%s19] sm:$0x1]
      %v2326 = vlaneseq
      %v2327 = vshrl.u32 %v2326, 7
      %v2328 = vsub.s32 0, %v2327
      %v2329 = vrot.slane %v2324, %v2328
      %v2339 = vunpack.c.l.b16 %v2316
      %v2340 = vunpack.c.l.b16 %v2317
      %v2341 = vunpack.c.l.b16 %v2318
      %v2342 = vunpack.c.l.b16 %v2319
      %v2343 = vunpack.c.l.b16 %v2320
      %v2344 = vunpack.c.l.b16 %v2321
      %v2345 = vunpack.c.l.b16 %v2322
      %v2346 = vunpack.c.l.b16 %v2323
      %v2347 = vpack.c.b16 %v2340, %v2339
      %v2348 = vpack.c.b16 %v2342, %v2341
      %v2349 = vpack.c.b16 %v2344, %v2343
      %v2350 = vpack.c.b16 %v2346, %v2345
      %vm2355 = vcmask 523264
      %v2357 = vsel %vm2355, %v2315, 0
      %2359 = vmatprep.subr.bf16.mxu0 0
      %2360 = vmatpush1.bf16.msra.mxu0 %v2347
      %2361 = vmatprep.subr.bf16.mxu0 0
      %2362 = vmatpush1.bf16.msra.mxu0 %v2348
      %2363 = vmatprep.subr.bf16.mxu0 0
      %2364 = vmatpush1.bf16.msra.mxu0 %v2349
      %2365 = vmatprep.subr.bf16.mxu0 0
      %2366 = vmatpush1.bf16.msra.mxu0 %v2350
      %2367 = vmatprep.subr.bf16.mxu0 0
      %2368 = vmatpush1.bf16.msra.mxu0 0
      %2369 = vmatprep.subr.bf16.mxu0 0
      %2370 = vmatpush1.bf16.msra.mxu0 0
      %2371 = vmatprep.subr.bf16.mxu0 0
      %2372 = vmatpush1.bf16.msra.mxu0 0
      %2373 = vmatprep.subr.bf16.mxu0 0
      %2374 = vmatpush1.bf16.msra.mxu0 0
      %2375 = vmatprep.subr.bf16.mxu0 0
      %2376 = vmatpush1.bf16.msra.mxu0 0
      %2377 = vmatprep.subr.bf16.mxu0 0
      %2378 = vmatpush1.bf16.msra.mxu0 0
      %2379 = vmatprep.subr.bf16.mxu0 0
      %2380 = vmatpush1.bf16.msra.mxu0 0
      %2381 = vmatprep.subr.bf16.mxu0 0
      %2382 = vmatpush1.bf16.msra.mxu0 0
      %2383 = vmatprep.subr.bf16.mxu0 0
      %2384 = vmatpush1.bf16.msra.mxu0 0
      %2385 = vmatprep.subr.bf16.mxu0 0
      %2386 = vmatpush1.bf16.msra.mxu0 0
      %2387 = vmatprep.subr.bf16.mxu0 0
      %2388 = vmatpush1.bf16.msra.mxu0 0
      %2389 = vmatprep.subr.bf16.mxu0 0
      %2390 = vmatpush1.bf16.msra.mxu0 0
      %2391 = vmatprep.mubr.bf16.mxu0 0
      %2392 = vmatmul.mubr.bf16.gmra.mrb[0].mxu0 %v2357
      %v2393 = vpop.f32.mrb[0].mxu0
      %v2394 = vadd.f32 %v2329, %v2393
      %v2395 = vpop.f32.mrb[0].mxu0
      %v2396 = vpop.f32.mrb[0].mxu0
      %v2397 = vpop.f32.mrb[0].mxu0
      %2398 = vdwg.mxu0
      %v2399 = vadd.f32 %v2394, %v2246
      %v2400 = vld [vmem:[%s20] sm:$0x1]
      %v2401 = vld [vmem:[%s21] sm:$0x1]
      %v2402 = vsel %vm722, %v2399, 0.0
      %2403 = vadd.xlane.f32.xlu0 %v2402
      %v2404 = vpop.xlane.xlu0 %2403
      %v2405 = vmul.f32 %v2404, %v1417
      %v2406 = vsub.f32 %v2399, %v2405
      %v2407 = vmul.f32 %v2406, %v2406
      %v2408 = vsel %vm722, %v2407, 0.0
      %2409 = vadd.xlane.f32.xlu0 %v2408
      %v2410 = vpop.xlane.xlu0 %2409
      %v2411 = vmul.f32 %v2410, %v1417
      %v2412 = vadd.f32 %v2411, 1e-05
      %v2413 = vrsqrt.pop %v2412
      %v2414 = vmul.f32 %v2406, %v2413
      %v2416 = vlaneseq
      %v2417 = vshrl.u32 %v2416, 7
      %v2418 = vsub.s32 0, %v2417
      %v2419 = vrot.slane %v2400, %v2418
      %v2421 = vmul.f32 %v2414, %v2419
      %v2423 = vlaneseq
      %v2424 = vshrl.u32 %v2423, 7
      %v2425 = vsub.s32 0, %v2424
      %v2426 = vrot.slane %v2401, %v2425
      %v2428 = vadd.f32 %v2421, %v2426
      %v2429 = vpack.c.bf16 %v2428, %v2428
      %vm2430 = vcmask 257024
      %2431 = vst.msk [vmem:[%s695] sm:$0xf] %vm2430, %v2429
      %p2432 = scmp.lt.s32.totalorder %s33, 1
      %s2433 = scalar_select %p2432, %s33, 1
      %s2434 = smul.addr %s2433, 4
      %s2435 = scalar_lea.vmem %s22, %s2434
      // Predicated region
      $region109: #{_lambda_.10} parent=107 // pred_check
        %p2436 = pneg %p523
      $region110: #{_lambda_.10} parent=107 // pred_check_branch
        %2438 = sbr.rel (%p2436) target = $region112
      $region111: #{_lambda_.10} parent=107 // pred_region
        _
      $region112: #{_lambda_.10} parent=107 // pred_fallthru
        _
    $region108: #{_lambda_.10} parent=5 // pred_fallthru
      _
    %p2439 = scmp.le.s32.totalorder 2, %s28
    // Predicated region
    $region113: #{_lambda_.10} parent=5 // pred_check
      %p2440 = pneg %p2439
    $region114: #{_lambda_.10} parent=5 // pred_check_branch
      %2442 = sbr.rel (%p2440) target = $region116
    $region115: #{_lambda_.10} parent=5 // pred_region
      %s2443 = ssub.s32 %s28, 2
      // Predicated region
      $region117: #{_lambda_.10} parent=115 // pred_check
        %p2444 = pneg %p529
      $region118: #{_lambda_.10} parent=115 // pred_check_branch
        %2446 = sbr.rel (%p2444) target = $region120
      $region119: #{_lambda_.10} parent=115 // pred_region
        %p2447 = scmp.lt.s32.totalorder %s34, 1
        %s2448 = scalar_select %p2447, %s34, 1
        %s2449 = smul.addr %s2448, 4
        %s2450 = scalar_lea.vmem %s22, %s2449
      $region120: #{_lambda_.10} parent=115 // pred_fallthru
        _
    $region116: #{_lambda_.10} parent=5 // pred_fallthru
      _
  $region6: #{_lambda_.10} parent=0 // loop_footer
    %s32 = sadd.s32 1, %s28
  $region7: #{_lambda_.10} parent=0 // loop_footer_branch
    %27 = sbr.rel target = $region3
  $region8: #{_lambda_.10} parent=0 // loop_exit
    _

</llo_original>
